<compile_context>
chip_gen: v7x
topology: tpu7x:2x2x1
jax: 0.10.0
libtpu: 0.0.40
codegen_flags: <defaults>
</compile_context>

<pallas_src>
import jax
import jax.numpy as jnp
import numpy as np
from jax import lax
from jax.experimental import pallas as pl
from jax.experimental.pallas import tpu as pltpu


def _head_kernel(x_ref, w1_ref, b1_ref, w2_ref, b2_ref, fcw_ref, fcb_ref,
                 out_ref, pad1_ref, pad2_ref):
    # x_ref:   (TB, H, W*Cin)  bf16
    # w1_ref:  (3, W*Cin, W*C1) bf16 banded   b1_ref: (1, W*C1) f32 (bias tiled over W)
    # w2_ref:  (3, W*C1, W*C2)  bf16 banded   b2_ref: (1, W*C2) f32
    # fcw_ref: (W*C2, n_pad) f32 (fc weights tiled over W, pre-scaled by 1/hw)
    # pad*:    (TB, H+2, W*C)   bf16 scratch with a 2-row vertical halo
    TB, H, WCin = x_ref.shape
    WC1 = pad2_ref.shape[2]
    WC2 = w2_ref.shape[2]
    R = TB * H

    # ---- conv1: vertical halo pad + 3 per-ky banded matmuls, then bias + relu ----
    pad1_ref[:, 0:1, :] = jnp.zeros((TB, 1, WCin), pad1_ref.dtype)
    pad1_ref[:, H + 1:H + 2, :] = jnp.zeros((TB, 1, WCin), pad1_ref.dtype)
    pad1_ref[:, 1:H + 1, :] = x_ref[...]

    h1 = jnp.zeros((R, WC1), jnp.float32)
    for ky in range(3):
        h1 = h1 + jnp.dot(pad1_ref[:, ky:ky + H, :].reshape(R, WCin),
                          w1_ref[ky], preferred_element_type=jnp.float32)
    h1 = jnp.maximum(h1 + b1_ref[...], 0.0)                     # (R, W*C1) f32
    # TODO(synk): nn.Dropout(0.1) is identity in eval mode; training-mode stochastic
    # dropout is not implemented here.

    # ---- conv2: same structure on h1 ----
    pad2_ref[:, 0:1, :] = jnp.zeros((TB, 1, WC1), pad2_ref.dtype)
    pad2_ref[:, H + 1:H + 2, :] = jnp.zeros((TB, 1, WC1), pad2_ref.dtype)
    pad2_ref[:, 1:H + 1, :] = h1.reshape(TB, H, WC1).astype(pad2_ref.dtype)

    h2 = jnp.zeros((R, WC2), jnp.float32)
    for ky in range(3):
        h2 = h2 + jnp.dot(pad2_ref[:, ky:ky + H, :].reshape(R, WC1),
                          w2_ref[ky], preferred_element_type=jnp.float32)
    h2 = jnp.maximum(h2 + b2_ref[...], 0.0)                     # (R, W*C2) f32

    # ---- spatial mean + fc: sum over H rows, then one matmul with (1/hw)-scaled,
    # W-tiled fc weights (handles the mean over W and the channel projection). ----
    rowsum = jnp.sum(h2.reshape(TB, H, WC2), axis=1)            # (TB, W*C2) f32
    out = jnp.dot(rowsum, fcw_ref[...],
                  preferred_element_type=jnp.float32) + fcb_ref[...]
    out_ref[...] = out.astype(out_ref.dtype)                    # (TB, n_pad) lane-dense


def _banded_conv_weights(w_hwio, W, dtype):
    """(3, 3, Cin, Cout) HWIO -> (3, W*Cin, W*Cout) banded matrices (one per ky).

    band_ky[wi*Cin + ci, wo*Cout + co] = w[ky, kx, ci, co] where wi = wo + kx - 1,
    and out-of-range wi simply drops out -> SAME horizontal padding is free.
    """
    kh, kw, cin, cout = w_hwio.shape
    bands = []
    for ky in range(kh):
        b = jnp.zeros((W * cin, W * cout), jnp.float32)
        for kx in range(kw):
            off = kx - (kw // 2)                        # wi = wo + off
            shift = jnp.eye(W, k=-off, dtype=jnp.float32)   # shift[wi, wo] = (wi == wo+off)
            b = b + jnp.kron(shift, w_hwio[ky, kx].astype(jnp.float32))
        bands.append(b)
    return jnp.stack(bands).astype(dtype)


def simpler_head_forward(x, params, Fp, Tp, *, tb=32):
    """x: (B, Fp*Tp, d) float32.  Returns (B, n_cls) float32."""
    w1, b1, w2, b2, fcw, fcb = params
    B, N, d = x.shape
    assert N == Fp * Tp
    assert tb % 8 == 0, "tb must be a multiple of 8 (output block sublane constraint)"
    c1 = w1.shape[-1]
    c2 = w2.shape[-1]
    n_cls = fcw.shape[-1]
    hw = Fp * Tp
    H, W = Fp, Tp

    # batch is processed tb samples per grid step; pad B up to a multiple of tb.
    n_blk = pl.cdiv(B, tb)
    Bp = n_blk * tb

    # lane-flattened input (B, H, W*d): 256-lane-dense DMA, exactly the banded layout.
    x_flat = x.reshape(B, H, W * d).astype(jnp.bfloat16)
    if Bp != B:
        x_flat = jnp.pad(x_flat, ((0, Bp - B), (0, 0), (0, 0)))

    # banded conv weights (bf16 for the MXU) and W-tiled biases (f32).
    w1_bands = _banded_conv_weights(w1, W, jnp.bfloat16)        # (3, W*d,  W*c1)
    w2_bands = _banded_conv_weights(w2, W, jnp.bfloat16)        # (3, W*c1, W*c2)
    b1_t = jnp.tile(b1.astype(jnp.float32), W).reshape(1, W * c1)
    b2_t = jnp.tile(b2.astype(jnp.float32), W).reshape(1, W * c2)

    # fc weights tiled over W and pre-scaled by 1/hw (spatial mean folded in);
    # lane-dense output: pad n_cls up to a multiple of 128 lanes.
    n_pad = 128 * ((n_cls + 127) // 128)
    fcw_tiled = jnp.tile(fcw.astype(jnp.float32), (W, 1)) * (1.0 / hw)   # (W*c2, n_cls)
    fcw_p = jnp.zeros((W * c2, n_pad), jnp.float32).at[:, :n_cls].set(fcw_tiled)
    fcb_p = jnp.zeros((1, n_pad), jnp.float32).at[:, :n_cls].set(fcb.astype(jnp.float32))

    grid_spec = pltpu.PrefetchScalarGridSpec(
        num_scalar_prefetch=0,
        grid=(n_blk,),
        in_specs=[
            pl.BlockSpec((tb, H, W * d), lambda b: (b, 0, 0)),
            pl.BlockSpec((3, W * d, W * c1), lambda b: (0, 0, 0)),
            pl.BlockSpec((1, W * c1), lambda b: (0, 0)),
            pl.BlockSpec((3, W * c1, W * c2), lambda b: (0, 0, 0)),
            pl.BlockSpec((1, W * c2), lambda b: (0, 0)),
            pl.BlockSpec((W * c2, n_pad), lambda b: (0, 0)),
            pl.BlockSpec((1, n_pad), lambda b: (0, 0)),
        ],
        out_specs=pl.BlockSpec((tb, n_pad), lambda b: (b, 0)),
        scratch_shapes=[
            pltpu.VMEM((tb, H + 2, W * d), jnp.bfloat16),    # conv1 input, vertical halo
            pltpu.VMEM((tb, H + 2, W * c1), jnp.bfloat16),   # conv2 input, vertical halo
        ],
    )

    out = pl.pallas_call(
        _head_kernel,
        out_shape=jax.ShapeDtypeStruct((Bp, n_pad), jnp.float32),
        grid_spec=grid_spec,
        compiler_params=pltpu.CompilerParams(
            # batch blocks are fully independent (kernel is stateless across steps),
            # so the axis can be sharded across both TensorCores on v7x; neutral on
            # single-core v5e/v6e.  Keep n_blk >= 2 when choosing tb.
            dimension_semantics=("parallel",)),
    )(x_flat, w1_bands, b1_t, w2_bands, b2_t, fcw_p, fcb_p)

    return out[:B, :n_cls]


def reference_forward(x, params, Fp, Tp, conv_dtype=jnp.float32):
    """Pure-JAX reference (NHWC).  conv_dtype=bfloat16 mirrors the kernel's casts."""
    w1, b1, w2, b2, fcw, fcb = params
    B, N, d = x.shape
    h = x.reshape(B, Fp, Tp, d)
    dn = ('NHWC', 'HWIO', 'NHWC')
    h = lax.conv_general_dilated(
        h.astype(conv_dtype), w1.astype(conv_dtype), (1, 1), 'SAME',
        dimension_numbers=dn, preferred_element_type=jnp.float32) + b1
    h = jax.nn.relu(h)
    h = lax.conv_general_dilated(
        h.astype(conv_dtype), w2.astype(conv_dtype), (1, 1), 'SAME',
        dimension_numbers=dn, preferred_element_type=jnp.float32) + b2
    h = jax.nn.relu(h)
    pooled = h.mean(axis=(1, 2))
    return pooled @ fcw + fcb


def init_params(key, d, n_cls):
    c1, c2 = d // 2, d // 4
    ks = jax.random.split(key, 6)
    scale = 0.1
    w1 = scale * jax.random.normal(ks[0], (3, 3, d, c1), jnp.float32)
    b1 = scale * jax.random.normal(ks[1], (c1,), jnp.float32)
    w2 = scale * jax.random.normal(ks[2], (3, 3, c1, c2), jnp.float32)
    b2 = scale * jax.random.normal(ks[3], (c2,), jnp.float32)
    fcw = scale * jax.random.normal(ks[4], (c2, n_cls), jnp.float32)
    fcb = scale * jax.random.normal(ks[5], (n_cls,), jnp.float32)
    return (w1, b1, w2, b2, fcw, fcb)


if __name__ == "__main__":
    # B=64 with tb=32 gives a 2-step grid (keeps both v7x TensorCores busy).
    B, Fp, Tp, d, n_cls = 64, 8, 8, 32, 5
    key = jax.random.PRNGKey(0)
    k_x, k_p = jax.random.split(key)
    x = jax.random.normal(k_x, (B, Fp * Tp, d), jnp.float32)
    params = init_params(k_p, d, n_cls)

    out = jax.block_until_ready(simpler_head_forward(x, params, Fp, Tp, tb=32))

    # reference with matching bf16 conv casts (tight check) and full-f32 (loose check)
    ref_bf16 = jax.block_until_ready(
        reference_forward(x, params, Fp, Tp, conv_dtype=jnp.bfloat16))
    ref_f32 = jax.block_until_ready(
        reference_forward(x, params, Fp, Tp, conv_dtype=jnp.float32))
    np.testing.assert_allclose(np.asarray(out), np.asarray(ref_bf16),
                               atol=2e-2, rtol=2e-2)
    np.testing.assert_allclose(np.asarray(out), np.asarray(ref_f32),
                               atol=5e-2, rtol=5e-2)

    print("KERNEL_OK")
</pallas_src>

<mosaic_0001>
module attributes {stable_mosaic.version = 11 : i64} {
  func.func @_head_kernel(%arg0: i32, %arg1: memref<32x8x256xbf16, #tpu.memory_space<vmem>>, %arg2: memref<3x256x128xbf16, #tpu.memory_space<vmem>>, %arg3: memref<1x128xf32, #tpu.memory_space<vmem>>, %arg4: memref<3x128x64xbf16, #tpu.memory_space<vmem>>, %arg5: memref<1x64xf32, #tpu.memory_space<vmem>>, %arg6: memref<64x128xf32, #tpu.memory_space<vmem>>, %arg7: memref<1x128xf32, #tpu.memory_space<vmem>>, %arg8: memref<32x128xf32, #tpu.memory_space<vmem>>, %arg9: memref<32x10x256xbf16, #tpu.memory_space<vmem>>, %arg10: memref<32x10x128xbf16, #tpu.memory_space<vmem>>) attributes {dimension_semantics = [#tpu.dimension_semantics<parallel>], iteration_bounds = array<i64: 2>, scalar_prefetch = 0 : i64, scratch_operands = 2 : i64, tpu.core_type = #tpu.core_type<tc>, window_params = [{transform_indices = @transform_0, window_bounds = array<i64: 32, 8, 256>}, {pipeline_mode = #tpu.pipeline_mode<synchronous>, transform_indices = @transform_1, window_bounds = array<i64: 3, 256, 128>}, {pipeline_mode = #tpu.pipeline_mode<synchronous>, transform_indices = @transform_2, window_bounds = array<i64: 1, 128>}, {pipeline_mode = #tpu.pipeline_mode<synchronous>, transform_indices = @transform_3, window_bounds = array<i64: 3, 128, 64>}, {pipeline_mode = #tpu.pipeline_mode<synchronous>, transform_indices = @transform_4, window_bounds = array<i64: 1, 64>}, {pipeline_mode = #tpu.pipeline_mode<synchronous>, transform_indices = @transform_5, window_bounds = array<i64: 64, 128>}, {pipeline_mode = #tpu.pipeline_mode<synchronous>, transform_indices = @transform_6, window_bounds = array<i64: 1, 128>}, {transform_indices = @transform_7, window_bounds = array<i64: 32, 128>}]} {
    %cst = arith.constant 0.000000e+00 : bf16
    %0 = vector.broadcast %cst : bf16 to vector<32x1x256xbf16>
    %c0 = arith.constant 0 : index
    %c0_0 = arith.constant 0 : index
    %c0_1 = arith.constant 0 : index
    %1 = vector.load %arg9[%c0, %c0_0, %c0_1] : memref<32x10x256xbf16, #tpu.memory_space<vmem>>, vector<32x1x256xbf16>
    tpu.vector_store %arg9[%c0, %c0_0, %c0_1], %0 {strides = array<i32>} : memref<32x10x256xbf16, #tpu.memory_space<vmem>>, vector<32x1x256xbf16>,
    %cst_2 = arith.constant 0.000000e+00 : bf16
    %2 = vector.broadcast %cst_2 : bf16 to vector<32x1x256xbf16>
    %c0_3 = arith.constant 0 : index
    %c9 = arith.constant 9 : index
    %c0_4 = arith.constant 0 : index
    %3 = vector.load %arg9[%c0_3, %c9, %c0_4] : memref<32x10x256xbf16, #tpu.memory_space<vmem>>, vector<32x1x256xbf16>
    tpu.vector_store %arg9[%c0_3, %c9, %c0_4], %2 {strides = array<i32>} : memref<32x10x256xbf16, #tpu.memory_space<vmem>>, vector<32x1x256xbf16>,
    %c0_5 = arith.constant 0 : index
    %c0_6 = arith.constant 0 : index
    %c0_7 = arith.constant 0 : index
    %4 = vector.load %arg1[%c0_5, %c0_6, %c0_7] : memref<32x8x256xbf16, #tpu.memory_space<vmem>>, vector<32x8x256xbf16>
    %c0_8 = arith.constant 0 : index
    %c1 = arith.constant 1 : index
    %c0_9 = arith.constant 0 : index
    %5 = vector.load %arg9[%c0_8, %c1, %c0_9] : memref<32x10x256xbf16, #tpu.memory_space<vmem>>, vector<32x8x256xbf16>
    tpu.vector_store %arg9[%c0_8, %c1, %c0_9], %4 {strides = array<i32>} : memref<32x10x256xbf16, #tpu.memory_space<vmem>>, vector<32x8x256xbf16>,
    %cst_10 = arith.constant 0.000000e+00 : f32
    %6 = vector.broadcast %cst_10 : f32 to vector<256x128xf32>
    %c0_11 = arith.constant 0 : index
    %c0_12 = arith.constant 0 : index
    %c0_13 = arith.constant 0 : index
    %7 = vector.load %arg9[%c0_11, %c0_12, %c0_13] : memref<32x10x256xbf16, #tpu.memory_space<vmem>>, vector<32x8x256xbf16>
    %8 = vector.shape_cast %7 : vector<32x8x256xbf16> to vector<256x256xbf16>
    %c0_14 = arith.constant 0 : index
    %c0_15 = arith.constant 0 : index
    %c0_16 = arith.constant 0 : index
    %9 = vector.load %arg2[%c0_14, %c0_15, %c0_16] : memref<3x256x128xbf16, #tpu.memory_space<vmem>>, vector<1x256x128xbf16>
    %10 = vector.shape_cast %9 : vector<1x256x128xbf16> to vector<256x128xbf16>
    %cst_17 = arith.constant dense<0.000000e+00> : vector<256x128xf32>
    %11 = tpu.matmul %8, %10, %cst_17 {dimension_numbers = #tpu.dot_dimension_numbers<[1], [0], [0], [1], [0, 0, 1, 1], [], []>} : vector<256x256xbf16>, vector<256x128xbf16>, vector<256x128xf32> -> vector<256x128xf32>
    %12 = arith.addf %6, %11 : vector<256x128xf32>
    %c0_18 = arith.constant 0 : index
    %c1_19 = arith.constant 1 : index
    %c0_20 = arith.constant 0 : index
    %13 = vector.load %arg9[%c0_18, %c1_19, %c0_20] : memref<32x10x256xbf16, #tpu.memory_space<vmem>>, vector<32x8x256xbf16>
    %14 = vector.shape_cast %13 : vector<32x8x256xbf16> to vector<256x256xbf16>
    %c1_21 = arith.constant 1 : index
    %c0_22 = arith.constant 0 : index
    %c0_23 = arith.constant 0 : index
    %15 = vector.load %arg2[%c1_21, %c0_22, %c0_23] : memref<3x256x128xbf16, #tpu.memory_space<vmem>>, vector<1x256x128xbf16>
    %16 = vector.shape_cast %15 : vector<1x256x128xbf16> to vector<256x128xbf16>
    %cst_24 = arith.constant dense<0.000000e+00> : vector<256x128xf32>
    %17 = tpu.matmul %14, %16, %cst_24 {dimension_numbers = #tpu.dot_dimension_numbers<[1], [0], [0], [1], [0, 0, 1, 1], [], []>} : vector<256x256xbf16>, vector<256x128xbf16>, vector<256x128xf32> -> vector<256x128xf32>
    %18 = arith.addf %12, %17 : vector<256x128xf32>
    %c0_25 = arith.constant 0 : index
    %c2 = arith.constant 2 : index
    %c0_26 = arith.constant 0 : index
    %19 = vector.load %arg9[%c0_25, %c2, %c0_26] : memref<32x10x256xbf16, #tpu.memory_space<vmem>>, vector<32x8x256xbf16>
    %20 = vector.shape_cast %19 : vector<32x8x256xbf16> to vector<256x256xbf16>
    %c2_27 = arith.constant 2 : index
    %c0_28 = arith.constant 0 : index
    %c0_29 = arith.constant 0 : index
    %21 = vector.load %arg2[%c2_27, %c0_28, %c0_29] : memref<3x256x128xbf16, #tpu.memory_space<vmem>>, vector<1x256x128xbf16>
    %22 = vector.shape_cast %21 : vector<1x256x128xbf16> to vector<256x128xbf16>
    %cst_30 = arith.constant dense<0.000000e+00> : vector<256x128xf32>
    %23 = tpu.matmul %20, %22, %cst_30 {dimension_numbers = #tpu.dot_dimension_numbers<[1], [0], [0], [1], [0, 0, 1, 1], [], []>} : vector<256x256xbf16>, vector<256x128xbf16>, vector<256x128xf32> -> vector<256x128xf32>
    %24 = arith.addf %18, %23 : vector<256x128xf32>
    %c0_31 = arith.constant 0 : index
    %c0_32 = arith.constant 0 : index
    %25 = vector.load %arg3[%c0_31, %c0_32] : memref<1x128xf32, #tpu.memory_space<vmem>>, vector<1x128xf32>
    %26 = vector.broadcast %25 : vector<1x128xf32> to vector<256x128xf32>
    %27 = arith.addf %24, %26 : vector<256x128xf32>
    %cst_33 = arith.constant 0.000000e+00 : f32
    %28 = vector.broadcast %cst_33 : f32 to vector<256x128xf32>
    %29 = arith.maximumf %27, %28 : vector<256x128xf32>
    %cst_34 = arith.constant 0.000000e+00 : bf16
    %30 = vector.broadcast %cst_34 : bf16 to vector<32x1x128xbf16>
    %c0_35 = arith.constant 0 : index
    %c0_36 = arith.constant 0 : index
    %c0_37 = arith.constant 0 : index
    %31 = vector.load %arg10[%c0_35, %c0_36, %c0_37] : memref<32x10x128xbf16, #tpu.memory_space<vmem>>, vector<32x1x128xbf16>
    tpu.vector_store %arg10[%c0_35, %c0_36, %c0_37], %30 {strides = array<i32>} : memref<32x10x128xbf16, #tpu.memory_space<vmem>>, vector<32x1x128xbf16>,
    %cst_38 = arith.constant 0.000000e+00 : bf16
    %32 = vector.broadcast %cst_38 : bf16 to vector<32x1x128xbf16>
    %c0_39 = arith.constant 0 : index
    %c9_40 = arith.constant 9 : index
    %c0_41 = arith.constant 0 : index
    %33 = vector.load %arg10[%c0_39, %c9_40, %c0_41] : memref<32x10x128xbf16, #tpu.memory_space<vmem>>, vector<32x1x128xbf16>
    tpu.vector_store %arg10[%c0_39, %c9_40, %c0_41], %32 {strides = array<i32>} : memref<32x10x128xbf16, #tpu.memory_space<vmem>>, vector<32x1x128xbf16>,
    %34 = vector.shape_cast %29 : vector<256x128xf32> to vector<32x8x128xf32>
    %35 = arith.truncf %34 : vector<32x8x128xf32> to vector<32x8x128xbf16>
    %c0_42 = arith.constant 0 : index
    %c1_43 = arith.constant 1 : index
    %c0_44 = arith.constant 0 : index
    %36 = vector.load %arg10[%c0_42, %c1_43, %c0_44] : memref<32x10x128xbf16, #tpu.memory_space<vmem>>, vector<32x8x128xbf16>
    tpu.vector_store %arg10[%c0_42, %c1_43, %c0_44], %35 {strides = array<i32>} : memref<32x10x128xbf16, #tpu.memory_space<vmem>>, vector<32x8x128xbf16>,
    %cst_45 = arith.constant 0.000000e+00 : f32
    %37 = vector.broadcast %cst_45 : f32 to vector<256x64xf32>
    %c0_46 = arith.constant 0 : index
    %c0_47 = arith.constant 0 : index
    %c0_48 = arith.constant 0 : index
    %38 = vector.load %arg10[%c0_46, %c0_47, %c0_48] : memref<32x10x128xbf16, #tpu.memory_space<vmem>>, vector<32x8x128xbf16>
    %39 = vector.shape_cast %38 : vector<32x8x128xbf16> to vector<256x128xbf16>
    %c0_49 = arith.constant 0 : index
    %c0_50 = arith.constant 0 : index
    %c0_51 = arith.constant 0 : index
    %40 = vector.load %arg4[%c0_49, %c0_50, %c0_51] : memref<3x128x64xbf16, #tpu.memory_space<vmem>>, vector<1x128x64xbf16>
    %41 = vector.shape_cast %40 : vector<1x128x64xbf16> to vector<128x64xbf16>
    %cst_52 = arith.constant dense<0.000000e+00> : vector<256x64xf32>
    %42 = tpu.matmul %39, %41, %cst_52 {dimension_numbers = #tpu.dot_dimension_numbers<[1], [0], [0], [1], [0, 0, 1, 1], [], []>} : vector<256x128xbf16>, vector<128x64xbf16>, vector<256x64xf32> -> vector<256x64xf32>
    %43 = arith.addf %37, %42 : vector<256x64xf32>
    %c0_53 = arith.constant 0 : index
    %c1_54 = arith.constant 1 : index
    %c0_55 = arith.constant 0 : index
    %44 = vector.load %arg10[%c0_53, %c1_54, %c0_55] : memref<32x10x128xbf16, #tpu.memory_space<vmem>>, vector<32x8x128xbf16>
    %45 = vector.shape_cast %44 : vector<32x8x128xbf16> to vector<256x128xbf16>
    %c1_56 = arith.constant 1 : index
    %c0_57 = arith.constant 0 : index
    %c0_58 = arith.constant 0 : index
    %46 = vector.load %arg4[%c1_56, %c0_57, %c0_58] : memref<3x128x64xbf16, #tpu.memory_space<vmem>>, vector<1x128x64xbf16>
    %47 = vector.shape_cast %46 : vector<1x128x64xbf16> to vector<128x64xbf16>
    %cst_59 = arith.constant dense<0.000000e+00> : vector<256x64xf32>
    %48 = tpu.matmul %45, %47, %cst_59 {dimension_numbers = #tpu.dot_dimension_numbers<[1], [0], [0], [1], [0, 0, 1, 1], [], []>} : vector<256x128xbf16>, vector<128x64xbf16>, vector<256x64xf32> -> vector<256x64xf32>
    %49 = arith.addf %43, %48 : vector<256x64xf32>
    %c0_60 = arith.constant 0 : index
    %c2_61 = arith.constant 2 : index
    %c0_62 = arith.constant 0 : index
    %50 = vector.load %arg10[%c0_60, %c2_61, %c0_62] : memref<32x10x128xbf16, #tpu.memory_space<vmem>>, vector<32x8x128xbf16>
    %51 = vector.shape_cast %50 : vector<32x8x128xbf16> to vector<256x128xbf16>
    %c2_63 = arith.constant 2 : index
    %c0_64 = arith.constant 0 : index
    %c0_65 = arith.constant 0 : index
    %52 = vector.load %arg4[%c2_63, %c0_64, %c0_65] : memref<3x128x64xbf16, #tpu.memory_space<vmem>>, vector<1x128x64xbf16>
    %53 = vector.shape_cast %52 : vector<1x128x64xbf16> to vector<128x64xbf16>
    %cst_66 = arith.constant dense<0.000000e+00> : vector<256x64xf32>
    %54 = tpu.matmul %51, %53, %cst_66 {dimension_numbers = #tpu.dot_dimension_numbers<[1], [0], [0], [1], [0, 0, 1, 1], [], []>} : vector<256x128xbf16>, vector<128x64xbf16>, vector<256x64xf32> -> vector<256x64xf32>
    %55 = arith.addf %49, %54 : vector<256x64xf32>
    %c0_67 = arith.constant 0 : index
    %c0_68 = arith.constant 0 : index
    %56 = vector.load %arg5[%c0_67, %c0_68] : memref<1x64xf32, #tpu.memory_space<vmem>>, vector<1x64xf32>
    %57 = vector.broadcast %56 : vector<1x64xf32> to vector<256x64xf32>
    %58 = arith.addf %55, %57 : vector<256x64xf32>
    %cst_69 = arith.constant 0.000000e+00 : f32
    %59 = vector.broadcast %cst_69 : f32 to vector<256x64xf32>
    %60 = arith.maximumf %58, %59 : vector<256x64xf32>
    %61 = vector.shape_cast %60 : vector<256x64xf32> to vector<32x8x64xf32>
    %cst_70 = arith.constant dense<0.000000e+00> : vector<32x64xf32>
    %62 = vector.multi_reduction <add>, %61, %cst_70 [1] : vector<32x8x64xf32> to vector<32x64xf32>
    %c0_71 = arith.constant 0 : index
    %c0_72 = arith.constant 0 : index
    %63 = vector.load %arg6[%c0_71, %c0_72] : memref<64x128xf32, #tpu.memory_space<vmem>>, vector<64x128xf32>
    %cst_73 = arith.constant dense<0.000000e+00> : vector<32x128xf32>
    %64 = tpu.matmul %62, %63, %cst_73 {dimension_numbers = #tpu.dot_dimension_numbers<[1], [0], [0], [1], [0, 0, 1, 1], [], []>} : vector<32x64xf32>, vector<64x128xf32>, vector<32x128xf32> -> vector<32x128xf32>
    %c0_74 = arith.constant 0 : index
    %c0_75 = arith.constant 0 : index
    %65 = vector.load %arg7[%c0_74, %c0_75] : memref<1x128xf32, #tpu.memory_space<vmem>>, vector<1x128xf32>
    %66 = vector.broadcast %65 : vector<1x128xf32> to vector<32x128xf32>
    %67 = arith.addf %64, %66 : vector<32x128xf32>
    %c0_76 = arith.constant 0 : index
    %c0_77 = arith.constant 0 : index
    %68 = vector.load %arg8[%c0_76, %c0_77] : memref<32x128xf32, #tpu.memory_space<vmem>>, vector<32x128xf32>
    tpu.vector_store %arg8[%c0_76, %c0_77], %67 {strides = array<i32>} : memref<32x128xf32, #tpu.memory_space<vmem>>, vector<32x128xf32>,
    return
  }
  func.func @transform_0(%arg0: i32) -> (i32, i32, i32) {
    %c0_i32 = arith.constant 0 : i32
    %c0_i32_0 = arith.constant 0 : i32
    %c0_i32_1 = arith.constant 0 : i32
    return %arg0, %c0_i32, %c0_i32_0 : i32, i32, i32
  }
  func.func @transform_1(%arg0: i32) -> (i32, i32, i32) {
    %c0_i32 = arith.constant 0 : i32
    %c0_i32_0 = arith.constant 0 : i32
    %c0_i32_1 = arith.constant 0 : i32
    %c0_i32_2 = arith.constant 0 : i32
    return %c0_i32, %c0_i32_0, %c0_i32_1 : i32, i32, i32
  }
  func.func @transform_2(%arg0: i32) -> (i32, i32) {
    %c0_i32 = arith.constant 0 : i32
    %c0_i32_0 = arith.constant 0 : i32
    %c0_i32_1 = arith.constant 0 : i32
    return %c0_i32, %c0_i32_0 : i32, i32
  }
  func.func @transform_3(%arg0: i32) -> (i32, i32, i32) {
    %c0_i32 = arith.constant 0 : i32
    %c0_i32_0 = arith.constant 0 : i32
    %c0_i32_1 = arith.constant 0 : i32
    %c0_i32_2 = arith.constant 0 : i32
    return %c0_i32, %c0_i32_0, %c0_i32_1 : i32, i32, i32
  }
  func.func @transform_4(%arg0: i32) -> (i32, i32) {
    %c0_i32 = arith.constant 0 : i32
    %c0_i32_0 = arith.constant 0 : i32
    %c0_i32_1 = arith.constant 0 : i32
    return %c0_i32, %c0_i32_0 : i32, i32
  }
  func.func @transform_5(%arg0: i32) -> (i32, i32) {
    %c0_i32 = arith.constant 0 : i32
    %c0_i32_0 = arith.constant 0 : i32
    %c0_i32_1 = arith.constant 0 : i32
    return %c0_i32, %c0_i32_0 : i32, i32
  }
  func.func @transform_6(%arg0: i32) -> (i32, i32) {
    %c0_i32 = arith.constant 0 : i32
    %c0_i32_0 = arith.constant 0 : i32
    %c0_i32_1 = arith.constant 0 : i32
    return %c0_i32, %c0_i32_0 : i32, i32
  }
  func.func @transform_7(%arg0: i32) -> (i32, i32) {
    %c0_i32 = arith.constant 0 : i32
    %c0_i32_0 = arith.constant 0 : i32
    return %arg0, %c0_i32 : i32, i32
  }
}

</mosaic_0001>

<llo_original>
// kernel: tpu_custom_call.1
$region0: #{tpu_custom_call.1}
  #allocation0 [shape = 'u32[]', space=smem, size = 0x4, offset = 0x4, fixed_abs, tag = 'smem constant byte address 0x4 - core index']
  #allocation1 [shape = 'u32[144,128]{1,0:T(1,128)}', space=vmem, size = 0x12000, scoped, tag = 'internal scratch']
  #allocation2 [shape = 'bf16[32,10,256]{2,1,0:T(8,128)(2,1)}', space=vmem, size = 0x40000, scoped, tag = 'scratch operand']
  #allocation3 [shape = 'bf16[32,10,128]{2,1,0:T(8,128)(2,1)}', space=vmem, size = 0x20000, scoped, tag = 'scratch operand']
  %s0 = inlined_call_operand.hbm [shape: bf16[64,8,256], index: 0, kind: input, shape index: {}]
  %s1 = inlined_call_operand.hbm [shape: bf16[3,256,128], index: 1, kind: input, shape index: {}]
  %s2 = inlined_call_operand.vmem [shape: f32[1,128], index: 2, kind: input, shape index: {}]
  %s3 = inlined_call_operand.vmem [shape: bf16[3,128,64], index: 3, kind: input, shape index: {}]
  %s4 = inlined_call_operand.vmem [shape: f32[1,64], index: 4, kind: input, shape index: {}]
  %s5 = inlined_call_operand.vmem [shape: f32[64,128], index: 5, kind: input, shape index: {}]
  %s6 = inlined_call_operand.vmem [shape: f32[1,128], index: 6, kind: input, shape index: {}]
  %s7 = inlined_call_operand.hbm [shape: f32[64,128], index: 7, kind: output, shape index: {}]
  %s8 = sld [smem:[#allocation0]]
  $region69: #{tpu_custom_call.1} parent=0
    _
  %s10 = ssub.s32 1, %s8
  %s11 = scalar_select 0, %s10, %s8
  $region1: #{tpu_custom_call.1} parent=0
    #allocation4 [shape = 'u8[262144]{0}', space=vmem, size = 0x40000, scoped, tag = 'input window, operand 0']
    #allocation5 [shape = 's32[2]{0}', space=sflag, size = 0x8, scoped, tag = 'scoped memory for tpu_custom_call.1']
    #allocation6 [shape = 's32[2]{0}', space=sflag, size = 0x8, scoped, tag = 'scoped memory for tpu_custom_call.1']
    #allocation7 [shape = 'u8[196608]{0}', space=vmem, size = 0x30000, scoped, tag = 'input window, operand 1, single buffered']
    #allocation8 [shape = 's32[1]{0}', space=sflag, size = 0x4, scoped, tag = 'scoped memory for tpu_custom_call.1']
    #allocation9 [shape = 'u8[32768]{0}', space=vmem, size = 0x8000, scoped, tag = 'output window, operand 0']
    %12 = vsyncpa [#allocation5], 0
    %s13 = scalar_lea.sflag [#allocation5], 1
    %14 = vsyncpa %s13, 0
    %15 = vsyncpa [#allocation8], 0
    %16 = vsyncpa [#allocation6], 0
    %s17 = scalar_lea.sflag [#allocation6], 1
    %18 = vsyncpa %s17, 0
    loop: start=0, step=1, limit=4
    $region2: #{tpu_custom_call.1} parent=1 // loop_pre_header
      _
    $region3: #{tpu_custom_call.1} parent=1 // loop_header
      %s20 = sphi 0, %s24
      %p21 = scmp.ge.s32.totalorder %s20, 4
      %s30 = sphi 0, %s32
      %s33 = sphi 0, %s30
      %s34 = sphi 0, %s33
      %s50 = sphi 0, %s34
      %s54 = sphi 0, %s54
      %s56 = sphi 0, %s54
      %s57 = sphi 0, %s56
      %s71 = sphi 0, %s57
      %s75 = sphi 0, %s75
      %s77 = sphi 0, %s75
      %s78 = sphi 0, %s77
      %s92 = sphi 0, %s78
      %s96 = sphi 0, %s96
      %s98 = sphi 0, %s96
      %s99 = sphi 0, %s98
      %s113 = sphi 0, %s99
      %s117 = sphi 0, %s117
      %s119 = sphi 0, %s117
      %s120 = sphi 0, %s119
      %s134 = sphi 0, %s120
      %s138 = sphi 0, %s138
      %s140 = sphi 0, %s138
      %s141 = sphi 0, %s140
      %s155 = sphi 0, %s141
      %s159 = sphi 0, %s159
      %s161 = sphi 0, %s159
      %s162 = sphi 0, %s161
      %s176 = sphi 0, %s162
      %s182 = sphi 0, %s184
      %s185 = sphi 0, %s182
      %s186 = sphi 0, %s185
      %s202 = sphi 0, %s186
    $region4: #{tpu_custom_call.1} parent=1 // loop_header_branch
      %23 = sbr.rel (%p21) target = $region8
    $region5: #{tpu_custom_call.1} parent=1 // loop_body
      %s25 = ssub.s32 %s20, 1
      %s26 = ssub.s32 %s20, 2
      %s27 = sadd.s32 %s20, 1
      %s28 = ssub.s32 %s20, %s27
      %p29 = scmp.eq.s32.totalorder %s28, 0
      %s31 = sadd.s32 %s30, 1
      %s32 = scalar_select %p29, %s30, %s31
      %p35 = pneg %p29
      %p36 = scmp.eq.s32.totalorder %s20, 1
      %p37 = por %p35, %p36
      %p38 = scmp.ne.s32.totalorder %s30, %s33
      %p39 = scmp.eq.s32.totalorder %s20, 0
      %p40 = por %p38, %p39
      %p41 = scmp.ne.s32.totalorder %s30, %s33
      %p42 = scmp.eq.s32.totalorder %s25, 1
      %p43 = por %p41, %p42
      %p44 = scmp.ne.s32.totalorder %s33, %s34
      %p45 = scmp.eq.s32.totalorder %s25, 0
      %p46 = por %p44, %p45
      %p47 = scmp.ne.s32.totalorder %s33, %s34
      %p48 = scmp.eq.s32.totalorder %s26, 1
      %p49 = por %p47, %p48
      %p51 = scmp.ne.s32.totalorder %s34, %s50
      %p52 = scmp.eq.s32.totalorder %s26, 0
      %p53 = por %p51, %p52
      %s55 = sadd.s32 %s54, 1
      %p58 = scmp.eq.s32.totalorder %s20, 1
      %p59 = scmp.ne.s32.totalorder %s54, %s56
      %p60 = scmp.eq.s32.totalorder %s20, 0
      %p61 = por %p59, %p60
      %p62 = scmp.ne.s32.totalorder %s54, %s56
      %p63 = scmp.eq.s32.totalorder %s25, 1
      %p64 = por %p62, %p63
      %p65 = scmp.ne.s32.totalorder %s56, %s57
      %p66 = scmp.eq.s32.totalorder %s25, 0
      %p67 = por %p65, %p66
      %p68 = scmp.ne.s32.totalorder %s56, %s57
      %p69 = scmp.eq.s32.totalorder %s26, 1
      %p70 = por %p68, %p69
      %p72 = scmp.ne.s32.totalorder %s57, %s71
      %p73 = scmp.eq.s32.totalorder %s26, 0
      %p74 = por %p72, %p73
      %s76 = sadd.s32 %s75, 1
      %p79 = scmp.eq.s32.totalorder %s20, 1
      %p80 = scmp.ne.s32.totalorder %s75, %s77
      %p81 = scmp.eq.s32.totalorder %s20, 0
      %p82 = por %p80, %p81
      %p83 = scmp.ne.s32.totalorder %s75, %s77
      %p84 = scmp.eq.s32.totalorder %s25, 1
      %p85 = por %p83, %p84
      %p86 = scmp.ne.s32.totalorder %s77, %s78
      %p87 = scmp.eq.s32.totalorder %s25, 0
      %p88 = por %p86, %p87
      %p89 = scmp.ne.s32.totalorder %s77, %s78
      %p90 = scmp.eq.s32.totalorder %s26, 1
      %p91 = por %p89, %p90
      %p93 = scmp.ne.s32.totalorder %s78, %s92
      %p94 = scmp.eq.s32.totalorder %s26, 0
      %p95 = por %p93, %p94
      %s97 = sadd.s32 %s96, 1
      %p100 = scmp.eq.s32.totalorder %s20, 1
      %p101 = scmp.ne.s32.totalorder %s96, %s98
      %p102 = scmp.eq.s32.totalorder %s20, 0
      %p103 = por %p101, %p102
      %p104 = scmp.ne.s32.totalorder %s96, %s98
      %p105 = scmp.eq.s32.totalorder %s25, 1
      %p106 = por %p104, %p105
      %p107 = scmp.ne.s32.totalorder %s98, %s99
      %p108 = scmp.eq.s32.totalorder %s25, 0
      %p109 = por %p107, %p108
      %p110 = scmp.ne.s32.totalorder %s98, %s99
      %p111 = scmp.eq.s32.totalorder %s26, 1
      %p112 = por %p110, %p111
      %p114 = scmp.ne.s32.totalorder %s99, %s113
      %p115 = scmp.eq.s32.totalorder %s26, 0
      %p116 = por %p114, %p115
      %s118 = sadd.s32 %s117, 1
      %p121 = scmp.eq.s32.totalorder %s20, 1
      %p122 = scmp.ne.s32.totalorder %s117, %s119
      %p123 = scmp.eq.s32.totalorder %s20, 0
      %p124 = por %p122, %p123
      %p125 = scmp.ne.s32.totalorder %s117, %s119
      %p126 = scmp.eq.s32.totalorder %s25, 1
      %p127 = por %p125, %p126
      %p128 = scmp.ne.s32.totalorder %s119, %s120
      %p129 = scmp.eq.s32.totalorder %s25, 0
      %p130 = por %p128, %p129
      %p131 = scmp.ne.s32.totalorder %s119, %s120
      %p132 = scmp.eq.s32.totalorder %s26, 1
      %p133 = por %p131, %p132
      %p135 = scmp.ne.s32.totalorder %s120, %s134
      %p136 = scmp.eq.s32.totalorder %s26, 0
      %p137 = por %p135, %p136
      %s139 = sadd.s32 %s138, 1
      %p142 = scmp.eq.s32.totalorder %s20, 1
      %p143 = scmp.ne.s32.totalorder %s138, %s140
      %p144 = scmp.eq.s32.totalorder %s20, 0
      %p145 = por %p143, %p144
      %p146 = scmp.ne.s32.totalorder %s138, %s140
      %p147 = scmp.eq.s32.totalorder %s25, 1
      %p148 = por %p146, %p147
      %p149 = scmp.ne.s32.totalorder %s140, %s141
      %p150 = scmp.eq.s32.totalorder %s25, 0
      %p151 = por %p149, %p150
      %p152 = scmp.ne.s32.totalorder %s140, %s141
      %p153 = scmp.eq.s32.totalorder %s26, 1
      %p154 = por %p152, %p153
      %p156 = scmp.ne.s32.totalorder %s141, %s155
      %p157 = scmp.eq.s32.totalorder %s26, 0
      %p158 = por %p156, %p157
      %s160 = sadd.s32 %s159, 1
      %p163 = scmp.eq.s32.totalorder %s20, 1
      %p164 = scmp.ne.s32.totalorder %s159, %s161
      %p165 = scmp.eq.s32.totalorder %s20, 0
      %p166 = por %p164, %p165
      %p167 = scmp.ne.s32.totalorder %s159, %s161
      %p168 = scmp.eq.s32.totalorder %s25, 1
      %p169 = por %p167, %p168
      %p170 = scmp.ne.s32.totalorder %s161, %s162
      %p171 = scmp.eq.s32.totalorder %s25, 0
      %p172 = por %p170, %p171
      %p173 = scmp.ne.s32.totalorder %s161, %s162
      %p174 = scmp.eq.s32.totalorder %s26, 1
      %p175 = por %p173, %p174
      %p177 = scmp.ne.s32.totalorder %s162, %s176
      %p178 = scmp.eq.s32.totalorder %s26, 0
      %p179 = por %p177, %p178
      %s180 = ssub.s32 %s20, %s27
      %p181 = scmp.eq.s32.totalorder %s180, 0
      %s183 = sadd.s32 %s182, 1
      %s184 = scalar_select %p181, %s182, %s183
      %p187 = pneg %p181
      %p188 = scmp.eq.s32.totalorder %s20, 1
      %p189 = por %p187, %p188
      %p190 = scmp.ne.s32.totalorder %s182, %s185
      %p191 = scmp.eq.s32.totalorder %s20, 0
      %p192 = por %p190, %p191
      %p193 = scmp.ne.s32.totalorder %s182, %s185
      %p194 = scmp.eq.s32.totalorder %s25, 1
      %p195 = por %p193, %p194
      %p196 = scmp.ne.s32.totalorder %s185, %s186
      %p197 = scmp.eq.s32.totalorder %s25, 0
      %p198 = por %p196, %p197
      %p199 = scmp.ne.s32.totalorder %s185, %s186
      %p200 = scmp.eq.s32.totalorder %s26, 1
      %p201 = por %p199, %p200
      %p203 = scmp.ne.s32.totalorder %s186, %s202
      %p204 = scmp.eq.s32.totalorder %s26, 0
      %p205 = por %p203, %p204
      %p206 = scmp.le.s32.totalorder 1, %s20
      %p207 = scmp.lt.s32.totalorder %s20, 3
      %p208 = pnand %p206, %p207
      %p209 = pneg %p208
      // Predicated region
      $region9: #{tpu_custom_call.1} parent=5 // pred_check
        _
      $region10: #{tpu_custom_call.1} parent=5 // pred_check_branch
        %211 = sbr.rel (%p208) target = $region12
      $region11: #{tpu_custom_call.1} parent=5 // pred_region
        %s212 = ssub.s32 %s20, 1
        // Predicated region
        $region13: #{tpu_custom_call.1} parent=11 // pred_check
          %p213 = pneg %p67
        $region14: #{tpu_custom_call.1} parent=11 // pred_check_branch
          %215 = sbr.rel (%p213) target = $region16
        $region15: #{tpu_custom_call.1} parent=11 // pred_region
          %s217 = ssub.s32 6144, 6144
          %218 = vsyncadd [#allocation8], %s217
          %s219 = sshll.u32 [#allocation7], 4
          %s220 = int_to_ptr.vmem [resolvable:$true] %s219
          %225 = dma.hbm_to_vmem [thread:$0]  %s1, 6144, %s220, [#allocation8], 64, 64, 4
        $region16: #{tpu_custom_call.1} parent=11 // pred_fallthru
          _
        // Predicated region
        $region17: #{tpu_custom_call.1} parent=11 // pred_check
          %p226 = pneg %p88
        $region18: #{tpu_custom_call.1} parent=11 // pred_check_branch
          %228 = sbr.rel (%p226) target = $region20
        $region19: #{tpu_custom_call.1} parent=11 // pred_region
          _
        $region20: #{tpu_custom_call.1} parent=11 // pred_fallthru
          _
        // Predicated region
        $region21: #{tpu_custom_call.1} parent=11 // pred_check
          %p229 = pneg %p109
        $region22: #{tpu_custom_call.1} parent=11 // pred_check_branch
          %231 = sbr.rel (%p229) target = $region24
        $region23: #{tpu_custom_call.1} parent=11 // pred_region
          _
        $region24: #{tpu_custom_call.1} parent=11 // pred_fallthru
          _
        // Predicated region
        $region25: #{tpu_custom_call.1} parent=11 // pred_check
          %p232 = pneg %p130
        $region26: #{tpu_custom_call.1} parent=11 // pred_check_branch
          %234 = sbr.rel (%p232) target = $region28
        $region27: #{tpu_custom_call.1} parent=11 // pred_region
          _
        $region28: #{tpu_custom_call.1} parent=11 // pred_fallthru
          _
        // Predicated region
        $region29: #{tpu_custom_call.1} parent=11 // pred_check
          %p235 = pneg %p151
        $region30: #{tpu_custom_call.1} parent=11 // pred_check_branch
          %237 = sbr.rel (%p235) target = $region32
        $region31: #{tpu_custom_call.1} parent=11 // pred_region
          _
        $region32: #{tpu_custom_call.1} parent=11 // pred_fallthru
          _
        // Predicated region
        $region33: #{tpu_custom_call.1} parent=11 // pred_check
          %p238 = pneg %p172
        $region34: #{tpu_custom_call.1} parent=11 // pred_check_branch
          %240 = sbr.rel (%p238) target = $region36
        $region35: #{tpu_custom_call.1} parent=11 // pred_region
          _
        $region36: #{tpu_custom_call.1} parent=11 // pred_fallthru
          _
      $region12: #{tpu_custom_call.1} parent=5 // pred_fallthru
        _
      %p241 = scmp.lt.s32.totalorder %s20, 2
      // Predicated region
      $region37: #{tpu_custom_call.1} parent=5 // pred_check
        %p242 = pneg %p241
      $region38: #{tpu_custom_call.1} parent=5 // pred_check_branch
        %244 = sbr.rel (%p242) target = $region40
      $region39: #{tpu_custom_call.1} parent=5 // pred_region
        // Predicated region
        $region41: #{tpu_custom_call.1} parent=39 // pred_check
          %p245 = pneg %p40
        $region42: #{tpu_custom_call.1} parent=39 // pred_check_branch
          %247 = sbr.rel (%p245) target = $region44
        $region43: #{tpu_custom_call.1} parent=39 // pred_region
          %s248 = sand.u32 %s30, 1
          %s249 = scalar_lea.sflag [#allocation5], %s248
          %s250 = sand.u32 %s30, 1
          %s251 = smul.addr %s250, 256
          %s252 = scalar_lea.vmem [#allocation4], %s251
          %s253 = smul.u32 32, %s20
          %s255 = ssub.s32 4096, 4096
          %256 = vsyncadd %s249, %s255
          %s257 = smul.addr %s253, 2
          %s258 = smul.addr %s257, 64
          %s259 = scalar_lea.hbm %s0, %s258
          %s260 = sshll.u32 %s252, 4
          %s261 = int_to_ptr.vmem [resolvable:$true] %s260
          %266 = dma.hbm_to_vmem [thread:$0]  %s259, 4096, %s261, %s249, 128, 128, 8
        $region44: #{tpu_custom_call.1} parent=39 // pred_fallthru
          _
      $region40: #{tpu_custom_call.1} parent=5 // pred_fallthru
        _
      %p267 = scmp.le.s32.totalorder 1, %s20
      %p268 = scmp.lt.s32.totalorder %s20, 3
      %p269 = pnand %p267, %p268
      %p270 = pneg %p269
      // Predicated region
      $region45: #{tpu_custom_call.1} parent=5 // pred_check
        _
      $region46: #{tpu_custom_call.1} parent=5 // pred_check_branch
        %272 = sbr.rel (%p269) target = $region48
      $region47: #{tpu_custom_call.1} parent=5 // pred_region
        %s273 = ssub.s32 %s20, 1
        %s274 = sand.u32 %s33, 1
        %s275 = scalar_lea.sflag [#allocation5], %s274
        %s276 = sand.u32 %s33, 1
        %s277 = smul.addr %s276, 256
        %s278 = scalar_lea.vmem [#allocation4], %s277
        // Predicated region
        $region49: #{tpu_custom_call.1} parent=47 // pred_check
          %p279 = pneg %p46
        $region50: #{tpu_custom_call.1} parent=47 // pred_check_branch
          %281 = sbr.rel (%p279) target = $region52
        $region51: #{tpu_custom_call.1} parent=47 // pred_region
          %282 = dma.done %s275, 4096
        $region52: #{tpu_custom_call.1} parent=47 // pred_fallthru
          _
        // Predicated region
        $region53: #{tpu_custom_call.1} parent=47 // pred_check
          %p283 = pneg %p67
        $region54: #{tpu_custom_call.1} parent=47 // pred_check_branch
          %285 = sbr.rel (%p283) target = $region56
        $region55: #{tpu_custom_call.1} parent=47 // pred_region
          %286 = dma.done [#allocation8], 6144
        $region56: #{tpu_custom_call.1} parent=47 // pred_fallthru
          _
        %s287 = sand.u32 %s33, 1
        %s288 = scalar_lea.sflag [#allocation5], %s287
        %s289 = sand.u32 %s33, 1
        %s290 = smul.addr %s289, 256
        %s291 = scalar_lea.vmem [#allocation4], %s290
        %p292 = pneg %p46
        %p293 = pneg %p43
        %p294 = pneg %p67
        %p295 = pneg %p64
        %p296 = pneg %p88
        %p297 = pneg %p85
        %p298 = pneg %p109
        %p299 = pneg %p106
        %p300 = pneg %p130
        %p301 = pneg %p127
        %p302 = pneg %p151
        %p303 = pneg %p148
        %p304 = pneg %p172
        %p305 = pneg %p169
        %p306 = pneg %p198
        %p307 = pneg %p195
        %s308 = sand.u32 %s185, 1
        %s309 = scalar_lea.sflag [#allocation6], %s308
        %s310 = sand.u32 %s185, 1
        %s311 = smul.addr %s310, 32
        %s312 = scalar_lea.vmem [#allocation9], %s311
        %s313 = smul.u32 32, %s25
        %s314 = smul.u32 4, %s25
        %vm316 = vcmask 1040384
        %vm317 = vsmask.f32 256
        %vm318 = vmand %vm316, %vm317
        %vm319 = vcmask 1044484
        %vm320 = vsmask.f32 4352
        %vm321 = vmand %vm319, %vm320
        %vm322 = vmor %vm321, %vm318
        %v323 = vld [vmem:[#allocation2] sm:$0x11]
        %v324 = vsel %vm322, 0, %v323
        %325 = vst [vmem:[#allocation2] sm:$0x11] %v324
        %v326 = vld [vmem:[#allocation2 + $0x10] sm:$0x11]
        %v327 = vsel %vm322, 0, %v326
        %328 = vst [vmem:[#allocation2 + $0x10] sm:$0x11] %v327
        %v329 = vld [vmem:[#allocation2 + $0x20] sm:$0x11]
        %v330 = vsel %vm322, 0, %v329
        %331 = vst [vmem:[#allocation2 + $0x20] sm:$0x11] %v330
        %v332 = vld [vmem:[#allocation2 + $0x30] sm:$0x11]
        %v333 = vsel %vm322, 0, %v332
        %334 = vst [vmem:[#allocation2 + $0x30] sm:$0x11] %v333
        %v335 = vld [vmem:[#allocation2 + $0x40] sm:$0x11]
        %v336 = vsel %vm322, 0, %v335
        %337 = vst [vmem:[#allocation2 + $0x40] sm:$0x11] %v336
        %v338 = vld [vmem:[#allocation2 + $0x50] sm:$0x11]
        %v339 = vsel %vm322, 0, %v338
        %340 = vst [vmem:[#allocation2 + $0x50] sm:$0x11] %v339
        %v341 = vld [vmem:[#allocation2 + $0x60] sm:$0x11]
        %v342 = vsel %vm322, 0, %v341
        %343 = vst [vmem:[#allocation2 + $0x60] sm:$0x11] %v342
        %v344 = vld [vmem:[#allocation2 + $0x70] sm:$0x11]
        %v345 = vsel %vm322, 0, %v344
        %346 = vst [vmem:[#allocation2 + $0x70] sm:$0x11] %v345
        %v347 = vld [vmem:[#allocation2 + $0x80] sm:$0x11]
        %v348 = vsel %vm322, 0, %v347
        %349 = vst [vmem:[#allocation2 + $0x80] sm:$0x11] %v348
        %v350 = vld [vmem:[#allocation2 + $0x90] sm:$0x11]
        %v351 = vsel %vm322, 0, %v350
        %352 = vst [vmem:[#allocation2 + $0x90] sm:$0x11] %v351
        %v353 = vld [vmem:[#allocation2 + $0xa0] sm:$0x11]
        %v354 = vsel %vm322, 0, %v353
        %355 = vst [vmem:[#allocation2 + $0xa0] sm:$0x11] %v354
        %v356 = vld [vmem:[#allocation2 + $0xb0] sm:$0x11]
        %v357 = vsel %vm322, 0, %v356
        %358 = vst [vmem:[#allocation2 + $0xb0] sm:$0x11] %v357
        %v359 = vld [vmem:[#allocation2 + $0xc0] sm:$0x11]
        %v360 = vsel %vm322, 0, %v359
        %361 = vst [vmem:[#allocation2 + $0xc0] sm:$0x11] %v360
        %v362 = vld [vmem:[#allocation2 + $0xd0] sm:$0x11]
        %v363 = vsel %vm322, 0, %v362
        %364 = vst [vmem:[#allocation2 + $0xd0] sm:$0x11] %v363
        %v365 = vld [vmem:[#allocation2 + $0xe0] sm:$0x11]
        %v366 = vsel %vm322, 0, %v365
        %367 = vst [vmem:[#allocation2 + $0xe0] sm:$0x11] %v366
        %v368 = vld [vmem:[#allocation2 + $0xf0] sm:$0x11]
        %v369 = vsel %vm322, 0, %v368
        %370 = vst [vmem:[#allocation2 + $0xf0] sm:$0x11] %v369
        %v371 = vld [vmem:[#allocation2 + $0x100] sm:$0x11]
        %v372 = vsel %vm322, 0, %v371
        %373 = vst [vmem:[#allocation2 + $0x100] sm:$0x11] %v372
        %v374 = vld [vmem:[#allocation2 + $0x110] sm:$0x11]
        %v375 = vsel %vm322, 0, %v374
        %376 = vst [vmem:[#allocation2 + $0x110] sm:$0x11] %v375
        %v377 = vld [vmem:[#allocation2 + $0x120] sm:$0x11]
        %v378 = vsel %vm322, 0, %v377
        %379 = vst [vmem:[#allocation2 + $0x120] sm:$0x11] %v378
        %v380 = vld [vmem:[#allocation2 + $0x130] sm:$0x11]
        %v381 = vsel %vm322, 0, %v380
        %382 = vst [vmem:[#allocation2 + $0x130] sm:$0x11] %v381
        %v383 = vld [vmem:[#allocation2 + $0x140] sm:$0x11]
        %v384 = vsel %vm322, 0, %v383
        %385 = vst [vmem:[#allocation2 + $0x140] sm:$0x11] %v384
        %v386 = vld [vmem:[#allocation2 + $0x150] sm:$0x11]
        %v387 = vsel %vm322, 0, %v386
        %388 = vst [vmem:[#allocation2 + $0x150] sm:$0x11] %v387
        %v389 = vld [vmem:[#allocation2 + $0x160] sm:$0x11]
        %v390 = vsel %vm322, 0, %v389
        %391 = vst [vmem:[#allocation2 + $0x160] sm:$0x11] %v390
        %v392 = vld [vmem:[#allocation2 + $0x170] sm:$0x11]
        %v393 = vsel %vm322, 0, %v392
        %394 = vst [vmem:[#allocation2 + $0x170] sm:$0x11] %v393
        %v395 = vld [vmem:[#allocation2 + $0x180] sm:$0x11]
        %v396 = vsel %vm322, 0, %v395
        %397 = vst [vmem:[#allocation2 + $0x180] sm:$0x11] %v396
        %v398 = vld [vmem:[#allocation2 + $0x190] sm:$0x11]
        %v399 = vsel %vm322, 0, %v398
        %400 = vst [vmem:[#allocation2 + $0x190] sm:$0x11] %v399
        %v401 = vld [vmem:[#allocation2 + $0x1a0] sm:$0x11]
        %v402 = vsel %vm322, 0, %v401
        %403 = vst [vmem:[#allocation2 + $0x1a0] sm:$0x11] %v402
        %v404 = vld [vmem:[#allocation2 + $0x1b0] sm:$0x11]
        %v405 = vsel %vm322, 0, %v404
        %406 = vst [vmem:[#allocation2 + $0x1b0] sm:$0x11] %v405
        %v407 = vld [vmem:[#allocation2 + $0x1c0] sm:$0x11]
        %v408 = vsel %vm322, 0, %v407
        %409 = vst [vmem:[#allocation2 + $0x1c0] sm:$0x11] %v408
        %v410 = vld [vmem:[#allocation2 + $0x1d0] sm:$0x11]
        %v411 = vsel %vm322, 0, %v410
        %412 = vst [vmem:[#allocation2 + $0x1d0] sm:$0x11] %v411
        %v413 = vld [vmem:[#allocation2 + $0x1e0] sm:$0x11]
        %v414 = vsel %vm322, 0, %v413
        %415 = vst [vmem:[#allocation2 + $0x1e0] sm:$0x11] %v414
        %v416 = vld [vmem:[#allocation2 + $0x1f0] sm:$0x11]
        %v417 = vsel %vm322, 0, %v416
        %418 = vst [vmem:[#allocation2 + $0x1f0] sm:$0x11] %v417
        %vm419 = vsmask.f32 7938
        %vm420 = vmand %vm316, %vm419
        %vm421 = vsmask.f32 7954
        %vm422 = vmand %vm319, %vm421
        %vm423 = vmor %vm422, %vm420
        %v424 = vld [vmem:[#allocation2 + $0x8] sm:$0x11]
        %v425 = vsel %vm423, 0, %v424
        %426 = vst [vmem:[#allocation2 + $0x8] sm:$0x11] %v425
        %v427 = vld [vmem:[#allocation2 + $0x18] sm:$0x11]
        %v428 = vsel %vm423, 0, %v427
        %429 = vst [vmem:[#allocation2 + $0x18] sm:$0x11] %v428
        %v430 = vld [vmem:[#allocation2 + $0x28] sm:$0x11]
        %v431 = vsel %vm423, 0, %v430
        %432 = vst [vmem:[#allocation2 + $0x28] sm:$0x11] %v431
        %v433 = vld [vmem:[#allocation2 + $0x38] sm:$0x11]
        %v434 = vsel %vm423, 0, %v433
        %435 = vst [vmem:[#allocation2 + $0x38] sm:$0x11] %v434
        %v436 = vld [vmem:[#allocation2 + $0x48] sm:$0x11]
        %v437 = vsel %vm423, 0, %v436
        %438 = vst [vmem:[#allocation2 + $0x48] sm:$0x11] %v437
        %v439 = vld [vmem:[#allocation2 + $0x58] sm:$0x11]
        %v440 = vsel %vm423, 0, %v439
        %441 = vst [vmem:[#allocation2 + $0x58] sm:$0x11] %v440
        %v442 = vld [vmem:[#allocation2 + $0x68] sm:$0x11]
        %v443 = vsel %vm423, 0, %v442
        %444 = vst [vmem:[#allocation2 + $0x68] sm:$0x11] %v443
        %v445 = vld [vmem:[#allocation2 + $0x78] sm:$0x11]
        %v446 = vsel %vm423, 0, %v445
        %447 = vst [vmem:[#allocation2 + $0x78] sm:$0x11] %v446
        %v448 = vld [vmem:[#allocation2 + $0x88] sm:$0x11]
        %v449 = vsel %vm423, 0, %v448
        %450 = vst [vmem:[#allocation2 + $0x88] sm:$0x11] %v449
        %v451 = vld [vmem:[#allocation2 + $0x98] sm:$0x11]
        %v452 = vsel %vm423, 0, %v451
        %453 = vst [vmem:[#allocation2 + $0x98] sm:$0x11] %v452
        %v454 = vld [vmem:[#allocation2 + $0xa8] sm:$0x11]
        %v455 = vsel %vm423, 0, %v454
        %456 = vst [vmem:[#allocation2 + $0xa8] sm:$0x11] %v455
        %v457 = vld [vmem:[#allocation2 + $0xb8] sm:$0x11]
        %v458 = vsel %vm423, 0, %v457
        %459 = vst [vmem:[#allocation2 + $0xb8] sm:$0x11] %v458
        %v460 = vld [vmem:[#allocation2 + $0xc8] sm:$0x11]
        %v461 = vsel %vm423, 0, %v460
        %462 = vst [vmem:[#allocation2 + $0xc8] sm:$0x11] %v461
        %v463 = vld [vmem:[#allocation2 + $0xd8] sm:$0x11]
        %v464 = vsel %vm423, 0, %v463
        %465 = vst [vmem:[#allocation2 + $0xd8] sm:$0x11] %v464
        %v466 = vld [vmem:[#allocation2 + $0xe8] sm:$0x11]
        %v467 = vsel %vm423, 0, %v466
        %468 = vst [vmem:[#allocation2 + $0xe8] sm:$0x11] %v467
        %v469 = vld [vmem:[#allocation2 + $0xf8] sm:$0x11]
        %v470 = vsel %vm423, 0, %v469
        %471 = vst [vmem:[#allocation2 + $0xf8] sm:$0x11] %v470
        %v472 = vld [vmem:[#allocation2 + $0x108] sm:$0x11]
        %v473 = vsel %vm423, 0, %v472
        %474 = vst [vmem:[#allocation2 + $0x108] sm:$0x11] %v473
        %v475 = vld [vmem:[#allocation2 + $0x118] sm:$0x11]
        %v476 = vsel %vm423, 0, %v475
        %477 = vst [vmem:[#allocation2 + $0x118] sm:$0x11] %v476
        %v478 = vld [vmem:[#allocation2 + $0x128] sm:$0x11]
        %v479 = vsel %vm423, 0, %v478
        %480 = vst [vmem:[#allocation2 + $0x128] sm:$0x11] %v479
        %v481 = vld [vmem:[#allocation2 + $0x138] sm:$0x11]
        %v482 = vsel %vm423, 0, %v481
        %483 = vst [vmem:[#allocation2 + $0x138] sm:$0x11] %v482
        %v484 = vld [vmem:[#allocation2 + $0x148] sm:$0x11]
        %v485 = vsel %vm423, 0, %v484
        %486 = vst [vmem:[#allocation2 + $0x148] sm:$0x11] %v485
        %v487 = vld [vmem:[#allocation2 + $0x158] sm:$0x11]
        %v488 = vsel %vm423, 0, %v487
        %489 = vst [vmem:[#allocation2 + $0x158] sm:$0x11] %v488
        %v490 = vld [vmem:[#allocation2 + $0x168] sm:$0x11]
        %v491 = vsel %vm423, 0, %v490
        %492 = vst [vmem:[#allocation2 + $0x168] sm:$0x11] %v491
        %v493 = vld [vmem:[#allocation2 + $0x178] sm:$0x11]
        %v494 = vsel %vm423, 0, %v493
        %495 = vst [vmem:[#allocation2 + $0x178] sm:$0x11] %v494
        %v496 = vld [vmem:[#allocation2 + $0x188] sm:$0x11]
        %v497 = vsel %vm423, 0, %v496
        %498 = vst [vmem:[#allocation2 + $0x188] sm:$0x11] %v497
        %v499 = vld [vmem:[#allocation2 + $0x198] sm:$0x11]
        %v500 = vsel %vm423, 0, %v499
        %501 = vst [vmem:[#allocation2 + $0x198] sm:$0x11] %v500
        %v502 = vld [vmem:[#allocation2 + $0x1a8] sm:$0x11]
        %v503 = vsel %vm423, 0, %v502
        %504 = vst [vmem:[#allocation2 + $0x1a8] sm:$0x11] %v503
        %v505 = vld [vmem:[#allocation2 + $0x1b8] sm:$0x11]
        %v506 = vsel %vm423, 0, %v505
        %507 = vst [vmem:[#allocation2 + $0x1b8] sm:$0x11] %v506
        %v508 = vld [vmem:[#allocation2 + $0x1c8] sm:$0x11]
        %v509 = vsel %vm423, 0, %v508
        %510 = vst [vmem:[#allocation2 + $0x1c8] sm:$0x11] %v509
        %v511 = vld [vmem:[#allocation2 + $0x1d8] sm:$0x11]
        %v512 = vsel %vm423, 0, %v511
        %513 = vst [vmem:[#allocation2 + $0x1d8] sm:$0x11] %v512
        %v514 = vld [vmem:[#allocation2 + $0x1e8] sm:$0x11]
        %v515 = vsel %vm423, 0, %v514
        %516 = vst [vmem:[#allocation2 + $0x1e8] sm:$0x11] %v515
        %v517 = vld [vmem:[#allocation2 + $0x1f8] sm:$0x11]
        %v518 = vsel %vm423, 0, %v517
        %519 = vst [vmem:[#allocation2 + $0x1f8] sm:$0x11] %v518
        %v520 = vld [vmem:[%s278] sm:$0xff]
        %v521 = vld [vmem:[%s278 + $0x8] sm:$0xff]
        %v522 = vld [vmem:[%s278 + $0x10] sm:$0xff]
        %v523 = vld [vmem:[%s278 + $0x18] sm:$0xff]
        %v524 = vld [vmem:[%s278 + $0x20] sm:$0xff]
        %v525 = vld [vmem:[%s278 + $0x28] sm:$0xff]
        %v526 = vld [vmem:[%s278 + $0x30] sm:$0xff]
        %v527 = vld [vmem:[%s278 + $0x38] sm:$0xff]
        %v528 = vld [vmem:[%s278 + $0x40] sm:$0xff]
        %v529 = vld [vmem:[%s278 + $0x48] sm:$0xff]
        %v530 = vld [vmem:[%s278 + $0x50] sm:$0xff]
        %v531 = vld [vmem:[%s278 + $0x58] sm:$0xff]
        %v532 = vld [vmem:[%s278 + $0x60] sm:$0xff]
        %v533 = vld [vmem:[%s278 + $0x68] sm:$0xff]
        %v534 = vld [vmem:[%s278 + $0x70] sm:$0xff]
        %v535 = vld [vmem:[%s278 + $0x78] sm:$0xff]
        %v536 = vld [vmem:[%s278 + $0x80] sm:$0xff]
        %v537 = vld [vmem:[%s278 + $0x88] sm:$0xff]
        %v538 = vld [vmem:[%s278 + $0x90] sm:$0xff]
        %v539 = vld [vmem:[%s278 + $0x98] sm:$0xff]
        %v540 = vld [vmem:[%s278 + $0xa0] sm:$0xff]
        %v541 = vld [vmem:[%s278 + $0xa8] sm:$0xff]
        %v542 = vld [vmem:[%s278 + $0xb0] sm:$0xff]
        %v543 = vld [vmem:[%s278 + $0xb8] sm:$0xff]
        %v544 = vld [vmem:[%s278 + $0xc0] sm:$0xff]
        %v545 = vld [vmem:[%s278 + $0xc8] sm:$0xff]
        %v546 = vld [vmem:[%s278 + $0xd0] sm:$0xff]
        %v547 = vld [vmem:[%s278 + $0xd8] sm:$0xff]
        %v548 = vld [vmem:[%s278 + $0xe0] sm:$0xff]
        %v549 = vld [vmem:[%s278 + $0xe8] sm:$0xff]
        %v550 = vld [vmem:[%s278 + $0xf0] sm:$0xff]
        %v551 = vld [vmem:[%s278 + $0xf8] sm:$0xff]
        %v553 = vshrl.u32 %v520, 16
        %v555 = vrot.slane %v553, 7
        %v556 = vshll.u32 %v520, 16
        %v558 = vor.u32 %v555, %v556
        %v559 = vrot.slane %v555, 4
        %v561 = vshrl.u32 %v521, 16
        %v563 = vrot.slane %v561, 7
        %v564 = vshll.u32 %v521, 16
        %v566 = vor.u32 %v563, %v564
        %v567 = vrot.slane %v563, 4
        %v569 = vshrl.u32 %v522, 16
        %v571 = vrot.slane %v569, 7
        %v572 = vshll.u32 %v522, 16
        %v574 = vor.u32 %v571, %v572
        %v575 = vrot.slane %v571, 4
        %v577 = vshrl.u32 %v523, 16
        %v579 = vrot.slane %v577, 7
        %v580 = vshll.u32 %v523, 16
        %v582 = vor.u32 %v579, %v580
        %v583 = vrot.slane %v579, 4
        %v585 = vshrl.u32 %v524, 16
        %v587 = vrot.slane %v585, 7
        %v588 = vshll.u32 %v524, 16
        %v590 = vor.u32 %v587, %v588
        %v591 = vrot.slane %v587, 4
        %v593 = vshrl.u32 %v525, 16
        %v595 = vrot.slane %v593, 7
        %v596 = vshll.u32 %v525, 16
        %v598 = vor.u32 %v595, %v596
        %v599 = vrot.slane %v595, 4
        %v601 = vshrl.u32 %v526, 16
        %v603 = vrot.slane %v601, 7
        %v604 = vshll.u32 %v526, 16
        %v606 = vor.u32 %v603, %v604
        %v607 = vrot.slane %v603, 4
        %v609 = vshrl.u32 %v527, 16
        %v611 = vrot.slane %v609, 7
        %v612 = vshll.u32 %v527, 16
        %v614 = vor.u32 %v611, %v612
        %v615 = vrot.slane %v611, 4
        %v617 = vshrl.u32 %v528, 16
        %v619 = vrot.slane %v617, 7
        %v620 = vshll.u32 %v528, 16
        %v622 = vor.u32 %v619, %v620
        %v623 = vrot.slane %v619, 4
        %v625 = vshrl.u32 %v529, 16
        %v627 = vrot.slane %v625, 7
        %v628 = vshll.u32 %v529, 16
        %v630 = vor.u32 %v627, %v628
        %v631 = vrot.slane %v627, 4
        %v633 = vshrl.u32 %v530, 16
        %v635 = vrot.slane %v633, 7
        %v636 = vshll.u32 %v530, 16
        %v638 = vor.u32 %v635, %v636
        %v639 = vrot.slane %v635, 4
        %v641 = vshrl.u32 %v531, 16
        %v643 = vrot.slane %v641, 7
        %v644 = vshll.u32 %v531, 16
        %v646 = vor.u32 %v643, %v644
        %v647 = vrot.slane %v643, 4
        %v649 = vshrl.u32 %v532, 16
        %v651 = vrot.slane %v649, 7
        %v652 = vshll.u32 %v532, 16
        %v654 = vor.u32 %v651, %v652
        %v655 = vrot.slane %v651, 4
        %v657 = vshrl.u32 %v533, 16
        %v659 = vrot.slane %v657, 7
        %v660 = vshll.u32 %v533, 16
        %v662 = vor.u32 %v659, %v660
        %v663 = vrot.slane %v659, 4
        %v665 = vshrl.u32 %v534, 16
        %v667 = vrot.slane %v665, 7
        %v668 = vshll.u32 %v534, 16
        %v670 = vor.u32 %v667, %v668
        %v671 = vrot.slane %v667, 4
        %v673 = vshrl.u32 %v535, 16
        %v675 = vrot.slane %v673, 7
        %v676 = vshll.u32 %v535, 16
        %v678 = vor.u32 %v675, %v676
        %v679 = vrot.slane %v675, 4
        %v681 = vshrl.u32 %v536, 16
        %v683 = vrot.slane %v681, 7
        %v684 = vshll.u32 %v536, 16
        %v686 = vor.u32 %v683, %v684
        %v687 = vrot.slane %v683, 4
        %v689 = vshrl.u32 %v537, 16
        %v691 = vrot.slane %v689, 7
        %v692 = vshll.u32 %v537, 16
        %v694 = vor.u32 %v691, %v692
        %v695 = vrot.slane %v691, 4
        %v697 = vshrl.u32 %v538, 16
        %v699 = vrot.slane %v697, 7
        %v700 = vshll.u32 %v538, 16
        %v702 = vor.u32 %v699, %v700
        %v703 = vrot.slane %v699, 4
        %v705 = vshrl.u32 %v539, 16
        %v707 = vrot.slane %v705, 7
        %v708 = vshll.u32 %v539, 16
        %v710 = vor.u32 %v707, %v708
        %v711 = vrot.slane %v707, 4
        %v713 = vshrl.u32 %v540, 16
        %v715 = vrot.slane %v713, 7
        %v716 = vshll.u32 %v540, 16
        %v718 = vor.u32 %v715, %v716
        %v719 = vrot.slane %v715, 4
        %v721 = vshrl.u32 %v541, 16
        %v723 = vrot.slane %v721, 7
        %v724 = vshll.u32 %v541, 16
        %v726 = vor.u32 %v723, %v724
        %v727 = vrot.slane %v723, 4
        %v729 = vshrl.u32 %v542, 16
        %v731 = vrot.slane %v729, 7
        %v732 = vshll.u32 %v542, 16
        %v734 = vor.u32 %v731, %v732
        %v735 = vrot.slane %v731, 4
        %v737 = vshrl.u32 %v543, 16
        %v739 = vrot.slane %v737, 7
        %v740 = vshll.u32 %v543, 16
        %v742 = vor.u32 %v739, %v740
        %v743 = vrot.slane %v739, 4
        %v745 = vshrl.u32 %v544, 16
        %v747 = vrot.slane %v745, 7
        %v748 = vshll.u32 %v544, 16
        %v750 = vor.u32 %v747, %v748
        %v751 = vrot.slane %v747, 4
        %v753 = vshrl.u32 %v545, 16
        %v755 = vrot.slane %v753, 7
        %v756 = vshll.u32 %v545, 16
        %v758 = vor.u32 %v755, %v756
        %v759 = vrot.slane %v755, 4
        %v761 = vshrl.u32 %v546, 16
        %v763 = vrot.slane %v761, 7
        %v764 = vshll.u32 %v546, 16
        %v766 = vor.u32 %v763, %v764
        %v767 = vrot.slane %v763, 4
        %v769 = vshrl.u32 %v547, 16
        %v771 = vrot.slane %v769, 7
        %v772 = vshll.u32 %v547, 16
        %v774 = vor.u32 %v771, %v772
        %v775 = vrot.slane %v771, 4
        %v777 = vshrl.u32 %v548, 16
        %v779 = vrot.slane %v777, 7
        %v780 = vshll.u32 %v548, 16
        %v782 = vor.u32 %v779, %v780
        %v783 = vrot.slane %v779, 4
        %v785 = vshrl.u32 %v549, 16
        %v787 = vrot.slane %v785, 7
        %v788 = vshll.u32 %v549, 16
        %v790 = vor.u32 %v787, %v788
        %v791 = vrot.slane %v787, 4
        %v793 = vshrl.u32 %v550, 16
        %v795 = vrot.slane %v793, 7
        %v796 = vshll.u32 %v550, 16
        %v798 = vor.u32 %v795, %v796
        %v799 = vrot.slane %v795, 4
        %v801 = vshrl.u32 %v551, 16
        %v803 = vrot.slane %v801, 7
        %v804 = vshll.u32 %v551, 16
        %v806 = vor.u32 %v803, %v804
        %v807 = vrot.slane %v803, 4
        %vm872 = vcmask 1043456
        %vm873 = vmand %vm872, %vm419
        %vm874 = vcmask 1047556
        %vm875 = vmand %vm874, %vm421
        %vm876 = vmor %vm875, %vm873
        %v877 = vld [vmem:[#allocation2] sm:$0xff]
        %v878 = vsel %vm876, %v558, %v877
        %879 = vst [vmem:[#allocation2] sm:$0xff] %v878
        %v880 = vld [vmem:[#allocation2 + $0x8] sm:$0x11]
        %v881 = vsel %vm322, %v559, %v880
        %882 = vst [vmem:[#allocation2 + $0x8] sm:$0x11] %v881
        %v883 = vld [vmem:[#allocation2 + $0x10] sm:$0xff]
        %v884 = vsel %vm876, %v566, %v883
        %885 = vst [vmem:[#allocation2 + $0x10] sm:$0xff] %v884
        %v886 = vld [vmem:[#allocation2 + $0x18] sm:$0x11]
        %v887 = vsel %vm322, %v567, %v886
        %888 = vst [vmem:[#allocation2 + $0x18] sm:$0x11] %v887
        %v889 = vld [vmem:[#allocation2 + $0x20] sm:$0xff]
        %v890 = vsel %vm876, %v574, %v889
        %891 = vst [vmem:[#allocation2 + $0x20] sm:$0xff] %v890
        %v892 = vld [vmem:[#allocation2 + $0x28] sm:$0x11]
        %v893 = vsel %vm322, %v575, %v892
        %894 = vst [vmem:[#allocation2 + $0x28] sm:$0x11] %v893
        %v895 = vld [vmem:[#allocation2 + $0x30] sm:$0xff]
        %v896 = vsel %vm876, %v582, %v895
        %897 = vst [vmem:[#allocation2 + $0x30] sm:$0xff] %v896
        %v898 = vld [vmem:[#allocation2 + $0x38] sm:$0x11]
        %v899 = vsel %vm322, %v583, %v898
        %900 = vst [vmem:[#allocation2 + $0x38] sm:$0x11] %v899
        %v901 = vld [vmem:[#allocation2 + $0x40] sm:$0xff]
        %v902 = vsel %vm876, %v590, %v901
        %903 = vst [vmem:[#allocation2 + $0x40] sm:$0xff] %v902
        %v904 = vld [vmem:[#allocation2 + $0x48] sm:$0x11]
        %v905 = vsel %vm322, %v591, %v904
        %906 = vst [vmem:[#allocation2 + $0x48] sm:$0x11] %v905
        %v907 = vld [vmem:[#allocation2 + $0x50] sm:$0xff]
        %v908 = vsel %vm876, %v598, %v907
        %909 = vst [vmem:[#allocation2 + $0x50] sm:$0xff] %v908
        %v910 = vld [vmem:[#allocation2 + $0x58] sm:$0x11]
        %v911 = vsel %vm322, %v599, %v910
        %912 = vst [vmem:[#allocation2 + $0x58] sm:$0x11] %v911
        %v913 = vld [vmem:[#allocation2 + $0x60] sm:$0xff]
        %v914 = vsel %vm876, %v606, %v913
        %915 = vst [vmem:[#allocation2 + $0x60] sm:$0xff] %v914
        %v916 = vld [vmem:[#allocation2 + $0x68] sm:$0x11]
        %v917 = vsel %vm322, %v607, %v916
        %918 = vst [vmem:[#allocation2 + $0x68] sm:$0x11] %v917
        %v919 = vld [vmem:[#allocation2 + $0x70] sm:$0xff]
        %v920 = vsel %vm876, %v614, %v919
        %921 = vst [vmem:[#allocation2 + $0x70] sm:$0xff] %v920
        %v922 = vld [vmem:[#allocation2 + $0x78] sm:$0x11]
        %v923 = vsel %vm322, %v615, %v922
        %924 = vst [vmem:[#allocation2 + $0x78] sm:$0x11] %v923
        %v925 = vld [vmem:[#allocation2 + $0x80] sm:$0xff]
        %v926 = vsel %vm876, %v622, %v925
        %927 = vst [vmem:[#allocation2 + $0x80] sm:$0xff] %v926
        %v928 = vld [vmem:[#allocation2 + $0x88] sm:$0x11]
        %v929 = vsel %vm322, %v623, %v928
        %930 = vst [vmem:[#allocation2 + $0x88] sm:$0x11] %v929
        %v931 = vld [vmem:[#allocation2 + $0x90] sm:$0xff]
        %v932 = vsel %vm876, %v630, %v931
        %933 = vst [vmem:[#allocation2 + $0x90] sm:$0xff] %v932
        %v934 = vld [vmem:[#allocation2 + $0x98] sm:$0x11]
        %v935 = vsel %vm322, %v631, %v934
        %936 = vst [vmem:[#allocation2 + $0x98] sm:$0x11] %v935
        %v937 = vld [vmem:[#allocation2 + $0xa0] sm:$0xff]
        %v938 = vsel %vm876, %v638, %v937
        %939 = vst [vmem:[#allocation2 + $0xa0] sm:$0xff] %v938
        %v940 = vld [vmem:[#allocation2 + $0xa8] sm:$0x11]
        %v941 = vsel %vm322, %v639, %v940
        %942 = vst [vmem:[#allocation2 + $0xa8] sm:$0x11] %v941
        %v943 = vld [vmem:[#allocation2 + $0xb0] sm:$0xff]
        %v944 = vsel %vm876, %v646, %v943
        %945 = vst [vmem:[#allocation2 + $0xb0] sm:$0xff] %v944
        %v946 = vld [vmem:[#allocation2 + $0xb8] sm:$0x11]
        %v947 = vsel %vm322, %v647, %v946
        %948 = vst [vmem:[#allocation2 + $0xb8] sm:$0x11] %v947
        %v949 = vld [vmem:[#allocation2 + $0xc0] sm:$0xff]
        %v950 = vsel %vm876, %v654, %v949
        %951 = vst [vmem:[#allocation2 + $0xc0] sm:$0xff] %v950
        %v952 = vld [vmem:[#allocation2 + $0xc8] sm:$0x11]
        %v953 = vsel %vm322, %v655, %v952
        %954 = vst [vmem:[#allocation2 + $0xc8] sm:$0x11] %v953
        %v955 = vld [vmem:[#allocation2 + $0xd0] sm:$0xff]
        %v956 = vsel %vm876, %v662, %v955
        %957 = vst [vmem:[#allocation2 + $0xd0] sm:$0xff] %v956
        %v958 = vld [vmem:[#allocation2 + $0xd8] sm:$0x11]
        %v959 = vsel %vm322, %v663, %v958
        %960 = vst [vmem:[#allocation2 + $0xd8] sm:$0x11] %v959
        %v961 = vld [vmem:[#allocation2 + $0xe0] sm:$0xff]
        %v962 = vsel %vm876, %v670, %v961
        %963 = vst [vmem:[#allocation2 + $0xe0] sm:$0xff] %v962
        %v964 = vld [vmem:[#allocation2 + $0xe8] sm:$0x11]
        %v965 = vsel %vm322, %v671, %v964
        %966 = vst [vmem:[#allocation2 + $0xe8] sm:$0x11] %v965
        %v967 = vld [vmem:[#allocation2 + $0xf0] sm:$0xff]
        %v968 = vsel %vm876, %v678, %v967
        %969 = vst [vmem:[#allocation2 + $0xf0] sm:$0xff] %v968
        %v970 = vld [vmem:[#allocation2 + $0xf8] sm:$0x11]
        %v971 = vsel %vm322, %v679, %v970
        %972 = vst [vmem:[#allocation2 + $0xf8] sm:$0x11] %v971
        %v973 = vld [vmem:[#allocation2 + $0x100] sm:$0xff]
        %v974 = vsel %vm876, %v686, %v973
        %975 = vst [vmem:[#allocation2 + $0x100] sm:$0xff] %v974
        %v976 = vld [vmem:[#allocation2 + $0x108] sm:$0x11]
        %v977 = vsel %vm322, %v687, %v976
        %978 = vst [vmem:[#allocation2 + $0x108] sm:$0x11] %v977
        %v979 = vld [vmem:[#allocation2 + $0x110] sm:$0xff]
        %v980 = vsel %vm876, %v694, %v979
        %981 = vst [vmem:[#allocation2 + $0x110] sm:$0xff] %v980
        %v982 = vld [vmem:[#allocation2 + $0x118] sm:$0x11]
        %v983 = vsel %vm322, %v695, %v982
        %984 = vst [vmem:[#allocation2 + $0x118] sm:$0x11] %v983
        %v985 = vld [vmem:[#allocation2 + $0x120] sm:$0xff]
        %v986 = vsel %vm876, %v702, %v985
        %987 = vst [vmem:[#allocation2 + $0x120] sm:$0xff] %v986
        %v988 = vld [vmem:[#allocation2 + $0x128] sm:$0x11]
        %v989 = vsel %vm322, %v703, %v988
        %990 = vst [vmem:[#allocation2 + $0x128] sm:$0x11] %v989
        %v991 = vld [vmem:[#allocation2 + $0x130] sm:$0xff]
        %v992 = vsel %vm876, %v710, %v991
        %993 = vst [vmem:[#allocation2 + $0x130] sm:$0xff] %v992
        %v994 = vld [vmem:[#allocation2 + $0x138] sm:$0x11]
        %v995 = vsel %vm322, %v711, %v994
        %996 = vst [vmem:[#allocation2 + $0x138] sm:$0x11] %v995
        %v997 = vld [vmem:[#allocation2 + $0x140] sm:$0xff]
        %v998 = vsel %vm876, %v718, %v997
        %999 = vst [vmem:[#allocation2 + $0x140] sm:$0xff] %v998
        %v1000 = vld [vmem:[#allocation2 + $0x148] sm:$0x11]
        %v1001 = vsel %vm322, %v719, %v1000
        %1002 = vst [vmem:[#allocation2 + $0x148] sm:$0x11] %v1001
        %v1003 = vld [vmem:[#allocation2 + $0x150] sm:$0xff]
        %v1004 = vsel %vm876, %v726, %v1003
        %1005 = vst [vmem:[#allocation2 + $0x150] sm:$0xff] %v1004
        %v1006 = vld [vmem:[#allocation2 + $0x158] sm:$0x11]
        %v1007 = vsel %vm322, %v727, %v1006
        %1008 = vst [vmem:[#allocation2 + $0x158] sm:$0x11] %v1007
        %v1009 = vld [vmem:[#allocation2 + $0x160] sm:$0xff]
        %v1010 = vsel %vm876, %v734, %v1009
        %1011 = vst [vmem:[#allocation2 + $0x160] sm:$0xff] %v1010
        %v1012 = vld [vmem:[#allocation2 + $0x168] sm:$0x11]
        %v1013 = vsel %vm322, %v735, %v1012
        %1014 = vst [vmem:[#allocation2 + $0x168] sm:$0x11] %v1013
        %v1015 = vld [vmem:[#allocation2 + $0x170] sm:$0xff]
        %v1016 = vsel %vm876, %v742, %v1015
        %1017 = vst [vmem:[#allocation2 + $0x170] sm:$0xff] %v1016
        %v1018 = vld [vmem:[#allocation2 + $0x178] sm:$0x11]
        %v1019 = vsel %vm322, %v743, %v1018
        %1020 = vst [vmem:[#allocation2 + $0x178] sm:$0x11] %v1019
        %v1021 = vld [vmem:[#allocation2 + $0x180] sm:$0xff]
        %v1022 = vsel %vm876, %v750, %v1021
        %1023 = vst [vmem:[#allocation2 + $0x180] sm:$0xff] %v1022
        %v1024 = vld [vmem:[#allocation2 + $0x188] sm:$0x11]
        %v1025 = vsel %vm322, %v751, %v1024
        %1026 = vst [vmem:[#allocation2 + $0x188] sm:$0x11] %v1025
        %v1027 = vld [vmem:[#allocation2 + $0x190] sm:$0xff]
        %v1028 = vsel %vm876, %v758, %v1027
        %1029 = vst [vmem:[#allocation2 + $0x190] sm:$0xff] %v1028
        %v1030 = vld [vmem:[#allocation2 + $0x198] sm:$0x11]
        %v1031 = vsel %vm322, %v759, %v1030
        %1032 = vst [vmem:[#allocation2 + $0x198] sm:$0x11] %v1031
        %v1033 = vld [vmem:[#allocation2 + $0x1a0] sm:$0xff]
        %v1034 = vsel %vm876, %v766, %v1033
        %1035 = vst [vmem:[#allocation2 + $0x1a0] sm:$0xff] %v1034
        %v1036 = vld [vmem:[#allocation2 + $0x1a8] sm:$0x11]
        %v1037 = vsel %vm322, %v767, %v1036
        %1038 = vst [vmem:[#allocation2 + $0x1a8] sm:$0x11] %v1037
        %v1039 = vld [vmem:[#allocation2 + $0x1b0] sm:$0xff]
        %v1040 = vsel %vm876, %v774, %v1039
        %1041 = vst [vmem:[#allocation2 + $0x1b0] sm:$0xff] %v1040
        %v1042 = vld [vmem:[#allocation2 + $0x1b8] sm:$0x11]
        %v1043 = vsel %vm322, %v775, %v1042
        %1044 = vst [vmem:[#allocation2 + $0x1b8] sm:$0x11] %v1043
        %v1045 = vld [vmem:[#allocation2 + $0x1c0] sm:$0xff]
        %v1046 = vsel %vm876, %v782, %v1045
        %1047 = vst [vmem:[#allocation2 + $0x1c0] sm:$0xff] %v1046
        %v1048 = vld [vmem:[#allocation2 + $0x1c8] sm:$0x11]
        %v1049 = vsel %vm322, %v783, %v1048
        %1050 = vst [vmem:[#allocation2 + $0x1c8] sm:$0x11] %v1049
        %v1051 = vld [vmem:[#allocation2 + $0x1d0] sm:$0xff]
        %v1052 = vsel %vm876, %v790, %v1051
        %1053 = vst [vmem:[#allocation2 + $0x1d0] sm:$0xff] %v1052
        %v1054 = vld [vmem:[#allocation2 + $0x1d8] sm:$0x11]
        %v1055 = vsel %vm322, %v791, %v1054
        %1056 = vst [vmem:[#allocation2 + $0x1d8] sm:$0x11] %v1055
        %v1057 = vld [vmem:[#allocation2 + $0x1e0] sm:$0xff]
        %v1058 = vsel %vm876, %v798, %v1057
        %1059 = vst [vmem:[#allocation2 + $0x1e0] sm:$0xff] %v1058
        %v1060 = vld [vmem:[#allocation2 + $0x1e8] sm:$0x11]
        %v1061 = vsel %vm322, %v799, %v1060
        %1062 = vst [vmem:[#allocation2 + $0x1e8] sm:$0x11] %v1061
        %v1063 = vld [vmem:[#allocation2 + $0x1f0] sm:$0xff]
        %v1064 = vsel %vm876, %v806, %v1063
        %1065 = vst [vmem:[#allocation2 + $0x1f0] sm:$0xff] %v1064
        %v1066 = vld [vmem:[#allocation2 + $0x1f8] sm:$0x11]
        %v1067 = vsel %vm322, %v807, %v1066
        %1068 = vst [vmem:[#allocation2 + $0x1f8] sm:$0x11] %v1067
        %v1069 = vld [vmem:[#allocation2] sm:$0xff]
        %v1070 = vld [vmem:[#allocation2 + $0x10] sm:$0xff]
        %v1071 = vld [vmem:[#allocation2 + $0x20] sm:$0xff]
        %v1072 = vld [vmem:[#allocation2 + $0x30] sm:$0xff]
        %v1073 = vld [vmem:[#allocation2 + $0x40] sm:$0xff]
        %v1074 = vld [vmem:[#allocation2 + $0x50] sm:$0xff]
        %v1075 = vld [vmem:[#allocation2 + $0x60] sm:$0xff]
        %v1076 = vld [vmem:[#allocation2 + $0x70] sm:$0xff]
        %v1077 = vld [vmem:[#allocation2 + $0x80] sm:$0xff]
        %v1078 = vld [vmem:[#allocation2 + $0x90] sm:$0xff]
        %v1079 = vld [vmem:[#allocation2 + $0xa0] sm:$0xff]
        %v1080 = vld [vmem:[#allocation2 + $0xb0] sm:$0xff]
        %v1081 = vld [vmem:[#allocation2 + $0xc0] sm:$0xff]
        %v1082 = vld [vmem:[#allocation2 + $0xd0] sm:$0xff]
        %v1083 = vld [vmem:[#allocation2 + $0xe0] sm:$0xff]
        %v1084 = vld [vmem:[#allocation2 + $0xf0] sm:$0xff]
        %v1085 = vld [vmem:[#allocation2 + $0x100] sm:$0xff]
        %v1086 = vld [vmem:[#allocation2 + $0x110] sm:$0xff]
        %v1087 = vld [vmem:[#allocation2 + $0x120] sm:$0xff]
        %v1088 = vld [vmem:[#allocation2 + $0x130] sm:$0xff]
        %v1089 = vld [vmem:[#allocation2 + $0x140] sm:$0xff]
        %v1090 = vld [vmem:[#allocation2 + $0x150] sm:$0xff]
        %v1091 = vld [vmem:[#allocation2 + $0x160] sm:$0xff]
        %v1092 = vld [vmem:[#allocation2 + $0x170] sm:$0xff]
        %v1093 = vld [vmem:[#allocation2 + $0x180] sm:$0xff]
        %v1094 = vld [vmem:[#allocation2 + $0x190] sm:$0xff]
        %v1095 = vld [vmem:[#allocation2 + $0x1a0] sm:$0xff]
        %v1096 = vld [vmem:[#allocation2 + $0x1b0] sm:$0xff]
        %v1097 = vld [vmem:[#allocation2 + $0x1c0] sm:$0xff]
        %v1098 = vld [vmem:[#allocation2 + $0x1d0] sm:$0xff]
        %v1099 = vld [vmem:[#allocation2 + $0x1e0] sm:$0xff]
        %v1100 = vld [vmem:[#allocation2 + $0x1f0] sm:$0xff]
        %v1101 = vld [vmem:[#allocation7] sm:$0xf]
        %v1102 = vld [vmem:[#allocation7 + $0x4] sm:$0xf]
        %v1103 = vld [vmem:[#allocation7 + $0x8] sm:$0xf]
        %v1104 = vld [vmem:[#allocation7 + $0xc] sm:$0xf]
        %v1105 = vld [vmem:[#allocation7 + $0x10] sm:$0xf]
        %v1106 = vld [vmem:[#allocation7 + $0x14] sm:$0xf]
        %v1107 = vld [vmem:[#allocation7 + $0x18] sm:$0xf]
        %v1108 = vld [vmem:[#allocation7 + $0x1c] sm:$0xf]
        %v1109 = vld [vmem:[#allocation7 + $0x20] sm:$0xf]
        %v1110 = vld [vmem:[#allocation7 + $0x24] sm:$0xf]
        %v1111 = vld [vmem:[#allocation7 + $0x28] sm:$0xf]
        %v1112 = vld [vmem:[#allocation7 + $0x2c] sm:$0xf]
        %v1113 = vld [vmem:[#allocation7 + $0x30] sm:$0xf]
        %v1114 = vld [vmem:[#allocation7 + $0x34] sm:$0xf]
        %v1115 = vld [vmem:[#allocation7 + $0x38] sm:$0xf]
        %v1116 = vld [vmem:[#allocation7 + $0x3c] sm:$0xf]
        %v1117 = vld [vmem:[#allocation7 + $0x40] sm:$0xf]
        %v1118 = vld [vmem:[#allocation7 + $0x44] sm:$0xf]
        %v1119 = vld [vmem:[#allocation7 + $0x48] sm:$0xf]
        %v1120 = vld [vmem:[#allocation7 + $0x4c] sm:$0xf]
        %v1121 = vld [vmem:[#allocation7 + $0x50] sm:$0xf]
        %v1122 = vld [vmem:[#allocation7 + $0x54] sm:$0xf]
        %v1123 = vld [vmem:[#allocation7 + $0x58] sm:$0xf]
        %v1124 = vld [vmem:[#allocation7 + $0x5c] sm:$0xf]
        %v1125 = vld [vmem:[#allocation7 + $0x60] sm:$0xf]
        %v1126 = vld [vmem:[#allocation7 + $0x64] sm:$0xf]
        %v1127 = vld [vmem:[#allocation7 + $0x68] sm:$0xf]
        %v1128 = vld [vmem:[#allocation7 + $0x6c] sm:$0xf]
        %v1129 = vld [vmem:[#allocation7 + $0x70] sm:$0xf]
        %v1130 = vld [vmem:[#allocation7 + $0x74] sm:$0xf]
        %v1131 = vld [vmem:[#allocation7 + $0x78] sm:$0xf]
        %v1132 = vld [vmem:[#allocation7 + $0x7c] sm:$0xf]
        %v1133 = vld [vmem:[#allocation2 + $0x8] sm:$0x11]
        %v1134 = vld [vmem:[#allocation2 + $0x18] sm:$0x11]
        %v1135 = vld [vmem:[#allocation2 + $0x28] sm:$0x11]
        %v1136 = vld [vmem:[#allocation2 + $0x38] sm:$0x11]
        %v1137 = vld [vmem:[#allocation2 + $0x48] sm:$0x11]
        %v1138 = vld [vmem:[#allocation2 + $0x58] sm:$0x11]
        %v1139 = vld [vmem:[#allocation2 + $0x68] sm:$0x11]
        %v1140 = vld [vmem:[#allocation2 + $0x78] sm:$0x11]
        %v1141 = vld [vmem:[#allocation2 + $0x88] sm:$0x11]
        %v1142 = vld [vmem:[#allocation2 + $0x98] sm:$0x11]
        %v1143 = vld [vmem:[#allocation2 + $0xa8] sm:$0x11]
        %v1144 = vld [vmem:[#allocation2 + $0xb8] sm:$0x11]
        %v1145 = vld [vmem:[#allocation2 + $0xc8] sm:$0x11]
        %v1146 = vld [vmem:[#allocation2 + $0xd8] sm:$0x11]
        %v1147 = vld [vmem:[#allocation2 + $0xe8] sm:$0x11]
        %v1148 = vld [vmem:[#allocation2 + $0xf8] sm:$0x11]
        %v1149 = vld [vmem:[#allocation2 + $0x108] sm:$0x11]
        %v1150 = vld [vmem:[#allocation2 + $0x118] sm:$0x11]
        %v1151 = vld [vmem:[#allocation2 + $0x128] sm:$0x11]
        %v1152 = vld [vmem:[#allocation2 + $0x138] sm:$0x11]
        %v1153 = vld [vmem:[#allocation2 + $0x148] sm:$0x11]
        %v1154 = vld [vmem:[#allocation2 + $0x158] sm:$0x11]
        %v1155 = vld [vmem:[#allocation2 + $0x168] sm:$0x11]
        %v1156 = vld [vmem:[#allocation2 + $0x178] sm:$0x11]
        %v1157 = vld [vmem:[#allocation2 + $0x188] sm:$0x11]
        %v1158 = vld [vmem:[#allocation2 + $0x198] sm:$0x11]
        %v1159 = vld [vmem:[#allocation2 + $0x1a8] sm:$0x11]
        %v1160 = vld [vmem:[#allocation2 + $0x1b8] sm:$0x11]
        %v1161 = vld [vmem:[#allocation2 + $0x1c8] sm:$0x11]
        %v1162 = vld [vmem:[#allocation2 + $0x1d8] sm:$0x11]
        %v1163 = vld [vmem:[#allocation2 + $0x1e8] sm:$0x11]
        %v1164 = vld [vmem:[#allocation2 + $0x1f8] sm:$0x11]
        %vm1165 = vsmask.f32 3328
        %vm1166 = vsmask.f32 7440
        %vm1167 = vmor %vm1165, %vm1166
        %v1169 = vshrl.u32 %v1069, 16
        %v1171 = vrot.slane %v1169, 4
        %v1172 = vshll.u32 %v1069, 16
        %v1174 = vrot.slane %v1172, 5
        %v1175 = vor.u32 %v1171, %v1174
        %v1176 = vrot.slane %v1175, 4
        %v1178 = vshll.u32 %v1133, 16
        %v1180 = vrot.slane %v1178, 5
        %v1181 = vsel %vm1167, %v1176, %v1180
        %v1183 = vshrl.u32 %v1070, 16
        %v1185 = vrot.slane %v1183, 4
        %v1186 = vshll.u32 %v1070, 16
        %v1188 = vrot.slane %v1186, 5
        %v1189 = vor.u32 %v1185, %v1188
        %v1190 = vrot.slane %v1189, 4
        %v1192 = vshll.u32 %v1134, 16
        %v1194 = vrot.slane %v1192, 5
        %v1195 = vsel %vm1167, %v1190, %v1194
        %v1197 = vshrl.u32 %v1071, 16
        %v1199 = vrot.slane %v1197, 4
        %v1200 = vshll.u32 %v1071, 16
        %v1202 = vrot.slane %v1200, 5
        %v1203 = vor.u32 %v1199, %v1202
        %v1204 = vrot.slane %v1203, 4
        %v1206 = vshll.u32 %v1135, 16
        %v1208 = vrot.slane %v1206, 5
        %v1209 = vsel %vm1167, %v1204, %v1208
        %v1211 = vshrl.u32 %v1072, 16
        %v1213 = vrot.slane %v1211, 4
        %v1214 = vshll.u32 %v1072, 16
        %v1216 = vrot.slane %v1214, 5
        %v1217 = vor.u32 %v1213, %v1216
        %v1218 = vrot.slane %v1217, 4
        %v1220 = vshll.u32 %v1136, 16
        %v1222 = vrot.slane %v1220, 5
        %v1223 = vsel %vm1167, %v1218, %v1222
        %v1225 = vshrl.u32 %v1073, 16
        %v1227 = vrot.slane %v1225, 4
        %v1228 = vshll.u32 %v1073, 16
        %v1230 = vrot.slane %v1228, 5
        %v1231 = vor.u32 %v1227, %v1230
        %v1232 = vrot.slane %v1231, 4
        %v1234 = vshll.u32 %v1137, 16
        %v1236 = vrot.slane %v1234, 5
        %v1237 = vsel %vm1167, %v1232, %v1236
        %v1239 = vshrl.u32 %v1074, 16
        %v1241 = vrot.slane %v1239, 4
        %v1242 = vshll.u32 %v1074, 16
        %v1244 = vrot.slane %v1242, 5
        %v1245 = vor.u32 %v1241, %v1244
        %v1246 = vrot.slane %v1245, 4
        %v1248 = vshll.u32 %v1138, 16
        %v1250 = vrot.slane %v1248, 5
        %v1251 = vsel %vm1167, %v1246, %v1250
        %v1253 = vshrl.u32 %v1075, 16
        %v1255 = vrot.slane %v1253, 4
        %v1256 = vshll.u32 %v1075, 16
        %v1258 = vrot.slane %v1256, 5
        %v1259 = vor.u32 %v1255, %v1258
        %v1260 = vrot.slane %v1259, 4
        %v1262 = vshll.u32 %v1139, 16
        %v1264 = vrot.slane %v1262, 5
        %v1265 = vsel %vm1167, %v1260, %v1264
        %v1267 = vshrl.u32 %v1076, 16
        %v1269 = vrot.slane %v1267, 4
        %v1270 = vshll.u32 %v1076, 16
        %v1272 = vrot.slane %v1270, 5
        %v1273 = vor.u32 %v1269, %v1272
        %v1274 = vrot.slane %v1273, 4
        %v1276 = vshll.u32 %v1140, 16
        %v1278 = vrot.slane %v1276, 5
        %v1279 = vsel %vm1167, %v1274, %v1278
        %v1281 = vshrl.u32 %v1077, 16
        %v1283 = vrot.slane %v1281, 4
        %v1284 = vshll.u32 %v1077, 16
        %v1286 = vrot.slane %v1284, 5
        %v1287 = vor.u32 %v1283, %v1286
        %v1288 = vrot.slane %v1287, 4
        %v1290 = vshll.u32 %v1141, 16
        %v1292 = vrot.slane %v1290, 5
        %v1293 = vsel %vm1167, %v1288, %v1292
        %v1295 = vshrl.u32 %v1078, 16
        %v1297 = vrot.slane %v1295, 4
        %v1298 = vshll.u32 %v1078, 16
        %v1300 = vrot.slane %v1298, 5
        %v1301 = vor.u32 %v1297, %v1300
        %v1302 = vrot.slane %v1301, 4
        %v1304 = vshll.u32 %v1142, 16
        %v1306 = vrot.slane %v1304, 5
        %v1307 = vsel %vm1167, %v1302, %v1306
        %v1309 = vshrl.u32 %v1079, 16
        %v1311 = vrot.slane %v1309, 4
        %v1312 = vshll.u32 %v1079, 16
        %v1314 = vrot.slane %v1312, 5
        %v1315 = vor.u32 %v1311, %v1314
        %v1316 = vrot.slane %v1315, 4
        %v1318 = vshll.u32 %v1143, 16
        %v1320 = vrot.slane %v1318, 5
        %v1321 = vsel %vm1167, %v1316, %v1320
        %v1323 = vshrl.u32 %v1080, 16
        %v1325 = vrot.slane %v1323, 4
        %v1326 = vshll.u32 %v1080, 16
        %v1328 = vrot.slane %v1326, 5
        %v1329 = vor.u32 %v1325, %v1328
        %v1330 = vrot.slane %v1329, 4
        %v1332 = vshll.u32 %v1144, 16
        %v1334 = vrot.slane %v1332, 5
        %v1335 = vsel %vm1167, %v1330, %v1334
        %v1337 = vshrl.u32 %v1081, 16
        %v1339 = vrot.slane %v1337, 4
        %v1340 = vshll.u32 %v1081, 16
        %v1342 = vrot.slane %v1340, 5
        %v1343 = vor.u32 %v1339, %v1342
        %v1344 = vrot.slane %v1343, 4
        %v1346 = vshll.u32 %v1145, 16
        %v1348 = vrot.slane %v1346, 5
        %v1349 = vsel %vm1167, %v1344, %v1348
        %v1351 = vshrl.u32 %v1082, 16
        %v1353 = vrot.slane %v1351, 4
        %v1354 = vshll.u32 %v1082, 16
        %v1356 = vrot.slane %v1354, 5
        %v1357 = vor.u32 %v1353, %v1356
        %v1358 = vrot.slane %v1357, 4
        %v1360 = vshll.u32 %v1146, 16
        %v1362 = vrot.slane %v1360, 5
        %v1363 = vsel %vm1167, %v1358, %v1362
        %v1365 = vshrl.u32 %v1083, 16
        %v1367 = vrot.slane %v1365, 4
        %v1368 = vshll.u32 %v1083, 16
        %v1370 = vrot.slane %v1368, 5
        %v1371 = vor.u32 %v1367, %v1370
        %v1372 = vrot.slane %v1371, 4
        %v1374 = vshll.u32 %v1147, 16
        %v1376 = vrot.slane %v1374, 5
        %v1377 = vsel %vm1167, %v1372, %v1376
        %v1379 = vshrl.u32 %v1084, 16
        %v1381 = vrot.slane %v1379, 4
        %v1382 = vshll.u32 %v1084, 16
        %v1384 = vrot.slane %v1382, 5
        %v1385 = vor.u32 %v1381, %v1384
        %v1386 = vrot.slane %v1385, 4
        %v1388 = vshll.u32 %v1148, 16
        %v1390 = vrot.slane %v1388, 5
        %v1391 = vsel %vm1167, %v1386, %v1390
        %v1393 = vshrl.u32 %v1085, 16
        %v1395 = vrot.slane %v1393, 4
        %v1396 = vshll.u32 %v1085, 16
        %v1398 = vrot.slane %v1396, 5
        %v1399 = vor.u32 %v1395, %v1398
        %v1400 = vrot.slane %v1399, 4
        %v1402 = vshll.u32 %v1149, 16
        %v1404 = vrot.slane %v1402, 5
        %v1405 = vsel %vm1167, %v1400, %v1404
        %v1407 = vshrl.u32 %v1086, 16
        %v1409 = vrot.slane %v1407, 4
        %v1410 = vshll.u32 %v1086, 16
        %v1412 = vrot.slane %v1410, 5
        %v1413 = vor.u32 %v1409, %v1412
        %v1414 = vrot.slane %v1413, 4
        %v1416 = vshll.u32 %v1150, 16
        %v1418 = vrot.slane %v1416, 5
        %v1419 = vsel %vm1167, %v1414, %v1418
        %v1421 = vshrl.u32 %v1087, 16
        %v1423 = vrot.slane %v1421, 4
        %v1424 = vshll.u32 %v1087, 16
        %v1426 = vrot.slane %v1424, 5
        %v1427 = vor.u32 %v1423, %v1426
        %v1428 = vrot.slane %v1427, 4
        %v1430 = vshll.u32 %v1151, 16
        %v1432 = vrot.slane %v1430, 5
        %v1433 = vsel %vm1167, %v1428, %v1432
        %v1435 = vshrl.u32 %v1088, 16
        %v1437 = vrot.slane %v1435, 4
        %v1438 = vshll.u32 %v1088, 16
        %v1440 = vrot.slane %v1438, 5
        %v1441 = vor.u32 %v1437, %v1440
        %v1442 = vrot.slane %v1441, 4
        %v1444 = vshll.u32 %v1152, 16
        %v1446 = vrot.slane %v1444, 5
        %v1447 = vsel %vm1167, %v1442, %v1446
        %v1449 = vshrl.u32 %v1089, 16
        %v1451 = vrot.slane %v1449, 4
        %v1452 = vshll.u32 %v1089, 16
        %v1454 = vrot.slane %v1452, 5
        %v1455 = vor.u32 %v1451, %v1454
        %v1456 = vrot.slane %v1455, 4
        %v1458 = vshll.u32 %v1153, 16
        %v1460 = vrot.slane %v1458, 5
        %v1461 = vsel %vm1167, %v1456, %v1460
        %v1463 = vshrl.u32 %v1090, 16
        %v1465 = vrot.slane %v1463, 4
        %v1466 = vshll.u32 %v1090, 16
        %v1468 = vrot.slane %v1466, 5
        %v1469 = vor.u32 %v1465, %v1468
        %v1470 = vrot.slane %v1469, 4
        %v1472 = vshll.u32 %v1154, 16
        %v1474 = vrot.slane %v1472, 5
        %v1475 = vsel %vm1167, %v1470, %v1474
        %v1477 = vshrl.u32 %v1091, 16
        %v1479 = vrot.slane %v1477, 4
        %v1480 = vshll.u32 %v1091, 16
        %v1482 = vrot.slane %v1480, 5
        %v1483 = vor.u32 %v1479, %v1482
        %v1484 = vrot.slane %v1483, 4
        %v1486 = vshll.u32 %v1155, 16
        %v1488 = vrot.slane %v1486, 5
        %v1489 = vsel %vm1167, %v1484, %v1488
        %v1491 = vshrl.u32 %v1092, 16
        %v1493 = vrot.slane %v1491, 4
        %v1494 = vshll.u32 %v1092, 16
        %v1496 = vrot.slane %v1494, 5
        %v1497 = vor.u32 %v1493, %v1496
        %v1498 = vrot.slane %v1497, 4
        %v1500 = vshll.u32 %v1156, 16
        %v1502 = vrot.slane %v1500, 5
        %v1503 = vsel %vm1167, %v1498, %v1502
        %v1505 = vshrl.u32 %v1093, 16
        %v1507 = vrot.slane %v1505, 4
        %v1508 = vshll.u32 %v1093, 16
        %v1510 = vrot.slane %v1508, 5
        %v1511 = vor.u32 %v1507, %v1510
        %v1512 = vrot.slane %v1511, 4
        %v1514 = vshll.u32 %v1157, 16
        %v1516 = vrot.slane %v1514, 5
        %v1517 = vsel %vm1167, %v1512, %v1516
        %v1519 = vshrl.u32 %v1094, 16
        %v1521 = vrot.slane %v1519, 4
        %v1522 = vshll.u32 %v1094, 16
        %v1524 = vrot.slane %v1522, 5
        %v1525 = vor.u32 %v1521, %v1524
        %v1526 = vrot.slane %v1525, 4
        %v1528 = vshll.u32 %v1158, 16
        %v1530 = vrot.slane %v1528, 5
        %v1531 = vsel %vm1167, %v1526, %v1530
        %v1533 = vshrl.u32 %v1095, 16
        %v1535 = vrot.slane %v1533, 4
        %v1536 = vshll.u32 %v1095, 16
        %v1538 = vrot.slane %v1536, 5
        %v1539 = vor.u32 %v1535, %v1538
        %v1540 = vrot.slane %v1539, 4
        %v1542 = vshll.u32 %v1159, 16
        %v1544 = vrot.slane %v1542, 5
        %v1545 = vsel %vm1167, %v1540, %v1544
        %v1547 = vshrl.u32 %v1096, 16
        %v1549 = vrot.slane %v1547, 4
        %v1550 = vshll.u32 %v1096, 16
        %v1552 = vrot.slane %v1550, 5
        %v1553 = vor.u32 %v1549, %v1552
        %v1554 = vrot.slane %v1553, 4
        %v1556 = vshll.u32 %v1160, 16
        %v1558 = vrot.slane %v1556, 5
        %v1559 = vsel %vm1167, %v1554, %v1558
        %v1561 = vshrl.u32 %v1097, 16
        %v1563 = vrot.slane %v1561, 4
        %v1564 = vshll.u32 %v1097, 16
        %v1566 = vrot.slane %v1564, 5
        %v1567 = vor.u32 %v1563, %v1566
        %v1568 = vrot.slane %v1567, 4
        %v1570 = vshll.u32 %v1161, 16
        %v1572 = vrot.slane %v1570, 5
        %v1573 = vsel %vm1167, %v1568, %v1572
        %v1575 = vshrl.u32 %v1098, 16
        %v1577 = vrot.slane %v1575, 4
        %v1578 = vshll.u32 %v1098, 16
        %v1580 = vrot.slane %v1578, 5
        %v1581 = vor.u32 %v1577, %v1580
        %v1582 = vrot.slane %v1581, 4
        %v1584 = vshll.u32 %v1162, 16
        %v1586 = vrot.slane %v1584, 5
        %v1587 = vsel %vm1167, %v1582, %v1586
        %v1589 = vshrl.u32 %v1099, 16
        %v1591 = vrot.slane %v1589, 4
        %v1592 = vshll.u32 %v1099, 16
        %v1594 = vrot.slane %v1592, 5
        %v1595 = vor.u32 %v1591, %v1594
        %v1596 = vrot.slane %v1595, 4
        %v1598 = vshll.u32 %v1163, 16
        %v1600 = vrot.slane %v1598, 5
        %v1601 = vsel %vm1167, %v1596, %v1600
        %v1603 = vshrl.u32 %v1100, 16
        %v1605 = vrot.slane %v1603, 4
        %v1606 = vshll.u32 %v1100, 16
        %v1608 = vrot.slane %v1606, 5
        %v1609 = vor.u32 %v1605, %v1608
        %v1610 = vrot.slane %v1609, 4
        %v1612 = vshll.u32 %v1164, 16
        %v1614 = vrot.slane %v1612, 5
        %v1615 = vsel %vm1167, %v1610, %v1614
        %s1616 = scalar_lea.vmem [#allocation7], 128
        %v1617 = vld [vmem:[%s1616] sm:$0xf]
        %v1618 = vld [vmem:[%s1616 + $0x4] sm:$0xf]
        %v1619 = vld [vmem:[%s1616 + $0x8] sm:$0xf]
        %v1620 = vld [vmem:[%s1616 + $0xc] sm:$0xf]
        %v1621 = vld [vmem:[%s1616 + $0x10] sm:$0xf]
        %v1622 = vld [vmem:[%s1616 + $0x14] sm:$0xf]
        %v1623 = vld [vmem:[%s1616 + $0x18] sm:$0xf]
        %v1624 = vld [vmem:[%s1616 + $0x1c] sm:$0xf]
        %v1625 = vld [vmem:[%s1616 + $0x20] sm:$0xf]
        %v1626 = vld [vmem:[%s1616 + $0x24] sm:$0xf]
        %v1627 = vld [vmem:[%s1616 + $0x28] sm:$0xf]
        %v1628 = vld [vmem:[%s1616 + $0x2c] sm:$0xf]
        %v1629 = vld [vmem:[%s1616 + $0x30] sm:$0xf]
        %v1630 = vld [vmem:[%s1616 + $0x34] sm:$0xf]
        %v1631 = vld [vmem:[%s1616 + $0x38] sm:$0xf]
        %v1632 = vld [vmem:[%s1616 + $0x3c] sm:$0xf]
        %v1633 = vld [vmem:[%s1616 + $0x40] sm:$0xf]
        %v1634 = vld [vmem:[%s1616 + $0x44] sm:$0xf]
        %v1635 = vld [vmem:[%s1616 + $0x48] sm:$0xf]
        %v1636 = vld [vmem:[%s1616 + $0x4c] sm:$0xf]
        %v1637 = vld [vmem:[%s1616 + $0x50] sm:$0xf]
        %v1638 = vld [vmem:[%s1616 + $0x54] sm:$0xf]
        %v1639 = vld [vmem:[%s1616 + $0x58] sm:$0xf]
        %v1640 = vld [vmem:[%s1616 + $0x5c] sm:$0xf]
        %v1641 = vld [vmem:[%s1616 + $0x60] sm:$0xf]
        %v1642 = vld [vmem:[%s1616 + $0x64] sm:$0xf]
        %v1643 = vld [vmem:[%s1616 + $0x68] sm:$0xf]
        %v1644 = vld [vmem:[%s1616 + $0x6c] sm:$0xf]
        %v1645 = vld [vmem:[%s1616 + $0x70] sm:$0xf]
        %v1646 = vld [vmem:[%s1616 + $0x74] sm:$0xf]
        %v1647 = vld [vmem:[%s1616 + $0x78] sm:$0xf]
        %v1648 = vld [vmem:[%s1616 + $0x7c] sm:$0xf]
        %v1649 = vunpack.c.l.b16 %v1181
        %v1650 = vunpack.c.h.b16 %v1181
        %v1651 = vunpack.c.l.b16 %v1195
        %v1652 = vunpack.c.h.b16 %v1195
        %v1653 = vunpack.c.l.b16 %v1209
        %v1654 = vunpack.c.h.b16 %v1209
        %v1655 = vunpack.c.l.b16 %v1223
        %v1656 = vunpack.c.h.b16 %v1223
        %v1657 = vunpack.c.l.b16 %v1237
        %v1658 = vunpack.c.h.b16 %v1237
        %v1659 = vunpack.c.l.b16 %v1251
        %v1660 = vunpack.c.h.b16 %v1251
        %v1661 = vunpack.c.l.b16 %v1265
        %v1662 = vunpack.c.h.b16 %v1265
        %v1663 = vunpack.c.l.b16 %v1279
        %v1664 = vunpack.c.h.b16 %v1279
        %v1665 = vunpack.c.l.b16 %v1293
        %v1666 = vunpack.c.h.b16 %v1293
        %v1667 = vunpack.c.l.b16 %v1307
        %v1668 = vunpack.c.h.b16 %v1307
        %v1669 = vunpack.c.l.b16 %v1321
        %v1670 = vunpack.c.h.b16 %v1321
        %v1671 = vunpack.c.l.b16 %v1335
        %v1672 = vunpack.c.h.b16 %v1335
        %v1673 = vunpack.c.l.b16 %v1349
        %v1674 = vunpack.c.h.b16 %v1349
        %v1675 = vunpack.c.l.b16 %v1363
        %v1676 = vunpack.c.h.b16 %v1363
        %v1677 = vunpack.c.l.b16 %v1377
        %v1678 = vunpack.c.h.b16 %v1377
        %v1679 = vunpack.c.l.b16 %v1391
        %v1680 = vunpack.c.h.b16 %v1391
        %v1681 = vunpack.c.l.b16 %v1405
        %v1682 = vunpack.c.h.b16 %v1405
        %v1683 = vunpack.c.l.b16 %v1419
        %v1684 = vunpack.c.h.b16 %v1419
        %v1685 = vunpack.c.l.b16 %v1433
        %v1686 = vunpack.c.h.b16 %v1433
        %v1687 = vunpack.c.l.b16 %v1447
        %v1688 = vunpack.c.h.b16 %v1447
        %v1689 = vunpack.c.l.b16 %v1461
        %v1690 = vunpack.c.h.b16 %v1461
        %v1691 = vunpack.c.l.b16 %v1475
        %v1692 = vunpack.c.h.b16 %v1475
        %v1693 = vunpack.c.l.b16 %v1489
        %v1694 = vunpack.c.h.b16 %v1489
        %v1695 = vunpack.c.l.b16 %v1503
        %v1696 = vunpack.c.h.b16 %v1503
        %v1697 = vunpack.c.l.b16 %v1517
        %v1698 = vunpack.c.h.b16 %v1517
        %v1699 = vunpack.c.l.b16 %v1531
        %v1700 = vunpack.c.h.b16 %v1531
        %v1701 = vunpack.c.l.b16 %v1545
        %v1702 = vunpack.c.h.b16 %v1545
        %v1703 = vunpack.c.l.b16 %v1559
        %v1704 = vunpack.c.h.b16 %v1559
        %v1705 = vunpack.c.l.b16 %v1573
        %v1706 = vunpack.c.h.b16 %v1573
        %v1707 = vunpack.c.l.b16 %v1587
        %v1708 = vunpack.c.h.b16 %v1587
        %v1709 = vunpack.c.l.b16 %v1601
        %v1710 = vunpack.c.h.b16 %v1601
        %v1711 = vunpack.c.l.b16 %v1615
        %v1712 = vunpack.c.h.b16 %v1615
        %v1713 = vpack.c.b16 %v1651, %v1649
        %v1714 = vpack.c.b16 %v1652, %v1650
        %v1715 = vpack.c.b16 %v1655, %v1653
        %v1716 = vpack.c.b16 %v1656, %v1654
        %v1717 = vpack.c.b16 %v1659, %v1657
        %v1718 = vpack.c.b16 %v1660, %v1658
        %v1719 = vpack.c.b16 %v1663, %v1661
        %v1720 = vpack.c.b16 %v1664, %v1662
        %v1721 = vpack.c.b16 %v1667, %v1665
        %v1722 = vpack.c.b16 %v1668, %v1666
        %v1723 = vpack.c.b16 %v1671, %v1669
        %v1724 = vpack.c.b16 %v1672, %v1670
        %v1725 = vpack.c.b16 %v1675, %v1673
        %v1726 = vpack.c.b16 %v1676, %v1674
        %v1727 = vpack.c.b16 %v1679, %v1677
        %v1728 = vpack.c.b16 %v1680, %v1678
        %v1729 = vpack.c.b16 %v1683, %v1681
        %v1730 = vpack.c.b16 %v1684, %v1682
        %v1731 = vpack.c.b16 %v1687, %v1685
        %v1732 = vpack.c.b16 %v1688, %v1686
        %v1733 = vpack.c.b16 %v1691, %v1689
        %v1734 = vpack.c.b16 %v1692, %v1690
        %v1735 = vpack.c.b16 %v1695, %v1693
        %v1736 = vpack.c.b16 %v1696, %v1694
        %v1737 = vpack.c.b16 %v1699, %v1697
        %v1738 = vpack.c.b16 %v1700, %v1698
        %v1739 = vpack.c.b16 %v1703, %v1701
        %v1740 = vpack.c.b16 %v1704, %v1702
        %v1741 = vpack.c.b16 %v1707, %v1705
        %v1742 = vpack.c.b16 %v1708, %v1706
        %v1743 = vpack.c.b16 %v1711, %v1709
        %v1744 = vpack.c.b16 %v1712, %v1710
        %v1809 = vunpack.c.l.b16 %v1617
        %v1810 = vunpack.c.l.b16 %v1618
        %v1811 = vunpack.c.l.b16 %v1619
        %v1812 = vunpack.c.l.b16 %v1620
        %v1813 = vunpack.c.l.b16 %v1621
        %v1814 = vunpack.c.l.b16 %v1622
        %v1815 = vunpack.c.l.b16 %v1623
        %v1816 = vunpack.c.l.b16 %v1624
        %v1817 = vunpack.c.l.b16 %v1625
        %v1818 = vunpack.c.l.b16 %v1626
        %v1819 = vunpack.c.l.b16 %v1627
        %v1820 = vunpack.c.l.b16 %v1628
        %v1821 = vunpack.c.l.b16 %v1629
        %v1822 = vunpack.c.l.b16 %v1630
        %v1823 = vunpack.c.l.b16 %v1631
        %v1824 = vunpack.c.l.b16 %v1632
        %v1825 = vunpack.c.l.b16 %v1633
        %v1826 = vunpack.c.l.b16 %v1634
        %v1827 = vunpack.c.l.b16 %v1635
        %v1828 = vunpack.c.l.b16 %v1636
        %v1829 = vunpack.c.l.b16 %v1637
        %v1830 = vunpack.c.l.b16 %v1638
        %v1831 = vunpack.c.l.b16 %v1639
        %v1832 = vunpack.c.l.b16 %v1640
        %v1833 = vunpack.c.l.b16 %v1641
        %v1834 = vunpack.c.l.b16 %v1642
        %v1835 = vunpack.c.l.b16 %v1643
        %v1836 = vunpack.c.l.b16 %v1644
        %v1837 = vunpack.c.l.b16 %v1645
        %v1838 = vunpack.c.l.b16 %v1646
        %v1839 = vunpack.c.l.b16 %v1647
        %v1840 = vunpack.c.l.b16 %v1648
        %v1841 = vpack.c.b16 %v1810, %v1809
        %v1842 = vpack.c.b16 %v1812, %v1811
        %v1843 = vpack.c.b16 %v1814, %v1813
        %v1844 = vpack.c.b16 %v1816, %v1815
        %v1845 = vpack.c.b16 %v1818, %v1817
        %v1846 = vpack.c.b16 %v1820, %v1819
        %v1847 = vpack.c.b16 %v1822, %v1821
        %v1848 = vpack.c.b16 %v1824, %v1823
        %v1849 = vpack.c.b16 %v1826, %v1825
        %v1850 = vpack.c.b16 %v1828, %v1827
        %v1851 = vpack.c.b16 %v1830, %v1829
        %v1852 = vpack.c.b16 %v1832, %v1831
        %v1853 = vpack.c.b16 %v1834, %v1833
        %v1854 = vpack.c.b16 %v1836, %v1835
        %v1855 = vpack.c.b16 %v1838, %v1837
        %v1856 = vpack.c.b16 %v1840, %v1839
        %1873 = vmatprep.subr.bf16.mxu0 0
        %1874 = vmatpush1.bf16.msra.mxu0 %v1841
        %1875 = vmatprep.subr.bf16.mxu0 0
        %1876 = vmatpush1.bf16.msra.mxu0 %v1842
        %1877 = vmatprep.subr.bf16.mxu0 0
        %1878 = vmatpush1.bf16.msra.mxu0 %v1843
        %1879 = vmatprep.subr.bf16.mxu0 0
        %1880 = vmatpush1.bf16.msra.mxu0 %v1844
        %1881 = vmatprep.subr.bf16.mxu0 0
        %1882 = vmatpush1.bf16.msra.mxu0 %v1845
        %1883 = vmatprep.subr.bf16.mxu0 0
        %1884 = vmatpush1.bf16.msra.mxu0 %v1846
        %1885 = vmatprep.subr.bf16.mxu0 0
        %1886 = vmatpush1.bf16.msra.mxu0 %v1847
        %1887 = vmatprep.subr.bf16.mxu0 0
        %1888 = vmatpush1.bf16.msra.mxu0 %v1848
        %1889 = vmatprep.subr.bf16.mxu0 0
        %1890 = vmatpush1.bf16.msra.mxu0 %v1849
        %1891 = vmatprep.subr.bf16.mxu0 0
        %1892 = vmatpush1.bf16.msra.mxu0 %v1850
        %1893 = vmatprep.subr.bf16.mxu0 0
        %1894 = vmatpush1.bf16.msra.mxu0 %v1851
        %1895 = vmatprep.subr.bf16.mxu0 0
        %1896 = vmatpush1.bf16.msra.mxu0 %v1852
        %1897 = vmatprep.subr.bf16.mxu0 0
        %1898 = vmatpush1.bf16.msra.mxu0 %v1853
        %1899 = vmatprep.subr.bf16.mxu0 0
        %1900 = vmatpush1.bf16.msra.mxu0 %v1854
        %1901 = vmatprep.subr.bf16.mxu0 0
        %1902 = vmatpush1.bf16.msra.mxu0 %v1855
        %1903 = vmatprep.subr.bf16.mxu0 0
        %1904 = vmatpush1.bf16.msra.mxu0 %v1856
        %1905 = vmatprep.mubr.bf16.mxu0 %v1714
        %1906 = vmatmul.mubr.bf16.gmra.mrb[0].mxu0 %v1713
        %v1907 = vpop.f32.mrb[0].mxu0
        %v1908 = vadd.f32 0.0, %v1907
        %v1909 = vpop.f32.mrb[0].mxu0
        %v1910 = vpop.f32.mrb[0].mxu0
        %v1911 = vadd.f32 0.0, %v1910
        %v1912 = vpop.f32.mrb[0].mxu0
        %1913 = vmatprep.mubr.bf16.mxu0 %v1716
        %1914 = vmatmul.mubr.bf16.gmra.mrb[0].mxu0 %v1715
        %v1915 = vpop.f32.mrb[0].mxu0
        %v1916 = vadd.f32 0.0, %v1915
        %v1917 = vpop.f32.mrb[0].mxu0
        %v1918 = vpop.f32.mrb[0].mxu0
        %v1919 = vadd.f32 0.0, %v1918
        %v1920 = vpop.f32.mrb[0].mxu0
        %1921 = vmatprep.mubr.bf16.mxu0 %v1718
        %1922 = vmatmul.mubr.bf16.gmra.mrb[0].mxu0 %v1717
        %v1923 = vpop.f32.mrb[0].mxu0
        %v1924 = vadd.f32 0.0, %v1923
        %v1925 = vpop.f32.mrb[0].mxu0
        %v1926 = vpop.f32.mrb[0].mxu0
        %v1927 = vadd.f32 0.0, %v1926
        %v1928 = vpop.f32.mrb[0].mxu0
        %1929 = vmatprep.mubr.bf16.mxu0 %v1720
        %1930 = vmatmul.mubr.bf16.gmra.mrb[0].mxu0 %v1719
        %v1931 = vpop.f32.mrb[0].mxu0
        %v1932 = vadd.f32 0.0, %v1931
        %v1933 = vpop.f32.mrb[0].mxu0
        %v1934 = vpop.f32.mrb[0].mxu0
        %v1935 = vadd.f32 0.0, %v1934
        %v1936 = vpop.f32.mrb[0].mxu0
        %1937 = vmatprep.mubr.bf16.mxu0 %v1722
        %1938 = vmatmul.mubr.bf16.gmra.mrb[0].mxu0 %v1721
        %v1939 = vpop.f32.mrb[0].mxu0
        %v1940 = vadd.f32 0.0, %v1939
        %v1941 = vpop.f32.mrb[0].mxu0
        %v1942 = vpop.f32.mrb[0].mxu0
        %v1943 = vadd.f32 0.0, %v1942
        %v1944 = vpop.f32.mrb[0].mxu0
        %1945 = vmatprep.mubr.bf16.mxu0 %v1724
        %1946 = vmatmul.mubr.bf16.gmra.mrb[0].mxu0 %v1723
        %v1947 = vpop.f32.mrb[0].mxu0
        %v1948 = vadd.f32 0.0, %v1947
        %v1949 = vpop.f32.mrb[0].mxu0
        %v1950 = vpop.f32.mrb[0].mxu0
        %v1951 = vadd.f32 0.0, %v1950
        %v1952 = vpop.f32.mrb[0].mxu0
        %1953 = vmatprep.mubr.bf16.mxu0 %v1726
        %1954 = vmatmul.mubr.bf16.gmra.mrb[0].mxu0 %v1725
        %v1955 = vpop.f32.mrb[0].mxu0
        %v1956 = vadd.f32 0.0, %v1955
        %v1957 = vpop.f32.mrb[0].mxu0
        %v1958 = vpop.f32.mrb[0].mxu0
        %v1959 = vadd.f32 0.0, %v1958
        %v1960 = vpop.f32.mrb[0].mxu0
        %1961 = vmatprep.mubr.bf16.mxu0 %v1728
        %1962 = vmatmul.mubr.bf16.gmra.mrb[0].mxu0 %v1727
        %v1963 = vpop.f32.mrb[0].mxu0
        %v1964 = vadd.f32 0.0, %v1963
        %v1965 = vpop.f32.mrb[0].mxu0
        %v1966 = vpop.f32.mrb[0].mxu0
        %v1967 = vadd.f32 0.0, %v1966
        %v1968 = vpop.f32.mrb[0].mxu0
        %1969 = vmatprep.mubr.bf16.mxu0 %v1730
        %1970 = vmatmul.mubr.bf16.gmra.mrb[0].mxu0 %v1729
        %v1971 = vpop.f32.mrb[0].mxu0
        %v1972 = vadd.f32 0.0, %v1971
        %v1973 = vpop.f32.mrb[0].mxu0
        %v1974 = vpop.f32.mrb[0].mxu0
        %v1975 = vadd.f32 0.0, %v1974
        %v1976 = vpop.f32.mrb[0].mxu0
        %1977 = vmatprep.mubr.bf16.mxu0 %v1732
        %1978 = vmatmul.mubr.bf16.gmra.mrb[0].mxu0 %v1731
        %v1979 = vpop.f32.mrb[0].mxu0
        %v1980 = vadd.f32 0.0, %v1979
        %v1981 = vpop.f32.mrb[0].mxu0
        %v1982 = vpop.f32.mrb[0].mxu0
        %v1983 = vadd.f32 0.0, %v1982
        %v1984 = vpop.f32.mrb[0].mxu0
        %1985 = vmatprep.mubr.bf16.mxu0 %v1734
        %1986 = vmatmul.mubr.bf16.gmra.mrb[0].mxu0 %v1733
        %v1987 = vpop.f32.mrb[0].mxu0
        %v1988 = vadd.f32 0.0, %v1987
        %v1989 = vpop.f32.mrb[0].mxu0
        %v1990 = vpop.f32.mrb[0].mxu0
        %v1991 = vadd.f32 0.0, %v1990
        %v1992 = vpop.f32.mrb[0].mxu0
        %1993 = vmatprep.mubr.bf16.mxu0 %v1736
        %1994 = vmatmul.mubr.bf16.gmra.mrb[0].mxu0 %v1735
        %v1995 = vpop.f32.mrb[0].mxu0
        %v1996 = vadd.f32 0.0, %v1995
        %v1997 = vpop.f32.mrb[0].mxu0
        %v1998 = vpop.f32.mrb[0].mxu0
        %v1999 = vadd.f32 0.0, %v1998
        %v2000 = vpop.f32.mrb[0].mxu0
        %2001 = vmatprep.mubr.bf16.mxu0 %v1738
        %2002 = vmatmul.mubr.bf16.gmra.mrb[0].mxu0 %v1737
        %v2003 = vpop.f32.mrb[0].mxu0
        %v2004 = vadd.f32 0.0, %v2003
        %v2005 = vpop.f32.mrb[0].mxu0
        %v2006 = vpop.f32.mrb[0].mxu0
        %v2007 = vadd.f32 0.0, %v2006
        %v2008 = vpop.f32.mrb[0].mxu0
        %2009 = vmatprep.mubr.bf16.mxu0 %v1740
        %2010 = vmatmul.mubr.bf16.gmra.mrb[0].mxu0 %v1739
        %v2011 = vpop.f32.mrb[0].mxu0
        %v2012 = vadd.f32 0.0, %v2011
        %v2013 = vpop.f32.mrb[0].mxu0
        %v2014 = vpop.f32.mrb[0].mxu0
        %v2015 = vadd.f32 0.0, %v2014
        %v2016 = vpop.f32.mrb[0].mxu0
        %2017 = vmatprep.mubr.bf16.mxu0 %v1742
        %2018 = vmatmul.mubr.bf16.gmra.mrb[0].mxu0 %v1741
        %v2019 = vpop.f32.mrb[0].mxu0
        %v2020 = vadd.f32 0.0, %v2019
        %v2021 = vpop.f32.mrb[0].mxu0
        %v2022 = vpop.f32.mrb[0].mxu0
        %v2023 = vadd.f32 0.0, %v2022
        %v2024 = vpop.f32.mrb[0].mxu0
        %2025 = vmatprep.mubr.bf16.mxu0 %v1744
        %2026 = vmatmul.mubr.bf16.gmra.mrb[0].mxu0 %v1743
        %v2027 = vpop.f32.mrb[0].mxu0
        %v2028 = vadd.f32 0.0, %v2027
        %v2029 = vpop.f32.mrb[0].mxu0
        %v2030 = vpop.f32.mrb[0].mxu0
        %v2031 = vadd.f32 0.0, %v2030
        %v2032 = vpop.f32.mrb[0].mxu0
        %2033 = vdwg.mxu0
        %v2066 = vunpack.c.l.b16 %v1069
        %v2067 = vunpack.c.h.b16 %v1069
        %v2068 = vunpack.c.l.b16 %v1070
        %v2069 = vunpack.c.h.b16 %v1070
        %v2070 = vunpack.c.l.b16 %v1071
        %v2071 = vunpack.c.h.b16 %v1071
        %v2072 = vunpack.c.l.b16 %v1072
        %v2073 = vunpack.c.h.b16 %v1072
        %v2074 = vunpack.c.l.b16 %v1073
        %v2075 = vunpack.c.h.b16 %v1073
        %v2076 = vunpack.c.l.b16 %v1074
        %v2077 = vunpack.c.h.b16 %v1074
        %v2078 = vunpack.c.l.b16 %v1075
        %v2079 = vunpack.c.h.b16 %v1075
        %v2080 = vunpack.c.l.b16 %v1076
        %v2081 = vunpack.c.h.b16 %v1076
        %v2082 = vunpack.c.l.b16 %v1077
        %v2083 = vunpack.c.h.b16 %v1077
        %v2084 = vunpack.c.l.b16 %v1078
        %v2085 = vunpack.c.h.b16 %v1078
        %v2086 = vunpack.c.l.b16 %v1079
        %v2087 = vunpack.c.h.b16 %v1079
        %v2088 = vunpack.c.l.b16 %v1080
        %v2089 = vunpack.c.h.b16 %v1080
        %v2090 = vunpack.c.l.b16 %v1081
        %v2091 = vunpack.c.h.b16 %v1081
        %v2092 = vunpack.c.l.b16 %v1082
        %v2093 = vunpack.c.h.b16 %v1082
        %v2094 = vunpack.c.l.b16 %v1083
        %v2095 = vunpack.c.h.b16 %v1083
        %v2096 = vunpack.c.l.b16 %v1084
        %v2097 = vunpack.c.h.b16 %v1084
        %v2098 = vunpack.c.l.b16 %v1085
        %v2099 = vunpack.c.h.b16 %v1085
        %v2100 = vunpack.c.l.b16 %v1086
        %v2101 = vunpack.c.h.b16 %v1086
        %v2102 = vunpack.c.l.b16 %v1087
        %v2103 = vunpack.c.h.b16 %v1087
        %v2104 = vunpack.c.l.b16 %v1088
        %v2105 = vunpack.c.h.b16 %v1088
        %v2106 = vunpack.c.l.b16 %v1089
        %v2107 = vunpack.c.h.b16 %v1089
        %v2108 = vunpack.c.l.b16 %v1090
        %v2109 = vunpack.c.h.b16 %v1090
        %v2110 = vunpack.c.l.b16 %v1091
        %v2111 = vunpack.c.h.b16 %v1091
        %v2112 = vunpack.c.l.b16 %v1092
        %v2113 = vunpack.c.h.b16 %v1092
        %v2114 = vunpack.c.l.b16 %v1093
        %v2115 = vunpack.c.h.b16 %v1093
        %v2116 = vunpack.c.l.b16 %v1094
        %v2117 = vunpack.c.h.b16 %v1094
        %v2118 = vunpack.c.l.b16 %v1095
        %v2119 = vunpack.c.h.b16 %v1095
        %v2120 = vunpack.c.l.b16 %v1096
        %v2121 = vunpack.c.h.b16 %v1096
        %v2122 = vunpack.c.l.b16 %v1097
        %v2123 = vunpack.c.h.b16 %v1097
        %v2124 = vunpack.c.l.b16 %v1098
        %v2125 = vunpack.c.h.b16 %v1098
        %v2126 = vunpack.c.l.b16 %v1099
        %v2127 = vunpack.c.h.b16 %v1099
        %v2128 = vunpack.c.l.b16 %v1100
        %v2129 = vunpack.c.h.b16 %v1100
        %v2130 = vpack.c.b16 %v2068, %v2066
        %v2131 = vpack.c.b16 %v2069, %v2067
        %v2132 = vpack.c.b16 %v2072, %v2070
        %v2133 = vpack.c.b16 %v2073, %v2071
        %v2134 = vpack.c.b16 %v2076, %v2074
        %v2135 = vpack.c.b16 %v2077, %v2075
        %v2136 = vpack.c.b16 %v2080, %v2078
        %v2137 = vpack.c.b16 %v2081, %v2079
        %v2138 = vpack.c.b16 %v2084, %v2082
        %v2139 = vpack.c.b16 %v2085, %v2083
        %v2140 = vpack.c.b16 %v2088, %v2086
        %v2141 = vpack.c.b16 %v2089, %v2087
        %v2142 = vpack.c.b16 %v2092, %v2090
        %v2143 = vpack.c.b16 %v2093, %v2091
        %v2144 = vpack.c.b16 %v2096, %v2094
        %v2145 = vpack.c.b16 %v2097, %v2095
        %v2146 = vpack.c.b16 %v2100, %v2098
        %v2147 = vpack.c.b16 %v2101, %v2099
        %v2148 = vpack.c.b16 %v2104, %v2102
        %v2149 = vpack.c.b16 %v2105, %v2103
        %v2150 = vpack.c.b16 %v2108, %v2106
        %v2151 = vpack.c.b16 %v2109, %v2107
        %v2152 = vpack.c.b16 %v2112, %v2110
        %v2153 = vpack.c.b16 %v2113, %v2111
        %v2154 = vpack.c.b16 %v2116, %v2114
        %v2155 = vpack.c.b16 %v2117, %v2115
        %v2156 = vpack.c.b16 %v2120, %v2118
        %v2157 = vpack.c.b16 %v2121, %v2119
        %v2158 = vpack.c.b16 %v2124, %v2122
        %v2159 = vpack.c.b16 %v2125, %v2123
        %v2160 = vpack.c.b16 %v2128, %v2126
        %v2161 = vpack.c.b16 %v2129, %v2127
        %v2226 = vunpack.c.l.b16 %v1101
        %v2227 = vunpack.c.l.b16 %v1102
        %v2228 = vunpack.c.l.b16 %v1103
        %v2229 = vunpack.c.l.b16 %v1104
        %v2230 = vunpack.c.l.b16 %v1105
        %v2231 = vunpack.c.l.b16 %v1106
        %v2232 = vunpack.c.l.b16 %v1107
        %v2233 = vunpack.c.l.b16 %v1108
        %v2234 = vunpack.c.l.b16 %v1109
        %v2235 = vunpack.c.l.b16 %v1110
        %v2236 = vunpack.c.l.b16 %v1111
        %v2237 = vunpack.c.l.b16 %v1112
        %v2238 = vunpack.c.l.b16 %v1113
        %v2239 = vunpack.c.l.b16 %v1114
        %v2240 = vunpack.c.l.b16 %v1115
        %v2241 = vunpack.c.l.b16 %v1116
        %v2242 = vunpack.c.l.b16 %v1117
        %v2243 = vunpack.c.l.b16 %v1118
        %v2244 = vunpack.c.l.b16 %v1119
        %v2245 = vunpack.c.l.b16 %v1120
        %v2246 = vunpack.c.l.b16 %v1121
        %v2247 = vunpack.c.l.b16 %v1122
        %v2248 = vunpack.c.l.b16 %v1123
        %v2249 = vunpack.c.l.b16 %v1124
        %v2250 = vunpack.c.l.b16 %v1125
        %v2251 = vunpack.c.l.b16 %v1126
        %v2252 = vunpack.c.l.b16 %v1127
        %v2253 = vunpack.c.l.b16 %v1128
        %v2254 = vunpack.c.l.b16 %v1129
        %v2255 = vunpack.c.l.b16 %v1130
        %v2256 = vunpack.c.l.b16 %v1131
        %v2257 = vunpack.c.l.b16 %v1132
        %v2258 = vpack.c.b16 %v2227, %v2226
        %v2259 = vpack.c.b16 %v2229, %v2228
        %v2260 = vpack.c.b16 %v2231, %v2230
        %v2261 = vpack.c.b16 %v2233, %v2232
        %v2262 = vpack.c.b16 %v2235, %v2234
        %v2263 = vpack.c.b16 %v2237, %v2236
        %v2264 = vpack.c.b16 %v2239, %v2238
        %v2265 = vpack.c.b16 %v2241, %v2240
        %v2266 = vpack.c.b16 %v2243, %v2242
        %v2267 = vpack.c.b16 %v2245, %v2244
        %v2268 = vpack.c.b16 %v2247, %v2246
        %v2269 = vpack.c.b16 %v2249, %v2248
        %v2270 = vpack.c.b16 %v2251, %v2250
        %v2271 = vpack.c.b16 %v2253, %v2252
        %v2272 = vpack.c.b16 %v2255, %v2254
        %v2273 = vpack.c.b16 %v2257, %v2256
        %2290 = vmatprep.subr.bf16.mxu0 0
        %2291 = vmatpush1.bf16.msra.mxu0 %v2258
        %2292 = vmatprep.subr.bf16.mxu0 0
        %2293 = vmatpush1.bf16.msra.mxu0 %v2259
        %2294 = vmatprep.subr.bf16.mxu0 0
        %2295 = vmatpush1.bf16.msra.mxu0 %v2260
        %2296 = vmatprep.subr.bf16.mxu0 0
        %2297 = vmatpush1.bf16.msra.mxu0 %v2261
        %2298 = vmatprep.subr.bf16.mxu0 0
        %2299 = vmatpush1.bf16.msra.mxu0 %v2262
        %2300 = vmatprep.subr.bf16.mxu0 0
        %2301 = vmatpush1.bf16.msra.mxu0 %v2263
        %2302 = vmatprep.subr.bf16.mxu0 0
        %2303 = vmatpush1.bf16.msra.mxu0 %v2264
        %2304 = vmatprep.subr.bf16.mxu0 0
        %2305 = vmatpush1.bf16.msra.mxu0 %v2265
        %2306 = vmatprep.subr.bf16.mxu0 0
        %2307 = vmatpush1.bf16.msra.mxu0 %v2266
        %2308 = vmatprep.subr.bf16.mxu0 0
        %2309 = vmatpush1.bf16.msra.mxu0 %v2267
        %2310 = vmatprep.subr.bf16.mxu0 0
        %2311 = vmatpush1.bf16.msra.mxu0 %v2268
        %2312 = vmatprep.subr.bf16.mxu0 0
        %2313 = vmatpush1.bf16.msra.mxu0 %v2269
        %2314 = vmatprep.subr.bf16.mxu0 0
        %2315 = vmatpush1.bf16.msra.mxu0 %v2270
        %2316 = vmatprep.subr.bf16.mxu0 0
        %2317 = vmatpush1.bf16.msra.mxu0 %v2271
        %2318 = vmatprep.subr.bf16.mxu0 0
        %2319 = vmatpush1.bf16.msra.mxu0 %v2272
        %2320 = vmatprep.subr.bf16.mxu0 0
        %2321 = vmatpush1.bf16.msra.mxu0 %v2273
        %2322 = vmatprep.mubr.bf16.mxu0 %v2131
        %2323 = vmatmul.mubr.bf16.gmra.mrb[0].mxu0 %v2130
        %v2324 = vpop.f32.mrb[0].mxu0
        %v2325 = vadd.f32 %v1908, %v2324
        %v2326 = vpop.f32.mrb[0].mxu0
        %v2327 = vpop.f32.mrb[0].mxu0
        %v2328 = vadd.f32 %v1911, %v2327
        %v2329 = vpop.f32.mrb[0].mxu0
        %2330 = vmatprep.mubr.bf16.mxu0 %v2133
        %2331 = vmatmul.mubr.bf16.gmra.mrb[0].mxu0 %v2132
        %v2332 = vpop.f32.mrb[0].mxu0
        %v2333 = vadd.f32 %v1916, %v2332
        %v2334 = vpop.f32.mrb[0].mxu0
        %v2335 = vpop.f32.mrb[0].mxu0
        %v2336 = vadd.f32 %v1919, %v2335
        %v2337 = vpop.f32.mrb[0].mxu0
        %2338 = vmatprep.mubr.bf16.mxu0 %v2135
        %2339 = vmatmul.mubr.bf16.gmra.mrb[0].mxu0 %v2134
        %v2340 = vpop.f32.mrb[0].mxu0
        %v2341 = vadd.f32 %v1924, %v2340
        %v2342 = vpop.f32.mrb[0].mxu0
        %v2343 = vpop.f32.mrb[0].mxu0
        %v2344 = vadd.f32 %v1927, %v2343
        %v2345 = vpop.f32.mrb[0].mxu0
        %2346 = vmatprep.mubr.bf16.mxu0 %v2137
        %2347 = vmatmul.mubr.bf16.gmra.mrb[0].mxu0 %v2136
        %v2348 = vpop.f32.mrb[0].mxu0
        %v2349 = vadd.f32 %v1932, %v2348
        %v2350 = vpop.f32.mrb[0].mxu0
        %v2351 = vpop.f32.mrb[0].mxu0
        %v2352 = vadd.f32 %v1935, %v2351
        %v2353 = vpop.f32.mrb[0].mxu0
        %2354 = vmatprep.mubr.bf16.mxu0 %v2139
        %2355 = vmatmul.mubr.bf16.gmra.mrb[0].mxu0 %v2138
        %v2356 = vpop.f32.mrb[0].mxu0
        %v2357 = vadd.f32 %v1940, %v2356
        %v2358 = vpop.f32.mrb[0].mxu0
        %v2359 = vpop.f32.mrb[0].mxu0
        %v2360 = vadd.f32 %v1943, %v2359
        %v2361 = vpop.f32.mrb[0].mxu0
        %2362 = vmatprep.mubr.bf16.mxu0 %v2141
        %2363 = vmatmul.mubr.bf16.gmra.mrb[0].mxu0 %v2140
        %v2364 = vpop.f32.mrb[0].mxu0
        %v2365 = vadd.f32 %v1948, %v2364
        %v2366 = vpop.f32.mrb[0].mxu0
        %v2367 = vpop.f32.mrb[0].mxu0
        %v2368 = vadd.f32 %v1951, %v2367
        %v2369 = vpop.f32.mrb[0].mxu0
        %2370 = vmatprep.mubr.bf16.mxu0 %v2143
        %2371 = vmatmul.mubr.bf16.gmra.mrb[0].mxu0 %v2142
        %v2372 = vpop.f32.mrb[0].mxu0
        %v2373 = vadd.f32 %v1956, %v2372
        %v2374 = vpop.f32.mrb[0].mxu0
        %v2375 = vpop.f32.mrb[0].mxu0
        %v2376 = vadd.f32 %v1959, %v2375
        %v2377 = vpop.f32.mrb[0].mxu0
        %2378 = vmatprep.mubr.bf16.mxu0 %v2145
        %2379 = vmatmul.mubr.bf16.gmra.mrb[0].mxu0 %v2144
        %v2380 = vpop.f32.mrb[0].mxu0
        %v2381 = vadd.f32 %v1964, %v2380
        %v2382 = vpop.f32.mrb[0].mxu0
        %v2383 = vpop.f32.mrb[0].mxu0
        %v2384 = vadd.f32 %v1967, %v2383
        %v2385 = vpop.f32.mrb[0].mxu0
        %2386 = vmatprep.mubr.bf16.mxu0 %v2147
        %2387 = vmatmul.mubr.bf16.gmra.mrb[0].mxu0 %v2146
        %v2388 = vpop.f32.mrb[0].mxu0
        %v2389 = vadd.f32 %v1972, %v2388
        %v2390 = vpop.f32.mrb[0].mxu0
        %v2391 = vpop.f32.mrb[0].mxu0
        %v2392 = vadd.f32 %v1975, %v2391
        %v2393 = vpop.f32.mrb[0].mxu0
        %2394 = vmatprep.mubr.bf16.mxu0 %v2149
        %2395 = vmatmul.mubr.bf16.gmra.mrb[0].mxu0 %v2148
        %v2396 = vpop.f32.mrb[0].mxu0
        %v2397 = vadd.f32 %v1980, %v2396
        %v2398 = vpop.f32.mrb[0].mxu0
        %v2399 = vpop.f32.mrb[0].mxu0
        %v2400 = vadd.f32 %v1983, %v2399
        %v2401 = vpop.f32.mrb[0].mxu0
        %2402 = vmatprep.mubr.bf16.mxu0 %v2151
        %2403 = vmatmul.mubr.bf16.gmra.mrb[0].mxu0 %v2150
        %v2404 = vpop.f32.mrb[0].mxu0
        %v2405 = vadd.f32 %v1988, %v2404
        %v2406 = vpop.f32.mrb[0].mxu0
        %v2407 = vpop.f32.mrb[0].mxu0
        %v2408 = vadd.f32 %v1991, %v2407
        %v2409 = vpop.f32.mrb[0].mxu0
        %2410 = vmatprep.mubr.bf16.mxu0 %v2153
        %2411 = vmatmul.mubr.bf16.gmra.mrb[0].mxu0 %v2152
        %v2412 = vpop.f32.mrb[0].mxu0
        %v2413 = vadd.f32 %v1996, %v2412
        %v2414 = vpop.f32.mrb[0].mxu0
        %v2415 = vpop.f32.mrb[0].mxu0
        %v2416 = vadd.f32 %v1999, %v2415
        %v2417 = vpop.f32.mrb[0].mxu0
        %2418 = vmatprep.mubr.bf16.mxu0 %v2155
        %2419 = vmatmul.mubr.bf16.gmra.mrb[0].mxu0 %v2154
        %v2420 = vpop.f32.mrb[0].mxu0
        %v2421 = vadd.f32 %v2004, %v2420
        %v2422 = vpop.f32.mrb[0].mxu0
        %v2423 = vpop.f32.mrb[0].mxu0
        %v2424 = vadd.f32 %v2007, %v2423
        %v2425 = vpop.f32.mrb[0].mxu0
        %2426 = vmatprep.mubr.bf16.mxu0 %v2157
        %2427 = vmatmul.mubr.bf16.gmra.mrb[0].mxu0 %v2156
        %v2428 = vpop.f32.mrb[0].mxu0
        %v2429 = vadd.f32 %v2012, %v2428
        %v2430 = vpop.f32.mrb[0].mxu0
        %v2431 = vpop.f32.mrb[0].mxu0
        %v2432 = vadd.f32 %v2015, %v2431
        %v2433 = vpop.f32.mrb[0].mxu0
        %2434 = vmatprep.mubr.bf16.mxu0 %v2159
        %2435 = vmatmul.mubr.bf16.gmra.mrb[0].mxu0 %v2158
        %v2436 = vpop.f32.mrb[0].mxu0
        %v2437 = vadd.f32 %v2020, %v2436
        %v2438 = vpop.f32.mrb[0].mxu0
        %v2439 = vpop.f32.mrb[0].mxu0
        %v2440 = vadd.f32 %v2023, %v2439
        %v2441 = vpop.f32.mrb[0].mxu0
        %2442 = vmatprep.mubr.bf16.mxu0 %v2161
        %2443 = vmatmul.mubr.bf16.gmra.mrb[0].mxu0 %v2160
        %v2444 = vpop.f32.mrb[0].mxu0
        %v2445 = vadd.f32 %v2028, %v2444
        %v2446 = vpop.f32.mrb[0].mxu0
        %v2447 = vpop.f32.mrb[0].mxu0
        %v2448 = vadd.f32 %v2031, %v2447
        %v2449 = vpop.f32.mrb[0].mxu0
        %2450 = vdwg.mxu0
        %v2451 = vld [vmem:[#allocation2] sm:$0xee]
        %v2452 = vld [vmem:[#allocation2 + $0x10] sm:$0xee]
        %v2453 = vld [vmem:[#allocation2 + $0x20] sm:$0xee]
        %v2454 = vld [vmem:[#allocation2 + $0x30] sm:$0xee]
        %v2455 = vld [vmem:[#allocation2 + $0x40] sm:$0xee]
        %v2456 = vld [vmem:[#allocation2 + $0x50] sm:$0xee]
        %v2457 = vld [vmem:[#allocation2 + $0x60] sm:$0xee]
        %v2458 = vld [vmem:[#allocation2 + $0x70] sm:$0xee]
        %v2459 = vld [vmem:[#allocation2 + $0x80] sm:$0xee]
        %v2460 = vld [vmem:[#allocation2 + $0x90] sm:$0xee]
        %v2461 = vld [vmem:[#allocation2 + $0xa0] sm:$0xee]
        %v2462 = vld [vmem:[#allocation2 + $0xb0] sm:$0xee]
        %v2463 = vld [vmem:[#allocation2 + $0xc0] sm:$0xee]
        %v2464 = vld [vmem:[#allocation2 + $0xd0] sm:$0xee]
        %v2465 = vld [vmem:[#allocation2 + $0xe0] sm:$0xee]
        %v2466 = vld [vmem:[#allocation2 + $0xf0] sm:$0xee]
        %v2467 = vld [vmem:[#allocation2 + $0x100] sm:$0xee]
        %v2468 = vld [vmem:[#allocation2 + $0x110] sm:$0xee]
        %v2469 = vld [vmem:[#allocation2 + $0x120] sm:$0xee]
        %v2470 = vld [vmem:[#allocation2 + $0x130] sm:$0xee]
        %v2471 = vld [vmem:[#allocation2 + $0x140] sm:$0xee]
        %v2472 = vld [vmem:[#allocation2 + $0x150] sm:$0xee]
        %v2473 = vld [vmem:[#allocation2 + $0x160] sm:$0xee]
        %v2474 = vld [vmem:[#allocation2 + $0x170] sm:$0xee]
        %v2475 = vld [vmem:[#allocation2 + $0x180] sm:$0xee]
        %v2476 = vld [vmem:[#allocation2 + $0x190] sm:$0xee]
        %v2477 = vld [vmem:[#allocation2 + $0x1a0] sm:$0xee]
        %v2478 = vld [vmem:[#allocation2 + $0x1b0] sm:$0xee]
        %v2479 = vld [vmem:[#allocation2 + $0x1c0] sm:$0xee]
        %v2480 = vld [vmem:[#allocation2 + $0x1d0] sm:$0xee]
        %v2481 = vld [vmem:[#allocation2 + $0x1e0] sm:$0xee]
        %v2482 = vld [vmem:[#allocation2 + $0x1f0] sm:$0xee]
        %vm2547 = vcmask 1042432
        %vm2548 = vcmask 1046532
        %vm2549 = vmor %vm2547, %vm2548
        %v2550 = vrot.slane %v2451, 5
        %v2551 = vrot.slane %v2550, 4
        %v2552 = vrot.slane %v1133, 5
        %v2553 = vsel %vm2549, %v2551, %v2552
        %v2554 = vrot.slane %v2452, 5
        %v2555 = vrot.slane %v2554, 4
        %v2556 = vrot.slane %v1134, 5
        %v2557 = vsel %vm2549, %v2555, %v2556
        %v2558 = vrot.slane %v2453, 5
        %v2559 = vrot.slane %v2558, 4
        %v2560 = vrot.slane %v1135, 5
        %v2561 = vsel %vm2549, %v2559, %v2560
        %v2562 = vrot.slane %v2454, 5
        %v2563 = vrot.slane %v2562, 4
        %v2564 = vrot.slane %v1136, 5
        %v2565 = vsel %vm2549, %v2563, %v2564
        %v2566 = vrot.slane %v2455, 5
        %v2567 = vrot.slane %v2566, 4
        %v2568 = vrot.slane %v1137, 5
        %v2569 = vsel %vm2549, %v2567, %v2568
        %v2570 = vrot.slane %v2456, 5
        %v2571 = vrot.slane %v2570, 4
        %v2572 = vrot.slane %v1138, 5
        %v2573 = vsel %vm2549, %v2571, %v2572
        %v2574 = vrot.slane %v2457, 5
        %v2575 = vrot.slane %v2574, 4
        %v2576 = vrot.slane %v1139, 5
        %v2577 = vsel %vm2549, %v2575, %v2576
        %v2578 = vrot.slane %v2458, 5
        %v2579 = vrot.slane %v2578, 4
        %v2580 = vrot.slane %v1140, 5
        %v2581 = vsel %vm2549, %v2579, %v2580
        %v2582 = vrot.slane %v2459, 5
        %v2583 = vrot.slane %v2582, 4
        %v2584 = vrot.slane %v1141, 5
        %v2585 = vsel %vm2549, %v2583, %v2584
        %v2586 = vrot.slane %v2460, 5
        %v2587 = vrot.slane %v2586, 4
        %v2588 = vrot.slane %v1142, 5
        %v2589 = vsel %vm2549, %v2587, %v2588
        %v2590 = vrot.slane %v2461, 5
        %v2591 = vrot.slane %v2590, 4
        %v2592 = vrot.slane %v1143, 5
        %v2593 = vsel %vm2549, %v2591, %v2592
        %v2594 = vrot.slane %v2462, 5
        %v2595 = vrot.slane %v2594, 4
        %v2596 = vrot.slane %v1144, 5
        %v2597 = vsel %vm2549, %v2595, %v2596
        %v2598 = vrot.slane %v2463, 5
        %v2599 = vrot.slane %v2598, 4
        %v2600 = vrot.slane %v1145, 5
        %v2601 = vsel %vm2549, %v2599, %v2600
        %v2602 = vrot.slane %v2464, 5
        %v2603 = vrot.slane %v2602, 4
        %v2604 = vrot.slane %v1146, 5
        %v2605 = vsel %vm2549, %v2603, %v2604
        %v2606 = vrot.slane %v2465, 5
        %v2607 = vrot.slane %v2606, 4
        %v2608 = vrot.slane %v1147, 5
        %v2609 = vsel %vm2549, %v2607, %v2608
        %v2610 = vrot.slane %v2466, 5
        %v2611 = vrot.slane %v2610, 4
        %v2612 = vrot.slane %v1148, 5
        %v2613 = vsel %vm2549, %v2611, %v2612
        %v2614 = vrot.slane %v2467, 5
        %v2615 = vrot.slane %v2614, 4
        %v2616 = vrot.slane %v1149, 5
        %v2617 = vsel %vm2549, %v2615, %v2616
        %v2618 = vrot.slane %v2468, 5
        %v2619 = vrot.slane %v2618, 4
        %v2620 = vrot.slane %v1150, 5
        %v2621 = vsel %vm2549, %v2619, %v2620
        %v2622 = vrot.slane %v2469, 5
        %v2623 = vrot.slane %v2622, 4
        %v2624 = vrot.slane %v1151, 5
        %v2625 = vsel %vm2549, %v2623, %v2624
        %v2626 = vrot.slane %v2470, 5
        %v2627 = vrot.slane %v2626, 4
        %v2628 = vrot.slane %v1152, 5
        %v2629 = vsel %vm2549, %v2627, %v2628
        %v2630 = vrot.slane %v2471, 5
        %v2631 = vrot.slane %v2630, 4
        %v2632 = vrot.slane %v1153, 5
        %v2633 = vsel %vm2549, %v2631, %v2632
        %v2634 = vrot.slane %v2472, 5
        %v2635 = vrot.slane %v2634, 4
        %v2636 = vrot.slane %v1154, 5
        %v2637 = vsel %vm2549, %v2635, %v2636
        %v2638 = vrot.slane %v2473, 5
        %v2639 = vrot.slane %v2638, 4
        %v2640 = vrot.slane %v1155, 5
        %v2641 = vsel %vm2549, %v2639, %v2640
        %v2642 = vrot.slane %v2474, 5
        %v2643 = vrot.slane %v2642, 4
        %v2644 = vrot.slane %v1156, 5
        %v2645 = vsel %vm2549, %v2643, %v2644
        %v2646 = vrot.slane %v2475, 5
        %v2647 = vrot.slane %v2646, 4
        %v2648 = vrot.slane %v1157, 5
        %v2649 = vsel %vm2549, %v2647, %v2648
        %v2650 = vrot.slane %v2476, 5
        %v2651 = vrot.slane %v2650, 4
        %v2652 = vrot.slane %v1158, 5
        %v2653 = vsel %vm2549, %v2651, %v2652
        %v2654 = vrot.slane %v2477, 5
        %v2655 = vrot.slane %v2654, 4
        %v2656 = vrot.slane %v1159, 5
        %v2657 = vsel %vm2549, %v2655, %v2656
        %v2658 = vrot.slane %v2478, 5
        %v2659 = vrot.slane %v2658, 4
        %v2660 = vrot.slane %v1160, 5
        %v2661 = vsel %vm2549, %v2659, %v2660
        %v2662 = vrot.slane %v2479, 5
        %v2663 = vrot.slane %v2662, 4
        %v2664 = vrot.slane %v1161, 5
        %v2665 = vsel %vm2549, %v2663, %v2664
        %v2666 = vrot.slane %v2480, 5
        %v2667 = vrot.slane %v2666, 4
        %v2668 = vrot.slane %v1162, 5
        %v2669 = vsel %vm2549, %v2667, %v2668
        %v2670 = vrot.slane %v2481, 5
        %v2671 = vrot.slane %v2670, 4
        %v2672 = vrot.slane %v1163, 5
        %v2673 = vsel %vm2549, %v2671, %v2672
        %v2674 = vrot.slane %v2482, 5
        %v2675 = vrot.slane %v2674, 4
        %v2676 = vrot.slane %v1164, 5
        %v2677 = vsel %vm2549, %v2675, %v2676
        %s2678 = scalar_lea.vmem [#allocation7], 256
        %v2679 = vld [vmem:[%s2678] sm:$0xf]
        %v2680 = vld [vmem:[%s2678 + $0x4] sm:$0xf]
        %v2681 = vld [vmem:[%s2678 + $0x8] sm:$0xf]
        %v2682 = vld [vmem:[%s2678 + $0xc] sm:$0xf]
        %v2683 = vld [vmem:[%s2678 + $0x10] sm:$0xf]
        %v2684 = vld [vmem:[%s2678 + $0x14] sm:$0xf]
        %v2685 = vld [vmem:[%s2678 + $0x18] sm:$0xf]
        %v2686 = vld [vmem:[%s2678 + $0x1c] sm:$0xf]
        %v2687 = vld [vmem:[%s2678 + $0x20] sm:$0xf]
        %v2688 = vld [vmem:[%s2678 + $0x24] sm:$0xf]
        %v2689 = vld [vmem:[%s2678 + $0x28] sm:$0xf]
        %v2690 = vld [vmem:[%s2678 + $0x2c] sm:$0xf]
        %v2691 = vld [vmem:[%s2678 + $0x30] sm:$0xf]
        %v2692 = vld [vmem:[%s2678 + $0x34] sm:$0xf]
        %v2693 = vld [vmem:[%s2678 + $0x38] sm:$0xf]
        %v2694 = vld [vmem:[%s2678 + $0x3c] sm:$0xf]
        %v2695 = vld [vmem:[%s2678 + $0x40] sm:$0xf]
        %v2696 = vld [vmem:[%s2678 + $0x44] sm:$0xf]
        %v2697 = vld [vmem:[%s2678 + $0x48] sm:$0xf]
        %v2698 = vld [vmem:[%s2678 + $0x4c] sm:$0xf]
        %v2699 = vld [vmem:[%s2678 + $0x50] sm:$0xf]
        %v2700 = vld [vmem:[%s2678 + $0x54] sm:$0xf]
        %v2701 = vld [vmem:[%s2678 + $0x58] sm:$0xf]
        %v2702 = vld [vmem:[%s2678 + $0x5c] sm:$0xf]
        %v2703 = vld [vmem:[%s2678 + $0x60] sm:$0xf]
        %v2704 = vld [vmem:[%s2678 + $0x64] sm:$0xf]
        %v2705 = vld [vmem:[%s2678 + $0x68] sm:$0xf]
        %v2706 = vld [vmem:[%s2678 + $0x6c] sm:$0xf]
        %v2707 = vld [vmem:[%s2678 + $0x70] sm:$0xf]
        %v2708 = vld [vmem:[%s2678 + $0x74] sm:$0xf]
        %v2709 = vld [vmem:[%s2678 + $0x78] sm:$0xf]
        %v2710 = vld [vmem:[%s2678 + $0x7c] sm:$0xf]
        %v2711 = vunpack.c.l.b16 %v2553
        %v2712 = vunpack.c.h.b16 %v2553
        %v2713 = vunpack.c.l.b16 %v2557
        %v2714 = vunpack.c.h.b16 %v2557
        %v2715 = vunpack.c.l.b16 %v2561
        %v2716 = vunpack.c.h.b16 %v2561
        %v2717 = vunpack.c.l.b16 %v2565
        %v2718 = vunpack.c.h.b16 %v2565
        %v2719 = vunpack.c.l.b16 %v2569
        %v2720 = vunpack.c.h.b16 %v2569
        %v2721 = vunpack.c.l.b16 %v2573
        %v2722 = vunpack.c.h.b16 %v2573
        %v2723 = vunpack.c.l.b16 %v2577
        %v2724 = vunpack.c.h.b16 %v2577
        %v2725 = vunpack.c.l.b16 %v2581
        %v2726 = vunpack.c.h.b16 %v2581
        %v2727 = vunpack.c.l.b16 %v2585
        %v2728 = vunpack.c.h.b16 %v2585
        %v2729 = vunpack.c.l.b16 %v2589
        %v2730 = vunpack.c.h.b16 %v2589
        %v2731 = vunpack.c.l.b16 %v2593
        %v2732 = vunpack.c.h.b16 %v2593
        %v2733 = vunpack.c.l.b16 %v2597
        %v2734 = vunpack.c.h.b16 %v2597
        %v2735 = vunpack.c.l.b16 %v2601
        %v2736 = vunpack.c.h.b16 %v2601
        %v2737 = vunpack.c.l.b16 %v2605
        %v2738 = vunpack.c.h.b16 %v2605
        %v2739 = vunpack.c.l.b16 %v2609
        %v2740 = vunpack.c.h.b16 %v2609
        %v2741 = vunpack.c.l.b16 %v2613
        %v2742 = vunpack.c.h.b16 %v2613
        %v2743 = vunpack.c.l.b16 %v2617
        %v2744 = vunpack.c.h.b16 %v2617
        %v2745 = vunpack.c.l.b16 %v2621
        %v2746 = vunpack.c.h.b16 %v2621
        %v2747 = vunpack.c.l.b16 %v2625
        %v2748 = vunpack.c.h.b16 %v2625
        %v2749 = vunpack.c.l.b16 %v2629
        %v2750 = vunpack.c.h.b16 %v2629
        %v2751 = vunpack.c.l.b16 %v2633
        %v2752 = vunpack.c.h.b16 %v2633
        %v2753 = vunpack.c.l.b16 %v2637
        %v2754 = vunpack.c.h.b16 %v2637
        %v2755 = vunpack.c.l.b16 %v2641
        %v2756 = vunpack.c.h.b16 %v2641
        %v2757 = vunpack.c.l.b16 %v2645
        %v2758 = vunpack.c.h.b16 %v2645
        %v2759 = vunpack.c.l.b16 %v2649
        %v2760 = vunpack.c.h.b16 %v2649
        %v2761 = vunpack.c.l.b16 %v2653
        %v2762 = vunpack.c.h.b16 %v2653
        %v2763 = vunpack.c.l.b16 %v2657
        %v2764 = vunpack.c.h.b16 %v2657
        %v2765 = vunpack.c.l.b16 %v2661
        %v2766 = vunpack.c.h.b16 %v2661
        %v2767 = vunpack.c.l.b16 %v2665
        %v2768 = vunpack.c.h.b16 %v2665
        %v2769 = vunpack.c.l.b16 %v2669
        %v2770 = vunpack.c.h.b16 %v2669
        %v2771 = vunpack.c.l.b16 %v2673
        %v2772 = vunpack.c.h.b16 %v2673
        %v2773 = vunpack.c.l.b16 %v2677
        %v2774 = vunpack.c.h.b16 %v2677
        %v2775 = vpack.c.b16 %v2713, %v2711
        %v2776 = vpack.c.b16 %v2714, %v2712
        %v2777 = vpack.c.b16 %v2717, %v2715
        %v2778 = vpack.c.b16 %v2718, %v2716
        %v2779 = vpack.c.b16 %v2721, %v2719
        %v2780 = vpack.c.b16 %v2722, %v2720
        %v2781 = vpack.c.b16 %v2725, %v2723
        %v2782 = vpack.c.b16 %v2726, %v2724
        %v2783 = vpack.c.b16 %v2729, %v2727
        %v2784 = vpack.c.b16 %v2730, %v2728
        %v2785 = vpack.c.b16 %v2733, %v2731
        %v2786 = vpack.c.b16 %v2734, %v2732
        %v2787 = vpack.c.b16 %v2737, %v2735
        %v2788 = vpack.c.b16 %v2738, %v2736
        %v2789 = vpack.c.b16 %v2741, %v2739
        %v2790 = vpack.c.b16 %v2742, %v2740
        %v2791 = vpack.c.b16 %v2745, %v2743
        %v2792 = vpack.c.b16 %v2746, %v2744
        %v2793 = vpack.c.b16 %v2749, %v2747
        %v2794 = vpack.c.b16 %v2750, %v2748
        %v2795 = vpack.c.b16 %v2753, %v2751
        %v2796 = vpack.c.b16 %v2754, %v2752
        %v2797 = vpack.c.b16 %v2757, %v2755
        %v2798 = vpack.c.b16 %v2758, %v2756
        %v2799 = vpack.c.b16 %v2761, %v2759
        %v2800 = vpack.c.b16 %v2762, %v2760
        %v2801 = vpack.c.b16 %v2765, %v2763
        %v2802 = vpack.c.b16 %v2766, %v2764
        %v2803 = vpack.c.b16 %v2769, %v2767
        %v2804 = vpack.c.b16 %v2770, %v2768
        %v2805 = vpack.c.b16 %v2773, %v2771
        %v2806 = vpack.c.b16 %v2774, %v2772
        %v2871 = vunpack.c.l.b16 %v2679
        %v2872 = vunpack.c.l.b16 %v2680
        %v2873 = vunpack.c.l.b16 %v2681
        %v2874 = vunpack.c.l.b16 %v2682
        %v2875 = vunpack.c.l.b16 %v2683
        %v2876 = vunpack.c.l.b16 %v2684
        %v2877 = vunpack.c.l.b16 %v2685
        %v2878 = vunpack.c.l.b16 %v2686
        %v2879 = vunpack.c.l.b16 %v2687
        %v2880 = vunpack.c.l.b16 %v2688
        %v2881 = vunpack.c.l.b16 %v2689
        %v2882 = vunpack.c.l.b16 %v2690
        %v2883 = vunpack.c.l.b16 %v2691
        %v2884 = vunpack.c.l.b16 %v2692
        %v2885 = vunpack.c.l.b16 %v2693
        %v2886 = vunpack.c.l.b16 %v2694
        %v2887 = vunpack.c.l.b16 %v2695
        %v2888 = vunpack.c.l.b16 %v2696
        %v2889 = vunpack.c.l.b16 %v2697
        %v2890 = vunpack.c.l.b16 %v2698
        %v2891 = vunpack.c.l.b16 %v2699
        %v2892 = vunpack.c.l.b16 %v2700
        %v2893 = vunpack.c.l.b16 %v2701
        %v2894 = vunpack.c.l.b16 %v2702
        %v2895 = vunpack.c.l.b16 %v2703
        %v2896 = vunpack.c.l.b16 %v2704
        %v2897 = vunpack.c.l.b16 %v2705
        %v2898 = vunpack.c.l.b16 %v2706
        %v2899 = vunpack.c.l.b16 %v2707
        %v2900 = vunpack.c.l.b16 %v2708
        %v2901 = vunpack.c.l.b16 %v2709
        %v2902 = vunpack.c.l.b16 %v2710
        %v2903 = vpack.c.b16 %v2872, %v2871
        %v2904 = vpack.c.b16 %v2874, %v2873
        %v2905 = vpack.c.b16 %v2876, %v2875
        %v2906 = vpack.c.b16 %v2878, %v2877
        %v2907 = vpack.c.b16 %v2880, %v2879
        %v2908 = vpack.c.b16 %v2882, %v2881
        %v2909 = vpack.c.b16 %v2884, %v2883
        %v2910 = vpack.c.b16 %v2886, %v2885
        %v2911 = vpack.c.b16 %v2888, %v2887
        %v2912 = vpack.c.b16 %v2890, %v2889
        %v2913 = vpack.c.b16 %v2892, %v2891
        %v2914 = vpack.c.b16 %v2894, %v2893
        %v2915 = vpack.c.b16 %v2896, %v2895
        %v2916 = vpack.c.b16 %v2898, %v2897
        %v2917 = vpack.c.b16 %v2900, %v2899
        %v2918 = vpack.c.b16 %v2902, %v2901
        %2935 = vmatprep.subr.bf16.mxu0 0
        %2936 = vmatpush1.bf16.msra.mxu0 %v2903
        %2937 = vmatprep.subr.bf16.mxu0 0
        %2938 = vmatpush1.bf16.msra.mxu0 %v2904
        %2939 = vmatprep.subr.bf16.mxu0 0
        %2940 = vmatpush1.bf16.msra.mxu0 %v2905
        %2941 = vmatprep.subr.bf16.mxu0 0
        %2942 = vmatpush1.bf16.msra.mxu0 %v2906
        %2943 = vmatprep.subr.bf16.mxu0 0
        %2944 = vmatpush1.bf16.msra.mxu0 %v2907
        %2945 = vmatprep.subr.bf16.mxu0 0
        %2946 = vmatpush1.bf16.msra.mxu0 %v2908
        %2947 = vmatprep.subr.bf16.mxu0 0
        %2948 = vmatpush1.bf16.msra.mxu0 %v2909
        %2949 = vmatprep.subr.bf16.mxu0 0
        %2950 = vmatpush1.bf16.msra.mxu0 %v2910
        %2951 = vmatprep.subr.bf16.mxu0 0
        %2952 = vmatpush1.bf16.msra.mxu0 %v2911
        %2953 = vmatprep.subr.bf16.mxu0 0
        %2954 = vmatpush1.bf16.msra.mxu0 %v2912
        %2955 = vmatprep.subr.bf16.mxu0 0
        %2956 = vmatpush1.bf16.msra.mxu0 %v2913
        %2957 = vmatprep.subr.bf16.mxu0 0
        %2958 = vmatpush1.bf16.msra.mxu0 %v2914
        %2959 = vmatprep.subr.bf16.mxu0 0
        %2960 = vmatpush1.bf16.msra.mxu0 %v2915
        %2961 = vmatprep.subr.bf16.mxu0 0
        %2962 = vmatpush1.bf16.msra.mxu0 %v2916
        %2963 = vmatprep.subr.bf16.mxu0 0
        %2964 = vmatpush1.bf16.msra.mxu0 %v2917
        %2965 = vmatprep.subr.bf16.mxu0 0
        %2966 = vmatpush1.bf16.msra.mxu0 %v2918
        %2967 = vmatprep.mubr.bf16.mxu0 %v2776
        %2968 = vmatmul.mubr.bf16.gmra.mrb[0].mxu0 %v2775
        %v2969 = vpop.f32.mrb[0].mxu0
        %v2970 = vadd.f32 0.0, %v2969
        %v2971 = vpop.f32.mrb[0].mxu0
        %v2972 = vpop.f32.mrb[0].mxu0
        %v2973 = vadd.f32 0.0, %v2972
        %v2974 = vpop.f32.mrb[0].mxu0
        %2975 = vmatprep.mubr.bf16.mxu0 %v2778
        %2976 = vmatmul.mubr.bf16.gmra.mrb[0].mxu0 %v2777
        %v2977 = vpop.f32.mrb[0].mxu0
        %v2978 = vadd.f32 0.0, %v2977
        %v2979 = vpop.f32.mrb[0].mxu0
        %v2980 = vpop.f32.mrb[0].mxu0
        %v2981 = vadd.f32 0.0, %v2980
        %v2982 = vpop.f32.mrb[0].mxu0
        %2983 = vmatprep.mubr.bf16.mxu0 %v2780
        %2984 = vmatmul.mubr.bf16.gmra.mrb[0].mxu0 %v2779
        %v2985 = vpop.f32.mrb[0].mxu0
        %v2986 = vadd.f32 0.0, %v2985
        %v2987 = vpop.f32.mrb[0].mxu0
        %v2988 = vpop.f32.mrb[0].mxu0
        %v2989 = vadd.f32 0.0, %v2988
        %v2990 = vpop.f32.mrb[0].mxu0
        %2991 = vmatprep.mubr.bf16.mxu0 %v2782
        %2992 = vmatmul.mubr.bf16.gmra.mrb[0].mxu0 %v2781
        %v2993 = vpop.f32.mrb[0].mxu0
        %v2994 = vadd.f32 0.0, %v2993
        %v2995 = vpop.f32.mrb[0].mxu0
        %v2996 = vpop.f32.mrb[0].mxu0
        %v2997 = vadd.f32 0.0, %v2996
        %v2998 = vpop.f32.mrb[0].mxu0
        %2999 = vmatprep.mubr.bf16.mxu0 %v2784
        %3000 = vmatmul.mubr.bf16.gmra.mrb[0].mxu0 %v2783
        %v3001 = vpop.f32.mrb[0].mxu0
        %v3002 = vadd.f32 0.0, %v3001
        %v3003 = vpop.f32.mrb[0].mxu0
        %v3004 = vpop.f32.mrb[0].mxu0
        %v3005 = vadd.f32 0.0, %v3004
        %v3006 = vpop.f32.mrb[0].mxu0
        %3007 = vmatprep.mubr.bf16.mxu0 %v2786
        %3008 = vmatmul.mubr.bf16.gmra.mrb[0].mxu0 %v2785
        %v3009 = vpop.f32.mrb[0].mxu0
        %v3010 = vadd.f32 0.0, %v3009
        %v3011 = vpop.f32.mrb[0].mxu0
        %v3012 = vpop.f32.mrb[0].mxu0
        %v3013 = vadd.f32 0.0, %v3012
        %v3014 = vpop.f32.mrb[0].mxu0
        %3015 = vmatprep.mubr.bf16.mxu0 %v2788
        %3016 = vmatmul.mubr.bf16.gmra.mrb[0].mxu0 %v2787
        %v3017 = vpop.f32.mrb[0].mxu0
        %v3018 = vadd.f32 0.0, %v3017
        %v3019 = vpop.f32.mrb[0].mxu0
        %v3020 = vpop.f32.mrb[0].mxu0
        %v3021 = vadd.f32 0.0, %v3020
        %v3022 = vpop.f32.mrb[0].mxu0
        %3023 = vmatprep.mubr.bf16.mxu0 %v2790
        %3024 = vmatmul.mubr.bf16.gmra.mrb[0].mxu0 %v2789
        %v3025 = vpop.f32.mrb[0].mxu0
        %v3026 = vadd.f32 0.0, %v3025
        %v3027 = vpop.f32.mrb[0].mxu0
        %v3028 = vpop.f32.mrb[0].mxu0
        %v3029 = vadd.f32 0.0, %v3028
        %v3030 = vpop.f32.mrb[0].mxu0
        %3031 = vmatprep.mubr.bf16.mxu0 %v2792
        %3032 = vmatmul.mubr.bf16.gmra.mrb[0].mxu0 %v2791
        %v3033 = vpop.f32.mrb[0].mxu0
        %v3034 = vadd.f32 0.0, %v3033
        %v3035 = vpop.f32.mrb[0].mxu0
        %v3036 = vpop.f32.mrb[0].mxu0
        %v3037 = vadd.f32 0.0, %v3036
        %v3038 = vpop.f32.mrb[0].mxu0
        %3039 = vmatprep.mubr.bf16.mxu0 %v2794
        %3040 = vmatmul.mubr.bf16.gmra.mrb[0].mxu0 %v2793
        %v3041 = vpop.f32.mrb[0].mxu0
        %v3042 = vadd.f32 0.0, %v3041
        %v3043 = vpop.f32.mrb[0].mxu0
        %v3044 = vpop.f32.mrb[0].mxu0
        %v3045 = vadd.f32 0.0, %v3044
        %v3046 = vpop.f32.mrb[0].mxu0
        %3047 = vmatprep.mubr.bf16.mxu0 %v2796
        %3048 = vmatmul.mubr.bf16.gmra.mrb[0].mxu0 %v2795
        %v3049 = vpop.f32.mrb[0].mxu0
        %v3050 = vadd.f32 0.0, %v3049
        %v3051 = vpop.f32.mrb[0].mxu0
        %v3052 = vpop.f32.mrb[0].mxu0
        %v3053 = vadd.f32 0.0, %v3052
        %v3054 = vpop.f32.mrb[0].mxu0
        %3055 = vmatprep.mubr.bf16.mxu0 %v2798
        %3056 = vmatmul.mubr.bf16.gmra.mrb[0].mxu0 %v2797
        %v3057 = vpop.f32.mrb[0].mxu0
        %v3058 = vadd.f32 0.0, %v3057
        %v3059 = vpop.f32.mrb[0].mxu0
        %v3060 = vpop.f32.mrb[0].mxu0
        %v3061 = vadd.f32 0.0, %v3060
        %v3062 = vpop.f32.mrb[0].mxu0
        %3063 = vmatprep.mubr.bf16.mxu0 %v2800
        %3064 = vmatmul.mubr.bf16.gmra.mrb[0].mxu0 %v2799
        %v3065 = vpop.f32.mrb[0].mxu0
        %v3066 = vadd.f32 0.0, %v3065
        %v3067 = vpop.f32.mrb[0].mxu0
        %v3068 = vpop.f32.mrb[0].mxu0
        %v3069 = vadd.f32 0.0, %v3068
        %v3070 = vpop.f32.mrb[0].mxu0
        %3071 = vmatprep.mubr.bf16.mxu0 %v2802
        %3072 = vmatmul.mubr.bf16.gmra.mrb[0].mxu0 %v2801
        %v3073 = vpop.f32.mrb[0].mxu0
        %v3074 = vadd.f32 0.0, %v3073
        %v3075 = vpop.f32.mrb[0].mxu0
        %v3076 = vpop.f32.mrb[0].mxu0
        %v3077 = vadd.f32 0.0, %v3076
        %v3078 = vpop.f32.mrb[0].mxu0
        %3079 = vmatprep.mubr.bf16.mxu0 %v2804
        %3080 = vmatmul.mubr.bf16.gmra.mrb[0].mxu0 %v2803
        %v3081 = vpop.f32.mrb[0].mxu0
        %v3082 = vadd.f32 0.0, %v3081
        %v3083 = vpop.f32.mrb[0].mxu0
        %v3084 = vpop.f32.mrb[0].mxu0
        %v3085 = vadd.f32 0.0, %v3084
        %v3086 = vpop.f32.mrb[0].mxu0
        %3087 = vmatprep.mubr.bf16.mxu0 %v2806
        %3088 = vmatmul.mubr.bf16.gmra.mrb[0].mxu0 %v2805
        %v3089 = vpop.f32.mrb[0].mxu0
        %v3090 = vadd.f32 0.0, %v3089
        %v3091 = vpop.f32.mrb[0].mxu0
        %v3092 = vpop.f32.mrb[0].mxu0
        %v3093 = vadd.f32 0.0, %v3092
        %v3094 = vpop.f32.mrb[0].mxu0
        %3095 = vdwg.mxu0
        %v3096 = vadd.f32 %v2325, %v2970
        %v3097 = vadd.f32 %v2328, %v2973
        %v3098 = vadd.f32 %v2333, %v2978
        %v3099 = vadd.f32 %v2336, %v2981
        %v3100 = vadd.f32 %v2341, %v2986
        %v3101 = vadd.f32 %v2344, %v2989
        %v3102 = vadd.f32 %v2349, %v2994
        %v3103 = vadd.f32 %v2352, %v2997
        %v3104 = vadd.f32 %v2357, %v3002
        %v3105 = vadd.f32 %v2360, %v3005
        %v3106 = vadd.f32 %v2365, %v3010
        %v3107 = vadd.f32 %v2368, %v3013
        %v3108 = vadd.f32 %v2373, %v3018
        %v3109 = vadd.f32 %v2376, %v3021
        %v3110 = vadd.f32 %v2381, %v3026
        %v3111 = vadd.f32 %v2384, %v3029
        %v3112 = vadd.f32 %v2389, %v3034
        %v3113 = vadd.f32 %v2392, %v3037
        %v3114 = vadd.f32 %v2397, %v3042
        %v3115 = vadd.f32 %v2400, %v3045
        %v3116 = vadd.f32 %v2405, %v3050
        %v3117 = vadd.f32 %v2408, %v3053
        %v3118 = vadd.f32 %v2413, %v3058
        %v3119 = vadd.f32 %v2416, %v3061
        %v3120 = vadd.f32 %v2421, %v3066
        %v3121 = vadd.f32 %v2424, %v3069
        %v3122 = vadd.f32 %v2429, %v3074
        %v3123 = vadd.f32 %v2432, %v3077
        %v3124 = vadd.f32 %v2437, %v3082
        %v3125 = vadd.f32 %v2440, %v3085
        %v3126 = vadd.f32 %v2445, %v3090
        %v3127 = vadd.f32 %v2448, %v3093
        %v3128 = vld [vmem:[%s2] sm:$0x1]
        %v3130 = vlaneseq
        %v3131 = vshrl.u32 %v3130, 7
        %v3132 = vsub.s32 0, %v3131
        %v3133 = vrot.slane %v3128, %v3132
        %v3135 = vadd.f32 %v3096, %v3133
        %v3136 = vadd.f32 %v3097, %v3133
        %v3137 = vadd.f32 %v3098, %v3133
        %v3138 = vadd.f32 %v3099, %v3133
        %v3139 = vadd.f32 %v3100, %v3133
        %v3140 = vadd.f32 %v3101, %v3133
        %v3141 = vadd.f32 %v3102, %v3133
        %v3142 = vadd.f32 %v3103, %v3133
        %v3143 = vadd.f32 %v3104, %v3133
        %v3144 = vadd.f32 %v3105, %v3133
        %v3145 = vadd.f32 %v3106, %v3133
        %v3146 = vadd.f32 %v3107, %v3133
        %v3147 = vadd.f32 %v3108, %v3133
        %v3148 = vadd.f32 %v3109, %v3133
        %v3149 = vadd.f32 %v3110, %v3133
        %v3150 = vadd.f32 %v3111, %v3133
        %v3151 = vadd.f32 %v3112, %v3133
        %v3152 = vadd.f32 %v3113, %v3133
        %v3153 = vadd.f32 %v3114, %v3133
        %v3154 = vadd.f32 %v3115, %v3133
        %v3155 = vadd.f32 %v3116, %v3133
        %v3156 = vadd.f32 %v3117, %v3133
        %v3157 = vadd.f32 %v3118, %v3133
        %v3158 = vadd.f32 %v3119, %v3133
        %v3159 = vadd.f32 %v3120, %v3133
        %v3160 = vadd.f32 %v3121, %v3133
        %v3161 = vadd.f32 %v3122, %v3133
        %v3162 = vadd.f32 %v3123, %v3133
        %v3163 = vadd.f32 %v3124, %v3133
        %v3164 = vadd.f32 %v3125, %v3133
        %v3165 = vadd.f32 %v3126, %v3133
        %v3166 = vadd.f32 %v3127, %v3133
        %v3167 = vmax.f32 %v3135, 0.0
        %v3168 = vmax.f32 %v3136, 0.0
        %v3169 = vmax.f32 %v3137, 0.0
        %v3170 = vmax.f32 %v3138, 0.0
        %v3171 = vmax.f32 %v3139, 0.0
        %v3172 = vmax.f32 %v3140, 0.0
        %v3173 = vmax.f32 %v3141, 0.0
        %v3174 = vmax.f32 %v3142, 0.0
        %v3175 = vmax.f32 %v3143, 0.0
        %v3176 = vmax.f32 %v3144, 0.0
        %v3177 = vmax.f32 %v3145, 0.0
        %v3178 = vmax.f32 %v3146, 0.0
        %v3179 = vmax.f32 %v3147, 0.0
        %v3180 = vmax.f32 %v3148, 0.0
        %v3181 = vmax.f32 %v3149, 0.0
        %v3182 = vmax.f32 %v3150, 0.0
        %v3183 = vmax.f32 %v3151, 0.0
        %v3184 = vmax.f32 %v3152, 0.0
        %v3185 = vmax.f32 %v3153, 0.0
        %v3186 = vmax.f32 %v3154, 0.0
        %v3187 = vmax.f32 %v3155, 0.0
        %v3188 = vmax.f32 %v3156, 0.0
        %v3189 = vmax.f32 %v3157, 0.0
        %v3190 = vmax.f32 %v3158, 0.0
        %v3191 = vmax.f32 %v3159, 0.0
        %v3192 = vmax.f32 %v3160, 0.0
        %v3193 = vmax.f32 %v3161, 0.0
        %v3194 = vmax.f32 %v3162, 0.0
        %v3195 = vmax.f32 %v3163, 0.0
        %v3196 = vmax.f32 %v3164, 0.0
        %v3197 = vmax.f32 %v3165, 0.0
        %v3198 = vmax.f32 %v3166, 0.0
        %v3199 = vld [vmem:[#allocation3] sm:$0x1]
        %v3200 = vsel %vm318, 0, %v3199
        %3201 = vst [vmem:[#allocation3] sm:$0x1] %v3200
        %v3202 = vld [vmem:[#allocation3 + $0x8] sm:$0x1]
        %v3203 = vsel %vm318, 0, %v3202
        %3204 = vst [vmem:[#allocation3 + $0x8] sm:$0x1] %v3203
        %v3205 = vld [vmem:[#allocation3 + $0x10] sm:$0x1]
        %v3206 = vsel %vm318, 0, %v3205
        %3207 = vst [vmem:[#allocation3 + $0x10] sm:$0x1] %v3206
        %v3208 = vld [vmem:[#allocation3 + $0x18] sm:$0x1]
        %v3209 = vsel %vm318, 0, %v3208
        %3210 = vst [vmem:[#allocation3 + $0x18] sm:$0x1] %v3209
        %v3211 = vld [vmem:[#allocation3 + $0x20] sm:$0x1]
        %v3212 = vsel %vm318, 0, %v3211
        %3213 = vst [vmem:[#allocation3 + $0x20] sm:$0x1] %v3212
        %v3214 = vld [vmem:[#allocation3 + $0x28] sm:$0x1]
        %v3215 = vsel %vm318, 0, %v3214
        %3216 = vst [vmem:[#allocation3 + $0x28] sm:$0x1] %v3215
        %v3217 = vld [vmem:[#allocation3 + $0x30] sm:$0x1]
        %v3218 = vsel %vm318, 0, %v3217
        %3219 = vst [vmem:[#allocation3 + $0x30] sm:$0x1] %v3218
        %v3220 = vld [vmem:[#allocation3 + $0x38] sm:$0x1]
        %v3221 = vsel %vm318, 0, %v3220
        %3222 = vst [vmem:[#allocation3 + $0x38] sm:$0x1] %v3221
        %v3223 = vld [vmem:[#allocation3 + $0x40] sm:$0x1]
        %v3224 = vsel %vm318, 0, %v3223
        %3225 = vst [vmem:[#allocation3 + $0x40] sm:$0x1] %v3224
        %v3226 = vld [vmem:[#allocation3 + $0x48] sm:$0x1]
        %v3227 = vsel %vm318, 0, %v3226
        %3228 = vst [vmem:[#allocation3 + $0x48] sm:$0x1] %v3227
        %v3229 = vld [vmem:[#allocation3 + $0x50] sm:$0x1]
        %v3230 = vsel %vm318, 0, %v3229
        %3231 = vst [vmem:[#allocation3 + $0x50] sm:$0x1] %v3230
        %v3232 = vld [vmem:[#allocation3 + $0x58] sm:$0x1]
        %v3233 = vsel %vm318, 0, %v3232
        %3234 = vst [vmem:[#allocation3 + $0x58] sm:$0x1] %v3233
        %v3235 = vld [vmem:[#allocation3 + $0x60] sm:$0x1]
        %v3236 = vsel %vm318, 0, %v3235
        %3237 = vst [vmem:[#allocation3 + $0x60] sm:$0x1] %v3236
        %v3238 = vld [vmem:[#allocation3 + $0x68] sm:$0x1]
        %v3239 = vsel %vm318, 0, %v3238
        %3240 = vst [vmem:[#allocation3 + $0x68] sm:$0x1] %v3239
        %v3241 = vld [vmem:[#allocation3 + $0x70] sm:$0x1]
        %v3242 = vsel %vm318, 0, %v3241
        %3243 = vst [vmem:[#allocation3 + $0x70] sm:$0x1] %v3242
        %v3244 = vld [vmem:[#allocation3 + $0x78] sm:$0x1]
        %v3245 = vsel %vm318, 0, %v3244
        %3246 = vst [vmem:[#allocation3 + $0x78] sm:$0x1] %v3245
        %v3247 = vld [vmem:[#allocation3 + $0x80] sm:$0x1]
        %v3248 = vsel %vm318, 0, %v3247
        %3249 = vst [vmem:[#allocation3 + $0x80] sm:$0x1] %v3248
        %v3250 = vld [vmem:[#allocation3 + $0x88] sm:$0x1]
        %v3251 = vsel %vm318, 0, %v3250
        %3252 = vst [vmem:[#allocation3 + $0x88] sm:$0x1] %v3251
        %v3253 = vld [vmem:[#allocation3 + $0x90] sm:$0x1]
        %v3254 = vsel %vm318, 0, %v3253
        %3255 = vst [vmem:[#allocation3 + $0x90] sm:$0x1] %v3254
        %v3256 = vld [vmem:[#allocation3 + $0x98] sm:$0x1]
        %v3257 = vsel %vm318, 0, %v3256
        %3258 = vst [vmem:[#allocation3 + $0x98] sm:$0x1] %v3257
        %v3259 = vld [vmem:[#allocation3 + $0xa0] sm:$0x1]
        %v3260 = vsel %vm318, 0, %v3259
        %3261 = vst [vmem:[#allocation3 + $0xa0] sm:$0x1] %v3260
        %v3262 = vld [vmem:[#allocation3 + $0xa8] sm:$0x1]
        %v3263 = vsel %vm318, 0, %v3262
        %3264 = vst [vmem:[#allocation3 + $0xa8] sm:$0x1] %v3263
        %v3265 = vld [vmem:[#allocation3 + $0xb0] sm:$0x1]
        %v3266 = vsel %vm318, 0, %v3265
        %3267 = vst [vmem:[#allocation3 + $0xb0] sm:$0x1] %v3266
        %v3268 = vld [vmem:[#allocation3 + $0xb8] sm:$0x1]
        %v3269 = vsel %vm318, 0, %v3268
        %3270 = vst [vmem:[#allocation3 + $0xb8] sm:$0x1] %v3269
        %v3271 = vld [vmem:[#allocation3 + $0xc0] sm:$0x1]
        %v3272 = vsel %vm318, 0, %v3271
        %3273 = vst [vmem:[#allocation3 + $0xc0] sm:$0x1] %v3272
        %v3274 = vld [vmem:[#allocation3 + $0xc8] sm:$0x1]
        %v3275 = vsel %vm318, 0, %v3274
        %3276 = vst [vmem:[#allocation3 + $0xc8] sm:$0x1] %v3275
        %v3277 = vld [vmem:[#allocation3 + $0xd0] sm:$0x1]
        %v3278 = vsel %vm318, 0, %v3277
        %3279 = vst [vmem:[#allocation3 + $0xd0] sm:$0x1] %v3278
        %v3280 = vld [vmem:[#allocation3 + $0xd8] sm:$0x1]
        %v3281 = vsel %vm318, 0, %v3280
        %3282 = vst [vmem:[#allocation3 + $0xd8] sm:$0x1] %v3281
        %v3283 = vld [vmem:[#allocation3 + $0xe0] sm:$0x1]
        %v3284 = vsel %vm318, 0, %v3283
        %3285 = vst [vmem:[#allocation3 + $0xe0] sm:$0x1] %v3284
        %v3286 = vld [vmem:[#allocation3 + $0xe8] sm:$0x1]
        %v3287 = vsel %vm318, 0, %v3286
        %3288 = vst [vmem:[#allocation3 + $0xe8] sm:$0x1] %v3287
        %v3289 = vld [vmem:[#allocation3 + $0xf0] sm:$0x1]
        %v3290 = vsel %vm318, 0, %v3289
        %3291 = vst [vmem:[#allocation3 + $0xf0] sm:$0x1] %v3290
        %v3292 = vld [vmem:[#allocation3 + $0xf8] sm:$0x1]
        %v3293 = vsel %vm318, 0, %v3292
        %3294 = vst [vmem:[#allocation3 + $0xf8] sm:$0x1] %v3293
        %v3295 = vld [vmem:[#allocation3 + $0x4] sm:$0x1]
        %v3296 = vsel %vm420, 0, %v3295
        %3297 = vst [vmem:[#allocation3 + $0x4] sm:$0x1] %v3296
        %v3298 = vld [vmem:[#allocation3 + $0xc] sm:$0x1]
        %v3299 = vsel %vm420, 0, %v3298
        %3300 = vst [vmem:[#allocation3 + $0xc] sm:$0x1] %v3299
        %v3301 = vld [vmem:[#allocation3 + $0x14] sm:$0x1]
        %v3302 = vsel %vm420, 0, %v3301
        %3303 = vst [vmem:[#allocation3 + $0x14] sm:$0x1] %v3302
        %v3304 = vld [vmem:[#allocation3 + $0x1c] sm:$0x1]
        %v3305 = vsel %vm420, 0, %v3304
        %3306 = vst [vmem:[#allocation3 + $0x1c] sm:$0x1] %v3305
        %v3307 = vld [vmem:[#allocation3 + $0x24] sm:$0x1]
        %v3308 = vsel %vm420, 0, %v3307
        %3309 = vst [vmem:[#allocation3 + $0x24] sm:$0x1] %v3308
        %v3310 = vld [vmem:[#allocation3 + $0x2c] sm:$0x1]
        %v3311 = vsel %vm420, 0, %v3310
        %3312 = vst [vmem:[#allocation3 + $0x2c] sm:$0x1] %v3311
        %v3313 = vld [vmem:[#allocation3 + $0x34] sm:$0x1]
        %v3314 = vsel %vm420, 0, %v3313
        %3315 = vst [vmem:[#allocation3 + $0x34] sm:$0x1] %v3314
        %v3316 = vld [vmem:[#allocation3 + $0x3c] sm:$0x1]
        %v3317 = vsel %vm420, 0, %v3316
        %3318 = vst [vmem:[#allocation3 + $0x3c] sm:$0x1] %v3317
        %v3319 = vld [vmem:[#allocation3 + $0x44] sm:$0x1]
        %v3320 = vsel %vm420, 0, %v3319
        %3321 = vst [vmem:[#allocation3 + $0x44] sm:$0x1] %v3320
        %v3322 = vld [vmem:[#allocation3 + $0x4c] sm:$0x1]
        %v3323 = vsel %vm420, 0, %v3322
        %3324 = vst [vmem:[#allocation3 + $0x4c] sm:$0x1] %v3323
        %v3325 = vld [vmem:[#allocation3 + $0x54] sm:$0x1]
        %v3326 = vsel %vm420, 0, %v3325
        %3327 = vst [vmem:[#allocation3 + $0x54] sm:$0x1] %v3326
        %v3328 = vld [vmem:[#allocation3 + $0x5c] sm:$0x1]
        %v3329 = vsel %vm420, 0, %v3328
        %3330 = vst [vmem:[#allocation3 + $0x5c] sm:$0x1] %v3329
        %v3331 = vld [vmem:[#allocation3 + $0x64] sm:$0x1]
        %v3332 = vsel %vm420, 0, %v3331
        %3333 = vst [vmem:[#allocation3 + $0x64] sm:$0x1] %v3332
        %v3334 = vld [vmem:[#allocation3 + $0x6c] sm:$0x1]
        %v3335 = vsel %vm420, 0, %v3334
        %3336 = vst [vmem:[#allocation3 + $0x6c] sm:$0x1] %v3335
        %v3337 = vld [vmem:[#allocation3 + $0x74] sm:$0x1]
        %v3338 = vsel %vm420, 0, %v3337
        %3339 = vst [vmem:[#allocation3 + $0x74] sm:$0x1] %v3338
        %v3340 = vld [vmem:[#allocation3 + $0x7c] sm:$0x1]
        %v3341 = vsel %vm420, 0, %v3340
        %3342 = vst [vmem:[#allocation3 + $0x7c] sm:$0x1] %v3341
        %v3343 = vld [vmem:[#allocation3 + $0x84] sm:$0x1]
        %v3344 = vsel %vm420, 0, %v3343
        %3345 = vst [vmem:[#allocation3 + $0x84] sm:$0x1] %v3344
        %v3346 = vld [vmem:[#allocation3 + $0x8c] sm:$0x1]
        %v3347 = vsel %vm420, 0, %v3346
        %3348 = vst [vmem:[#allocation3 + $0x8c] sm:$0x1] %v3347
        %v3349 = vld [vmem:[#allocation3 + $0x94] sm:$0x1]
        %v3350 = vsel %vm420, 0, %v3349
        %3351 = vst [vmem:[#allocation3 + $0x94] sm:$0x1] %v3350
        %v3352 = vld [vmem:[#allocation3 + $0x9c] sm:$0x1]
        %v3353 = vsel %vm420, 0, %v3352
        %3354 = vst [vmem:[#allocation3 + $0x9c] sm:$0x1] %v3353
        %v3355 = vld [vmem:[#allocation3 + $0xa4] sm:$0x1]
        %v3356 = vsel %vm420, 0, %v3355
        %3357 = vst [vmem:[#allocation3 + $0xa4] sm:$0x1] %v3356
        %v3358 = vld [vmem:[#allocation3 + $0xac] sm:$0x1]
        %v3359 = vsel %vm420, 0, %v3358
        %3360 = vst [vmem:[#allocation3 + $0xac] sm:$0x1] %v3359
        %v3361 = vld [vmem:[#allocation3 + $0xb4] sm:$0x1]
        %v3362 = vsel %vm420, 0, %v3361
        %3363 = vst [vmem:[#allocation3 + $0xb4] sm:$0x1] %v3362
        %v3364 = vld [vmem:[#allocation3 + $0xbc] sm:$0x1]
        %v3365 = vsel %vm420, 0, %v3364
        %3366 = vst [vmem:[#allocation3 + $0xbc] sm:$0x1] %v3365
        %v3367 = vld [vmem:[#allocation3 + $0xc4] sm:$0x1]
        %v3368 = vsel %vm420, 0, %v3367
        %3369 = vst [vmem:[#allocation3 + $0xc4] sm:$0x1] %v3368
        %v3370 = vld [vmem:[#allocation3 + $0xcc] sm:$0x1]
        %v3371 = vsel %vm420, 0, %v3370
        %3372 = vst [vmem:[#allocation3 + $0xcc] sm:$0x1] %v3371
        %v3373 = vld [vmem:[#allocation3 + $0xd4] sm:$0x1]
        %v3374 = vsel %vm420, 0, %v3373
        %3375 = vst [vmem:[#allocation3 + $0xd4] sm:$0x1] %v3374
        %v3376 = vld [vmem:[#allocation3 + $0xdc] sm:$0x1]
        %v3377 = vsel %vm420, 0, %v3376
        %3378 = vst [vmem:[#allocation3 + $0xdc] sm:$0x1] %v3377
        %v3379 = vld [vmem:[#allocation3 + $0xe4] sm:$0x1]
        %v3380 = vsel %vm420, 0, %v3379
        %3381 = vst [vmem:[#allocation3 + $0xe4] sm:$0x1] %v3380
        %v3382 = vld [vmem:[#allocation3 + $0xec] sm:$0x1]
        %v3383 = vsel %vm420, 0, %v3382
        %3384 = vst [vmem:[#allocation3 + $0xec] sm:$0x1] %v3383
        %v3385 = vld [vmem:[#allocation3 + $0xf4] sm:$0x1]
        %v3386 = vsel %vm420, 0, %v3385
        %3387 = vst [vmem:[#allocation3 + $0xf4] sm:$0x1] %v3386
        %v3388 = vld [vmem:[#allocation3 + $0xfc] sm:$0x1]
        %v3389 = vsel %vm420, 0, %v3388
        %3390 = vst [vmem:[#allocation3 + $0xfc] sm:$0x1] %v3389
        %v3391 = vpack.c.bf16 %v3167, %v3167
        %v3392 = vpack.c.bf16 %v3168, %v3168
        %v3393 = vpack.c.bf16 %v3169, %v3169
        %v3394 = vpack.c.bf16 %v3170, %v3170
        %v3395 = vpack.c.bf16 %v3171, %v3171
        %v3396 = vpack.c.bf16 %v3172, %v3172
        %v3397 = vpack.c.bf16 %v3173, %v3173
        %v3398 = vpack.c.bf16 %v3174, %v3174
        %v3399 = vpack.c.bf16 %v3175, %v3175
        %v3400 = vpack.c.bf16 %v3176, %v3176
        %v3401 = vpack.c.bf16 %v3177, %v3177
        %v3402 = vpack.c.bf16 %v3178, %v3178
        %v3403 = vpack.c.bf16 %v3179, %v3179
        %v3404 = vpack.c.bf16 %v3180, %v3180
        %v3405 = vpack.c.bf16 %v3181, %v3181
        %v3406 = vpack.c.bf16 %v3182, %v3182
        %v3407 = vpack.c.bf16 %v3183, %v3183
        %v3408 = vpack.c.bf16 %v3184, %v3184
        %v3409 = vpack.c.bf16 %v3185, %v3185
        %v3410 = vpack.c.bf16 %v3186, %v3186
        %v3411 = vpack.c.bf16 %v3187, %v3187
        %v3412 = vpack.c.bf16 %v3188, %v3188
        %v3413 = vpack.c.bf16 %v3189, %v3189
        %v3414 = vpack.c.bf16 %v3190, %v3190
        %v3415 = vpack.c.bf16 %v3191, %v3191
        %v3416 = vpack.c.bf16 %v3192, %v3192
        %v3417 = vpack.c.bf16 %v3193, %v3193
        %v3418 = vpack.c.bf16 %v3194, %v3194
        %v3419 = vpack.c.bf16 %v3195, %v3195
        %v3420 = vpack.c.bf16 %v3196, %v3196
        %v3421 = vpack.c.bf16 %v3197, %v3197
        %v3422 = vpack.c.bf16 %v3198, %v3198
        %v3455 = vunpack.c.l.b16 %v3391
        %v3456 = vunpack.c.l.b16 %v3392
        %v3457 = vunpack.c.l.b16 %v3393
        %v3458 = vunpack.c.l.b16 %v3394
        %v3459 = vunpack.c.l.b16 %v3395
        %v3460 = vunpack.c.l.b16 %v3396
        %v3461 = vunpack.c.l.b16 %v3397
        %v3462 = vunpack.c.l.b16 %v3398
        %v3463 = vunpack.c.l.b16 %v3399
        %v3464 = vunpack.c.l.b16 %v3400
        %v3465 = vunpack.c.l.b16 %v3401
        %v3466 = vunpack.c.l.b16 %v3402
        %v3467 = vunpack.c.l.b16 %v3403
        %v3468 = vunpack.c.l.b16 %v3404
        %v3469 = vunpack.c.l.b16 %v3405
        %v3470 = vunpack.c.l.b16 %v3406
        %v3471 = vunpack.c.l.b16 %v3407
        %v3472 = vunpack.c.l.b16 %v3408
        %v3473 = vunpack.c.l.b16 %v3409
        %v3474 = vunpack.c.l.b16 %v3410
        %v3475 = vunpack.c.l.b16 %v3411
        %v3476 = vunpack.c.l.b16 %v3412
        %v3477 = vunpack.c.l.b16 %v3413
        %v3478 = vunpack.c.l.b16 %v3414
        %v3479 = vunpack.c.l.b16 %v3415
        %v3480 = vunpack.c.l.b16 %v3416
        %v3481 = vunpack.c.l.b16 %v3417
        %v3482 = vunpack.c.l.b16 %v3418
        %v3483 = vunpack.c.l.b16 %v3419
        %v3484 = vunpack.c.l.b16 %v3420
        %v3485 = vunpack.c.l.b16 %v3421
        %v3486 = vunpack.c.l.b16 %v3422
        %v3487 = vpack.c.b16 %v3455, %v3455
        %v3488 = vpack.c.b16 %v3456, %v3456
        %v3489 = vpack.c.b16 %v3457, %v3457
        %v3490 = vpack.c.b16 %v3458, %v3458
        %v3491 = vpack.c.b16 %v3459, %v3459
        %v3492 = vpack.c.b16 %v3460, %v3460
        %v3493 = vpack.c.b16 %v3461, %v3461
        %v3494 = vpack.c.b16 %v3462, %v3462
        %v3495 = vpack.c.b16 %v3463, %v3463
        %v3496 = vpack.c.b16 %v3464, %v3464
        %v3497 = vpack.c.b16 %v3465, %v3465
        %v3498 = vpack.c.b16 %v3466, %v3466
        %v3499 = vpack.c.b16 %v3467, %v3467
        %v3500 = vpack.c.b16 %v3468, %v3468
        %v3501 = vpack.c.b16 %v3469, %v3469
        %v3502 = vpack.c.b16 %v3470, %v3470
        %v3503 = vpack.c.b16 %v3471, %v3471
        %v3504 = vpack.c.b16 %v3472, %v3472
        %v3505 = vpack.c.b16 %v3473, %v3473
        %v3506 = vpack.c.b16 %v3474, %v3474
        %v3507 = vpack.c.b16 %v3475, %v3475
        %v3508 = vpack.c.b16 %v3476, %v3476
        %v3509 = vpack.c.b16 %v3477, %v3477
        %v3510 = vpack.c.b16 %v3478, %v3478
        %v3511 = vpack.c.b16 %v3479, %v3479
        %v3512 = vpack.c.b16 %v3480, %v3480
        %v3513 = vpack.c.b16 %v3481, %v3481
        %v3514 = vpack.c.b16 %v3482, %v3482
        %v3515 = vpack.c.b16 %v3483, %v3483
        %v3516 = vpack.c.b16 %v3484, %v3484
        %v3517 = vpack.c.b16 %v3485, %v3485
        %v3518 = vpack.c.b16 %v3486, %v3486
        %v3520 = vshrl.u32 %v3487, 16
        %v3522 = vrot.slane %v3520, 7
        %v3523 = vshll.u32 %v3487, 16
        %v3525 = vor.u32 %v3522, %v3523
        %v3526 = vrot.slane %v3522, 4
        %v3528 = vshrl.u32 %v3488, 16
        %v3530 = vrot.slane %v3528, 7
        %v3531 = vshll.u32 %v3488, 16
        %v3533 = vor.u32 %v3530, %v3531
        %v3534 = vrot.slane %v3530, 4
        %v3536 = vshrl.u32 %v3489, 16
        %v3538 = vrot.slane %v3536, 7
        %v3539 = vshll.u32 %v3489, 16
        %v3541 = vor.u32 %v3538, %v3539
        %v3542 = vrot.slane %v3538, 4
        %v3544 = vshrl.u32 %v3490, 16
        %v3546 = vrot.slane %v3544, 7
        %v3547 = vshll.u32 %v3490, 16
        %v3549 = vor.u32 %v3546, %v3547
        %v3550 = vrot.slane %v3546, 4
        %v3552 = vshrl.u32 %v3491, 16
        %v3554 = vrot.slane %v3552, 7
        %v3555 = vshll.u32 %v3491, 16
        %v3557 = vor.u32 %v3554, %v3555
        %v3558 = vrot.slane %v3554, 4
        %v3560 = vshrl.u32 %v3492, 16
        %v3562 = vrot.slane %v3560, 7
        %v3563 = vshll.u32 %v3492, 16
        %v3565 = vor.u32 %v3562, %v3563
        %v3566 = vrot.slane %v3562, 4
        %v3568 = vshrl.u32 %v3493, 16
        %v3570 = vrot.slane %v3568, 7
        %v3571 = vshll.u32 %v3493, 16
        %v3573 = vor.u32 %v3570, %v3571
        %v3574 = vrot.slane %v3570, 4
        %v3576 = vshrl.u32 %v3494, 16
        %v3578 = vrot.slane %v3576, 7
        %v3579 = vshll.u32 %v3494, 16
        %v3581 = vor.u32 %v3578, %v3579
        %v3582 = vrot.slane %v3578, 4
        %v3584 = vshrl.u32 %v3495, 16
        %v3586 = vrot.slane %v3584, 7
        %v3587 = vshll.u32 %v3495, 16
        %v3589 = vor.u32 %v3586, %v3587
        %v3590 = vrot.slane %v3586, 4
        %v3592 = vshrl.u32 %v3496, 16
        %v3594 = vrot.slane %v3592, 7
        %v3595 = vshll.u32 %v3496, 16
        %v3597 = vor.u32 %v3594, %v3595
        %v3598 = vrot.slane %v3594, 4
        %v3600 = vshrl.u32 %v3497, 16
        %v3602 = vrot.slane %v3600, 7
        %v3603 = vshll.u32 %v3497, 16
        %v3605 = vor.u32 %v3602, %v3603
        %v3606 = vrot.slane %v3602, 4
        %v3608 = vshrl.u32 %v3498, 16
        %v3610 = vrot.slane %v3608, 7
        %v3611 = vshll.u32 %v3498, 16
        %v3613 = vor.u32 %v3610, %v3611
        %v3614 = vrot.slane %v3610, 4
        %v3616 = vshrl.u32 %v3499, 16
        %v3618 = vrot.slane %v3616, 7
        %v3619 = vshll.u32 %v3499, 16
        %v3621 = vor.u32 %v3618, %v3619
        %v3622 = vrot.slane %v3618, 4
        %v3624 = vshrl.u32 %v3500, 16
        %v3626 = vrot.slane %v3624, 7
        %v3627 = vshll.u32 %v3500, 16
        %v3629 = vor.u32 %v3626, %v3627
        %v3630 = vrot.slane %v3626, 4
        %v3632 = vshrl.u32 %v3501, 16
        %v3634 = vrot.slane %v3632, 7
        %v3635 = vshll.u32 %v3501, 16
        %v3637 = vor.u32 %v3634, %v3635
        %v3638 = vrot.slane %v3634, 4
        %v3640 = vshrl.u32 %v3502, 16
        %v3642 = vrot.slane %v3640, 7
        %v3643 = vshll.u32 %v3502, 16
        %v3645 = vor.u32 %v3642, %v3643
        %v3646 = vrot.slane %v3642, 4
        %v3648 = vshrl.u32 %v3503, 16
        %v3650 = vrot.slane %v3648, 7
        %v3651 = vshll.u32 %v3503, 16
        %v3653 = vor.u32 %v3650, %v3651
        %v3654 = vrot.slane %v3650, 4
        %v3656 = vshrl.u32 %v3504, 16
        %v3658 = vrot.slane %v3656, 7
        %v3659 = vshll.u32 %v3504, 16
        %v3661 = vor.u32 %v3658, %v3659
        %v3662 = vrot.slane %v3658, 4
        %v3664 = vshrl.u32 %v3505, 16
        %v3666 = vrot.slane %v3664, 7
        %v3667 = vshll.u32 %v3505, 16
        %v3669 = vor.u32 %v3666, %v3667
        %v3670 = vrot.slane %v3666, 4
        %v3672 = vshrl.u32 %v3506, 16
        %v3674 = vrot.slane %v3672, 7
        %v3675 = vshll.u32 %v3506, 16
        %v3677 = vor.u32 %v3674, %v3675
        %v3678 = vrot.slane %v3674, 4
        %v3680 = vshrl.u32 %v3507, 16
        %v3682 = vrot.slane %v3680, 7
        %v3683 = vshll.u32 %v3507, 16
        %v3685 = vor.u32 %v3682, %v3683
        %v3686 = vrot.slane %v3682, 4
        %v3688 = vshrl.u32 %v3508, 16
        %v3690 = vrot.slane %v3688, 7
        %v3691 = vshll.u32 %v3508, 16
        %v3693 = vor.u32 %v3690, %v3691
        %v3694 = vrot.slane %v3690, 4
        %v3696 = vshrl.u32 %v3509, 16
        %v3698 = vrot.slane %v3696, 7
        %v3699 = vshll.u32 %v3509, 16
        %v3701 = vor.u32 %v3698, %v3699
        %v3702 = vrot.slane %v3698, 4
        %v3704 = vshrl.u32 %v3510, 16
        %v3706 = vrot.slane %v3704, 7
        %v3707 = vshll.u32 %v3510, 16
        %v3709 = vor.u32 %v3706, %v3707
        %v3710 = vrot.slane %v3706, 4
        %v3712 = vshrl.u32 %v3511, 16
        %v3714 = vrot.slane %v3712, 7
        %v3715 = vshll.u32 %v3511, 16
        %v3717 = vor.u32 %v3714, %v3715
        %v3718 = vrot.slane %v3714, 4
        %v3720 = vshrl.u32 %v3512, 16
        %v3722 = vrot.slane %v3720, 7
        %v3723 = vshll.u32 %v3512, 16
        %v3725 = vor.u32 %v3722, %v3723
        %v3726 = vrot.slane %v3722, 4
        %v3728 = vshrl.u32 %v3513, 16
        %v3730 = vrot.slane %v3728, 7
        %v3731 = vshll.u32 %v3513, 16
        %v3733 = vor.u32 %v3730, %v3731
        %v3734 = vrot.slane %v3730, 4
        %v3736 = vshrl.u32 %v3514, 16
        %v3738 = vrot.slane %v3736, 7
        %v3739 = vshll.u32 %v3514, 16
        %v3741 = vor.u32 %v3738, %v3739
        %v3742 = vrot.slane %v3738, 4
        %v3744 = vshrl.u32 %v3515, 16
        %v3746 = vrot.slane %v3744, 7
        %v3747 = vshll.u32 %v3515, 16
        %v3749 = vor.u32 %v3746, %v3747
        %v3750 = vrot.slane %v3746, 4
        %v3752 = vshrl.u32 %v3516, 16
        %v3754 = vrot.slane %v3752, 7
        %v3755 = vshll.u32 %v3516, 16
        %v3757 = vor.u32 %v3754, %v3755
        %v3758 = vrot.slane %v3754, 4
        %v3760 = vshrl.u32 %v3517, 16
        %v3762 = vrot.slane %v3760, 7
        %v3763 = vshll.u32 %v3517, 16
        %v3765 = vor.u32 %v3762, %v3763
        %v3766 = vrot.slane %v3762, 4
        %v3768 = vshrl.u32 %v3518, 16
        %v3770 = vrot.slane %v3768, 7
        %v3771 = vshll.u32 %v3518, 16
        %v3773 = vor.u32 %v3770, %v3771
        %v3774 = vrot.slane %v3770, 4
        %v3839 = vld [vmem:[#allocation3] sm:$0xf]
        %v3840 = vsel %vm873, %v3525, %v3839
        %3841 = vst [vmem:[#allocation3] sm:$0xf] %v3840
        %v3842 = vld [vmem:[#allocation3 + $0x4] sm:$0x1]
        %v3843 = vsel %vm318, %v3526, %v3842
        %3844 = vst [vmem:[#allocation3 + $0x4] sm:$0x1] %v3843
        %v3845 = vld [vmem:[#allocation3 + $0x8] sm:$0xf]
        %v3846 = vsel %vm873, %v3533, %v3845
        %3847 = vst [vmem:[#allocation3 + $0x8] sm:$0xf] %v3846
        %v3848 = vld [vmem:[#allocation3 + $0xc] sm:$0x1]
        %v3849 = vsel %vm318, %v3534, %v3848
        %3850 = vst [vmem:[#allocation3 + $0xc] sm:$0x1] %v3849
        %v3851 = vld [vmem:[#allocation3 + $0x10] sm:$0xf]
        %v3852 = vsel %vm873, %v3541, %v3851
        %3853 = vst [vmem:[#allocation3 + $0x10] sm:$0xf] %v3852
        %v3854 = vld [vmem:[#allocation3 + $0x14] sm:$0x1]
        %v3855 = vsel %vm318, %v3542, %v3854
        %3856 = vst [vmem:[#allocation3 + $0x14] sm:$0x1] %v3855
        %v3857 = vld [vmem:[#allocation3 + $0x18] sm:$0xf]
        %v3858 = vsel %vm873, %v3549, %v3857
        %3859 = vst [vmem:[#allocation3 + $0x18] sm:$0xf] %v3858
        %v3860 = vld [vmem:[#allocation3 + $0x1c] sm:$0x1]
        %v3861 = vsel %vm318, %v3550, %v3860
        %3862 = vst [vmem:[#allocation3 + $0x1c] sm:$0x1] %v3861
        %v3863 = vld [vmem:[#allocation3 + $0x20] sm:$0xf]
        %v3864 = vsel %vm873, %v3557, %v3863
        %3865 = vst [vmem:[#allocation3 + $0x20] sm:$0xf] %v3864
        %v3866 = vld [vmem:[#allocation3 + $0x24] sm:$0x1]
        %v3867 = vsel %vm318, %v3558, %v3866
        %3868 = vst [vmem:[#allocation3 + $0x24] sm:$0x1] %v3867
        %v3869 = vld [vmem:[#allocation3 + $0x28] sm:$0xf]
        %v3870 = vsel %vm873, %v3565, %v3869
        %3871 = vst [vmem:[#allocation3 + $0x28] sm:$0xf] %v3870
        %v3872 = vld [vmem:[#allocation3 + $0x2c] sm:$0x1]
        %v3873 = vsel %vm318, %v3566, %v3872
        %3874 = vst [vmem:[#allocation3 + $0x2c] sm:$0x1] %v3873
        %v3875 = vld [vmem:[#allocation3 + $0x30] sm:$0xf]
        %v3876 = vsel %vm873, %v3573, %v3875
        %3877 = vst [vmem:[#allocation3 + $0x30] sm:$0xf] %v3876
        %v3878 = vld [vmem:[#allocation3 + $0x34] sm:$0x1]
        %v3879 = vsel %vm318, %v3574, %v3878
        %3880 = vst [vmem:[#allocation3 + $0x34] sm:$0x1] %v3879
        %v3881 = vld [vmem:[#allocation3 + $0x38] sm:$0xf]
        %v3882 = vsel %vm873, %v3581, %v3881
        %3883 = vst [vmem:[#allocation3 + $0x38] sm:$0xf] %v3882
        %v3884 = vld [vmem:[#allocation3 + $0x3c] sm:$0x1]
        %v3885 = vsel %vm318, %v3582, %v3884
        %3886 = vst [vmem:[#allocation3 + $0x3c] sm:$0x1] %v3885
        %v3887 = vld [vmem:[#allocation3 + $0x40] sm:$0xf]
        %v3888 = vsel %vm873, %v3589, %v3887
        %3889 = vst [vmem:[#allocation3 + $0x40] sm:$0xf] %v3888
        %v3890 = vld [vmem:[#allocation3 + $0x44] sm:$0x1]
        %v3891 = vsel %vm318, %v3590, %v3890
        %3892 = vst [vmem:[#allocation3 + $0x44] sm:$0x1] %v3891
        %v3893 = vld [vmem:[#allocation3 + $0x48] sm:$0xf]
        %v3894 = vsel %vm873, %v3597, %v3893
        %3895 = vst [vmem:[#allocation3 + $0x48] sm:$0xf] %v3894
        %v3896 = vld [vmem:[#allocation3 + $0x4c] sm:$0x1]
        %v3897 = vsel %vm318, %v3598, %v3896
        %3898 = vst [vmem:[#allocation3 + $0x4c] sm:$0x1] %v3897
        %v3899 = vld [vmem:[#allocation3 + $0x50] sm:$0xf]
        %v3900 = vsel %vm873, %v3605, %v3899
        %3901 = vst [vmem:[#allocation3 + $0x50] sm:$0xf] %v3900
        %v3902 = vld [vmem:[#allocation3 + $0x54] sm:$0x1]
        %v3903 = vsel %vm318, %v3606, %v3902
        %3904 = vst [vmem:[#allocation3 + $0x54] sm:$0x1] %v3903
        %v3905 = vld [vmem:[#allocation3 + $0x58] sm:$0xf]
        %v3906 = vsel %vm873, %v3613, %v3905
        %3907 = vst [vmem:[#allocation3 + $0x58] sm:$0xf] %v3906
        %v3908 = vld [vmem:[#allocation3 + $0x5c] sm:$0x1]
        %v3909 = vsel %vm318, %v3614, %v3908
        %3910 = vst [vmem:[#allocation3 + $0x5c] sm:$0x1] %v3909
        %v3911 = vld [vmem:[#allocation3 + $0x60] sm:$0xf]
        %v3912 = vsel %vm873, %v3621, %v3911
        %3913 = vst [vmem:[#allocation3 + $0x60] sm:$0xf] %v3912
        %v3914 = vld [vmem:[#allocation3 + $0x64] sm:$0x1]
        %v3915 = vsel %vm318, %v3622, %v3914
        %3916 = vst [vmem:[#allocation3 + $0x64] sm:$0x1] %v3915
        %v3917 = vld [vmem:[#allocation3 + $0x68] sm:$0xf]
        %v3918 = vsel %vm873, %v3629, %v3917
        %3919 = vst [vmem:[#allocation3 + $0x68] sm:$0xf] %v3918
        %v3920 = vld [vmem:[#allocation3 + $0x6c] sm:$0x1]
        %v3921 = vsel %vm318, %v3630, %v3920
        %3922 = vst [vmem:[#allocation3 + $0x6c] sm:$0x1] %v3921
        %v3923 = vld [vmem:[#allocation3 + $0x70] sm:$0xf]
        %v3924 = vsel %vm873, %v3637, %v3923
        %3925 = vst [vmem:[#allocation3 + $0x70] sm:$0xf] %v3924
        %v3926 = vld [vmem:[#allocation3 + $0x74] sm:$0x1]
        %v3927 = vsel %vm318, %v3638, %v3926
        %3928 = vst [vmem:[#allocation3 + $0x74] sm:$0x1] %v3927
        %v3929 = vld [vmem:[#allocation3 + $0x78] sm:$0xf]
        %v3930 = vsel %vm873, %v3645, %v3929
        %3931 = vst [vmem:[#allocation3 + $0x78] sm:$0xf] %v3930
        %v3932 = vld [vmem:[#allocation3 + $0x7c] sm:$0x1]
        %v3933 = vsel %vm318, %v3646, %v3932
        %3934 = vst [vmem:[#allocation3 + $0x7c] sm:$0x1] %v3933
        %v3935 = vld [vmem:[#allocation3 + $0x80] sm:$0xf]
        %v3936 = vsel %vm873, %v3653, %v3935
        %3937 = vst [vmem:[#allocation3 + $0x80] sm:$0xf] %v3936
        %v3938 = vld [vmem:[#allocation3 + $0x84] sm:$0x1]
        %v3939 = vsel %vm318, %v3654, %v3938
        %3940 = vst [vmem:[#allocation3 + $0x84] sm:$0x1] %v3939
        %v3941 = vld [vmem:[#allocation3 + $0x88] sm:$0xf]
        %v3942 = vsel %vm873, %v3661, %v3941
        %3943 = vst [vmem:[#allocation3 + $0x88] sm:$0xf] %v3942
        %v3944 = vld [vmem:[#allocation3 + $0x8c] sm:$0x1]
        %v3945 = vsel %vm318, %v3662, %v3944
        %3946 = vst [vmem:[#allocation3 + $0x8c] sm:$0x1] %v3945
        %v3947 = vld [vmem:[#allocation3 + $0x90] sm:$0xf]
        %v3948 = vsel %vm873, %v3669, %v3947
        %3949 = vst [vmem:[#allocation3 + $0x90] sm:$0xf] %v3948
        %v3950 = vld [vmem:[#allocation3 + $0x94] sm:$0x1]
        %v3951 = vsel %vm318, %v3670, %v3950
        %3952 = vst [vmem:[#allocation3 + $0x94] sm:$0x1] %v3951
        %v3953 = vld [vmem:[#allocation3 + $0x98] sm:$0xf]
        %v3954 = vsel %vm873, %v3677, %v3953
        %3955 = vst [vmem:[#allocation3 + $0x98] sm:$0xf] %v3954
        %v3956 = vld [vmem:[#allocation3 + $0x9c] sm:$0x1]
        %v3957 = vsel %vm318, %v3678, %v3956
        %3958 = vst [vmem:[#allocation3 + $0x9c] sm:$0x1] %v3957
        %v3959 = vld [vmem:[#allocation3 + $0xa0] sm:$0xf]
        %v3960 = vsel %vm873, %v3685, %v3959
        %3961 = vst [vmem:[#allocation3 + $0xa0] sm:$0xf] %v3960
        %v3962 = vld [vmem:[#allocation3 + $0xa4] sm:$0x1]
        %v3963 = vsel %vm318, %v3686, %v3962
        %3964 = vst [vmem:[#allocation3 + $0xa4] sm:$0x1] %v3963
        %v3965 = vld [vmem:[#allocation3 + $0xa8] sm:$0xf]
        %v3966 = vsel %vm873, %v3693, %v3965
        %3967 = vst [vmem:[#allocation3 + $0xa8] sm:$0xf] %v3966
        %v3968 = vld [vmem:[#allocation3 + $0xac] sm:$0x1]
        %v3969 = vsel %vm318, %v3694, %v3968
        %3970 = vst [vmem:[#allocation3 + $0xac] sm:$0x1] %v3969
        %v3971 = vld [vmem:[#allocation3 + $0xb0] sm:$0xf]
        %v3972 = vsel %vm873, %v3701, %v3971
        %3973 = vst [vmem:[#allocation3 + $0xb0] sm:$0xf] %v3972
        %v3974 = vld [vmem:[#allocation3 + $0xb4] sm:$0x1]
        %v3975 = vsel %vm318, %v3702, %v3974
        %3976 = vst [vmem:[#allocation3 + $0xb4] sm:$0x1] %v3975
        %v3977 = vld [vmem:[#allocation3 + $0xb8] sm:$0xf]
        %v3978 = vsel %vm873, %v3709, %v3977
        %3979 = vst [vmem:[#allocation3 + $0xb8] sm:$0xf] %v3978
        %v3980 = vld [vmem:[#allocation3 + $0xbc] sm:$0x1]
        %v3981 = vsel %vm318, %v3710, %v3980
        %3982 = vst [vmem:[#allocation3 + $0xbc] sm:$0x1] %v3981
        %v3983 = vld [vmem:[#allocation3 + $0xc0] sm:$0xf]
        %v3984 = vsel %vm873, %v3717, %v3983
        %3985 = vst [vmem:[#allocation3 + $0xc0] sm:$0xf] %v3984
        %v3986 = vld [vmem:[#allocation3 + $0xc4] sm:$0x1]
        %v3987 = vsel %vm318, %v3718, %v3986
        %3988 = vst [vmem:[#allocation3 + $0xc4] sm:$0x1] %v3987
        %v3989 = vld [vmem:[#allocation3 + $0xc8] sm:$0xf]
        %v3990 = vsel %vm873, %v3725, %v3989
        %3991 = vst [vmem:[#allocation3 + $0xc8] sm:$0xf] %v3990
        %v3992 = vld [vmem:[#allocation3 + $0xcc] sm:$0x1]
        %v3993 = vsel %vm318, %v3726, %v3992
        %3994 = vst [vmem:[#allocation3 + $0xcc] sm:$0x1] %v3993
        %v3995 = vld [vmem:[#allocation3 + $0xd0] sm:$0xf]
        %v3996 = vsel %vm873, %v3733, %v3995
        %3997 = vst [vmem:[#allocation3 + $0xd0] sm:$0xf] %v3996
        %v3998 = vld [vmem:[#allocation3 + $0xd4] sm:$0x1]
        %v3999 = vsel %vm318, %v3734, %v3998
        %4000 = vst [vmem:[#allocation3 + $0xd4] sm:$0x1] %v3999
        %v4001 = vld [vmem:[#allocation3 + $0xd8] sm:$0xf]
        %v4002 = vsel %vm873, %v3741, %v4001
        %4003 = vst [vmem:[#allocation3 + $0xd8] sm:$0xf] %v4002
        %v4004 = vld [vmem:[#allocation3 + $0xdc] sm:$0x1]
        %v4005 = vsel %vm318, %v3742, %v4004
        %4006 = vst [vmem:[#allocation3 + $0xdc] sm:$0x1] %v4005
        %v4007 = vld [vmem:[#allocation3 + $0xe0] sm:$0xf]
        %v4008 = vsel %vm873, %v3749, %v4007
        %4009 = vst [vmem:[#allocation3 + $0xe0] sm:$0xf] %v4008
        %v4010 = vld [vmem:[#allocation3 + $0xe4] sm:$0x1]
        %v4011 = vsel %vm318, %v3750, %v4010
        %4012 = vst [vmem:[#allocation3 + $0xe4] sm:$0x1] %v4011
        %v4013 = vld [vmem:[#allocation3 + $0xe8] sm:$0xf]
        %v4014 = vsel %vm873, %v3757, %v4013
        %4015 = vst [vmem:[#allocation3 + $0xe8] sm:$0xf] %v4014
        %v4016 = vld [vmem:[#allocation3 + $0xec] sm:$0x1]
        %v4017 = vsel %vm318, %v3758, %v4016
        %4018 = vst [vmem:[#allocation3 + $0xec] sm:$0x1] %v4017
        %v4019 = vld [vmem:[#allocation3 + $0xf0] sm:$0xf]
        %v4020 = vsel %vm873, %v3765, %v4019
        %4021 = vst [vmem:[#allocation3 + $0xf0] sm:$0xf] %v4020
        %v4022 = vld [vmem:[#allocation3 + $0xf4] sm:$0x1]
        %v4023 = vsel %vm318, %v3766, %v4022
        %4024 = vst [vmem:[#allocation3 + $0xf4] sm:$0x1] %v4023
        %v4025 = vld [vmem:[#allocation3 + $0xf8] sm:$0xf]
        %v4026 = vsel %vm873, %v3773, %v4025
        %4027 = vst [vmem:[#allocation3 + $0xf8] sm:$0xf] %v4026
        %v4028 = vld [vmem:[#allocation3 + $0xfc] sm:$0x1]
        %v4029 = vsel %vm318, %v3774, %v4028
        %4030 = vst [vmem:[#allocation3 + $0xfc] sm:$0x1] %v4029
        %v4031 = vld [vmem:[#allocation3] sm:$0xf]
        %v4032 = vld [vmem:[#allocation3 + $0x8] sm:$0xf]
        %v4033 = vld [vmem:[#allocation3 + $0x10] sm:$0xf]
        %v4034 = vld [vmem:[#allocation3 + $0x18] sm:$0xf]
        %v4035 = vld [vmem:[#allocation3 + $0x20] sm:$0xf]
        %v4036 = vld [vmem:[#allocation3 + $0x28] sm:$0xf]
        %v4037 = vld [vmem:[#allocation3 + $0x30] sm:$0xf]
        %v4038 = vld [vmem:[#allocation3 + $0x38] sm:$0xf]
        %v4039 = vld [vmem:[#allocation3 + $0x40] sm:$0xf]
        %v4040 = vld [vmem:[#allocation3 + $0x48] sm:$0xf]
        %v4041 = vld [vmem:[#allocation3 + $0x50] sm:$0xf]
        %v4042 = vld [vmem:[#allocation3 + $0x58] sm:$0xf]
        %v4043 = vld [vmem:[#allocation3 + $0x60] sm:$0xf]
        %v4044 = vld [vmem:[#allocation3 + $0x68] sm:$0xf]
        %v4045 = vld [vmem:[#allocation3 + $0x70] sm:$0xf]
        %v4046 = vld [vmem:[#allocation3 + $0x78] sm:$0xf]
        %v4047 = vld [vmem:[#allocation3 + $0x80] sm:$0xf]
        %v4048 = vld [vmem:[#allocation3 + $0x88] sm:$0xf]
        %v4049 = vld [vmem:[#allocation3 + $0x90] sm:$0xf]
        %v4050 = vld [vmem:[#allocation3 + $0x98] sm:$0xf]
        %v4051 = vld [vmem:[#allocation3 + $0xa0] sm:$0xf]
        %v4052 = vld [vmem:[#allocation3 + $0xa8] sm:$0xf]
        %v4053 = vld [vmem:[#allocation3 + $0xb0] sm:$0xf]
        %v4054 = vld [vmem:[#allocation3 + $0xb8] sm:$0xf]
        %v4055 = vld [vmem:[#allocation3 + $0xc0] sm:$0xf]
        %v4056 = vld [vmem:[#allocation3 + $0xc8] sm:$0xf]
        %v4057 = vld [vmem:[#allocation3 + $0xd0] sm:$0xf]
        %v4058 = vld [vmem:[#allocation3 + $0xd8] sm:$0xf]
        %v4059 = vld [vmem:[#allocation3 + $0xe0] sm:$0xf]
        %v4060 = vld [vmem:[#allocation3 + $0xe8] sm:$0xf]
        %v4061 = vld [vmem:[#allocation3 + $0xf0] sm:$0xf]
        %v4062 = vld [vmem:[#allocation3 + $0xf8] sm:$0xf]
        %v4063 = vld [vmem:[%s3] sm:$0xf]
        %v4064 = vld [vmem:[%s3 + $0x4] sm:$0xf]
        %v4065 = vld [vmem:[%s3 + $0x8] sm:$0xf]
        %v4066 = vld [vmem:[%s3 + $0xc] sm:$0xf]
        %v4067 = vld [vmem:[%s3 + $0x10] sm:$0xf]
        %v4068 = vld [vmem:[%s3 + $0x14] sm:$0xf]
        %v4069 = vld [vmem:[%s3 + $0x18] sm:$0xf]
        %v4070 = vld [vmem:[%s3 + $0x1c] sm:$0xf]
        %v4071 = vld [vmem:[%s3 + $0x20] sm:$0xf]
        %v4072 = vld [vmem:[%s3 + $0x24] sm:$0xf]
        %v4073 = vld [vmem:[%s3 + $0x28] sm:$0xf]
        %v4074 = vld [vmem:[%s3 + $0x2c] sm:$0xf]
        %v4075 = vld [vmem:[%s3 + $0x30] sm:$0xf]
        %v4076 = vld [vmem:[%s3 + $0x34] sm:$0xf]
        %v4077 = vld [vmem:[%s3 + $0x38] sm:$0xf]
        %v4078 = vld [vmem:[%s3 + $0x3c] sm:$0xf]
        %v4079 = vld [vmem:[#allocation3 + $0x4] sm:$0x1]
        %v4080 = vld [vmem:[#allocation3 + $0xc] sm:$0x1]
        %v4081 = vld [vmem:[#allocation3 + $0x14] sm:$0x1]
        %v4082 = vld [vmem:[#allocation3 + $0x1c] sm:$0x1]
        %v4083 = vld [vmem:[#allocation3 + $0x24] sm:$0x1]
        %v4084 = vld [vmem:[#allocation3 + $0x2c] sm:$0x1]
        %v4085 = vld [vmem:[#allocation3 + $0x34] sm:$0x1]
        %v4086 = vld [vmem:[#allocation3 + $0x3c] sm:$0x1]
        %v4087 = vld [vmem:[#allocation3 + $0x44] sm:$0x1]
        %v4088 = vld [vmem:[#allocation3 + $0x4c] sm:$0x1]
        %v4089 = vld [vmem:[#allocation3 + $0x54] sm:$0x1]
        %v4090 = vld [vmem:[#allocation3 + $0x5c] sm:$0x1]
        %v4091 = vld [vmem:[#allocation3 + $0x64] sm:$0x1]
        %v4092 = vld [vmem:[#allocation3 + $0x6c] sm:$0x1]
        %v4093 = vld [vmem:[#allocation3 + $0x74] sm:$0x1]
        %v4094 = vld [vmem:[#allocation3 + $0x7c] sm:$0x1]
        %v4095 = vld [vmem:[#allocation3 + $0x84] sm:$0x1]
        %v4096 = vld [vmem:[#allocation3 + $0x8c] sm:$0x1]
        %v4097 = vld [vmem:[#allocation3 + $0x94] sm:$0x1]
        %v4098 = vld [vmem:[#allocation3 + $0x9c] sm:$0x1]
        %v4099 = vld [vmem:[#allocation3 + $0xa4] sm:$0x1]
        %v4100 = vld [vmem:[#allocation3 + $0xac] sm:$0x1]
        %v4101 = vld [vmem:[#allocation3 + $0xb4] sm:$0x1]
        %v4102 = vld [vmem:[#allocation3 + $0xbc] sm:$0x1]
        %v4103 = vld [vmem:[#allocation3 + $0xc4] sm:$0x1]
        %v4104 = vld [vmem:[#allocation3 + $0xcc] sm:$0x1]
        %v4105 = vld [vmem:[#allocation3 + $0xd4] sm:$0x1]
        %v4106 = vld [vmem:[#allocation3 + $0xdc] sm:$0x1]
        %v4107 = vld [vmem:[#allocation3 + $0xe4] sm:$0x1]
        %v4108 = vld [vmem:[#allocation3 + $0xec] sm:$0x1]
        %v4109 = vld [vmem:[#allocation3 + $0xf4] sm:$0x1]
        %v4110 = vld [vmem:[#allocation3 + $0xfc] sm:$0x1]
        %v4112 = vshrl.u32 %v4031, 16
        %v4114 = vrot.slane %v4112, 4
        %v4115 = vshll.u32 %v4031, 16
        %v4117 = vrot.slane %v4115, 5
        %v4118 = vor.u32 %v4114, %v4117
        %v4119 = vrot.slane %v4118, 4
        %v4121 = vshll.u32 %v4079, 16
        %v4123 = vrot.slane %v4121, 5
        %v4124 = vsel %vm1167, %v4119, %v4123
        %v4126 = vshrl.u32 %v4032, 16
        %v4128 = vrot.slane %v4126, 4
        %v4129 = vshll.u32 %v4032, 16
        %v4131 = vrot.slane %v4129, 5
        %v4132 = vor.u32 %v4128, %v4131
        %v4133 = vrot.slane %v4132, 4
        %v4135 = vshll.u32 %v4080, 16
        %v4137 = vrot.slane %v4135, 5
        %v4138 = vsel %vm1167, %v4133, %v4137
        %v4140 = vshrl.u32 %v4033, 16
        %v4142 = vrot.slane %v4140, 4
        %v4143 = vshll.u32 %v4033, 16
        %v4145 = vrot.slane %v4143, 5
        %v4146 = vor.u32 %v4142, %v4145
        %v4147 = vrot.slane %v4146, 4
        %v4149 = vshll.u32 %v4081, 16
        %v4151 = vrot.slane %v4149, 5
        %v4152 = vsel %vm1167, %v4147, %v4151
        %v4154 = vshrl.u32 %v4034, 16
        %v4156 = vrot.slane %v4154, 4
        %v4157 = vshll.u32 %v4034, 16
        %v4159 = vrot.slane %v4157, 5
        %v4160 = vor.u32 %v4156, %v4159
        %v4161 = vrot.slane %v4160, 4
        %v4163 = vshll.u32 %v4082, 16
        %v4165 = vrot.slane %v4163, 5
        %v4166 = vsel %vm1167, %v4161, %v4165
        %v4168 = vshrl.u32 %v4035, 16
        %v4170 = vrot.slane %v4168, 4
        %v4171 = vshll.u32 %v4035, 16
        %v4173 = vrot.slane %v4171, 5
        %v4174 = vor.u32 %v4170, %v4173
        %v4175 = vrot.slane %v4174, 4
        %v4177 = vshll.u32 %v4083, 16
        %v4179 = vrot.slane %v4177, 5
        %v4180 = vsel %vm1167, %v4175, %v4179
        %v4182 = vshrl.u32 %v4036, 16
        %v4184 = vrot.slane %v4182, 4
        %v4185 = vshll.u32 %v4036, 16
        %v4187 = vrot.slane %v4185, 5
        %v4188 = vor.u32 %v4184, %v4187
        %v4189 = vrot.slane %v4188, 4
        %v4191 = vshll.u32 %v4084, 16
        %v4193 = vrot.slane %v4191, 5
        %v4194 = vsel %vm1167, %v4189, %v4193
        %v4196 = vshrl.u32 %v4037, 16
        %v4198 = vrot.slane %v4196, 4
        %v4199 = vshll.u32 %v4037, 16
        %v4201 = vrot.slane %v4199, 5
        %v4202 = vor.u32 %v4198, %v4201
        %v4203 = vrot.slane %v4202, 4
        %v4205 = vshll.u32 %v4085, 16
        %v4207 = vrot.slane %v4205, 5
        %v4208 = vsel %vm1167, %v4203, %v4207
        %v4210 = vshrl.u32 %v4038, 16
        %v4212 = vrot.slane %v4210, 4
        %v4213 = vshll.u32 %v4038, 16
        %v4215 = vrot.slane %v4213, 5
        %v4216 = vor.u32 %v4212, %v4215
        %v4217 = vrot.slane %v4216, 4
        %v4219 = vshll.u32 %v4086, 16
        %v4221 = vrot.slane %v4219, 5
        %v4222 = vsel %vm1167, %v4217, %v4221
        %v4224 = vshrl.u32 %v4039, 16
        %v4226 = vrot.slane %v4224, 4
        %v4227 = vshll.u32 %v4039, 16
        %v4229 = vrot.slane %v4227, 5
        %v4230 = vor.u32 %v4226, %v4229
        %v4231 = vrot.slane %v4230, 4
        %v4233 = vshll.u32 %v4087, 16
        %v4235 = vrot.slane %v4233, 5
        %v4236 = vsel %vm1167, %v4231, %v4235
        %v4238 = vshrl.u32 %v4040, 16
        %v4240 = vrot.slane %v4238, 4
        %v4241 = vshll.u32 %v4040, 16
        %v4243 = vrot.slane %v4241, 5
        %v4244 = vor.u32 %v4240, %v4243
        %v4245 = vrot.slane %v4244, 4
        %v4247 = vshll.u32 %v4088, 16
        %v4249 = vrot.slane %v4247, 5
        %v4250 = vsel %vm1167, %v4245, %v4249
        %v4252 = vshrl.u32 %v4041, 16
        %v4254 = vrot.slane %v4252, 4
        %v4255 = vshll.u32 %v4041, 16
        %v4257 = vrot.slane %v4255, 5
        %v4258 = vor.u32 %v4254, %v4257
        %v4259 = vrot.slane %v4258, 4
        %v4261 = vshll.u32 %v4089, 16
        %v4263 = vrot.slane %v4261, 5
        %v4264 = vsel %vm1167, %v4259, %v4263
        %v4266 = vshrl.u32 %v4042, 16
        %v4268 = vrot.slane %v4266, 4
        %v4269 = vshll.u32 %v4042, 16
        %v4271 = vrot.slane %v4269, 5
        %v4272 = vor.u32 %v4268, %v4271
        %v4273 = vrot.slane %v4272, 4
        %v4275 = vshll.u32 %v4090, 16
        %v4277 = vrot.slane %v4275, 5
        %v4278 = vsel %vm1167, %v4273, %v4277
        %v4280 = vshrl.u32 %v4043, 16
        %v4282 = vrot.slane %v4280, 4
        %v4283 = vshll.u32 %v4043, 16
        %v4285 = vrot.slane %v4283, 5
        %v4286 = vor.u32 %v4282, %v4285
        %v4287 = vrot.slane %v4286, 4
        %v4289 = vshll.u32 %v4091, 16
        %v4291 = vrot.slane %v4289, 5
        %v4292 = vsel %vm1167, %v4287, %v4291
        %v4294 = vshrl.u32 %v4044, 16
        %v4296 = vrot.slane %v4294, 4
        %v4297 = vshll.u32 %v4044, 16
        %v4299 = vrot.slane %v4297, 5
        %v4300 = vor.u32 %v4296, %v4299
        %v4301 = vrot.slane %v4300, 4
        %v4303 = vshll.u32 %v4092, 16
        %v4305 = vrot.slane %v4303, 5
        %v4306 = vsel %vm1167, %v4301, %v4305
        %v4308 = vshrl.u32 %v4045, 16
        %v4310 = vrot.slane %v4308, 4
        %v4311 = vshll.u32 %v4045, 16
        %v4313 = vrot.slane %v4311, 5
        %v4314 = vor.u32 %v4310, %v4313
        %v4315 = vrot.slane %v4314, 4
        %v4317 = vshll.u32 %v4093, 16
        %v4319 = vrot.slane %v4317, 5
        %v4320 = vsel %vm1167, %v4315, %v4319
        %v4322 = vshrl.u32 %v4046, 16
        %v4324 = vrot.slane %v4322, 4
        %v4325 = vshll.u32 %v4046, 16
        %v4327 = vrot.slane %v4325, 5
        %v4328 = vor.u32 %v4324, %v4327
        %v4329 = vrot.slane %v4328, 4
        %v4331 = vshll.u32 %v4094, 16
        %v4333 = vrot.slane %v4331, 5
        %v4334 = vsel %vm1167, %v4329, %v4333
        %v4336 = vshrl.u32 %v4047, 16
        %v4338 = vrot.slane %v4336, 4
        %v4339 = vshll.u32 %v4047, 16
        %v4341 = vrot.slane %v4339, 5
        %v4342 = vor.u32 %v4338, %v4341
        %v4343 = vrot.slane %v4342, 4
        %v4345 = vshll.u32 %v4095, 16
        %v4347 = vrot.slane %v4345, 5
        %v4348 = vsel %vm1167, %v4343, %v4347
        %v4350 = vshrl.u32 %v4048, 16
        %v4352 = vrot.slane %v4350, 4
        %v4353 = vshll.u32 %v4048, 16
        %v4355 = vrot.slane %v4353, 5
        %v4356 = vor.u32 %v4352, %v4355
        %v4357 = vrot.slane %v4356, 4
        %v4359 = vshll.u32 %v4096, 16
        %v4361 = vrot.slane %v4359, 5
        %v4362 = vsel %vm1167, %v4357, %v4361
        %v4364 = vshrl.u32 %v4049, 16
        %v4366 = vrot.slane %v4364, 4
        %v4367 = vshll.u32 %v4049, 16
        %v4369 = vrot.slane %v4367, 5
        %v4370 = vor.u32 %v4366, %v4369
        %v4371 = vrot.slane %v4370, 4
        %v4373 = vshll.u32 %v4097, 16
        %v4375 = vrot.slane %v4373, 5
        %v4376 = vsel %vm1167, %v4371, %v4375
        %v4378 = vshrl.u32 %v4050, 16
        %v4380 = vrot.slane %v4378, 4
        %v4381 = vshll.u32 %v4050, 16
        %v4383 = vrot.slane %v4381, 5
        %v4384 = vor.u32 %v4380, %v4383
        %v4385 = vrot.slane %v4384, 4
        %v4387 = vshll.u32 %v4098, 16
        %v4389 = vrot.slane %v4387, 5
        %v4390 = vsel %vm1167, %v4385, %v4389
        %v4392 = vshrl.u32 %v4051, 16
        %v4394 = vrot.slane %v4392, 4
        %v4395 = vshll.u32 %v4051, 16
        %v4397 = vrot.slane %v4395, 5
        %v4398 = vor.u32 %v4394, %v4397
        %v4399 = vrot.slane %v4398, 4
        %v4401 = vshll.u32 %v4099, 16
        %v4403 = vrot.slane %v4401, 5
        %v4404 = vsel %vm1167, %v4399, %v4403
        %v4406 = vshrl.u32 %v4052, 16
        %v4408 = vrot.slane %v4406, 4
        %v4409 = vshll.u32 %v4052, 16
        %v4411 = vrot.slane %v4409, 5
        %v4412 = vor.u32 %v4408, %v4411
        %v4413 = vrot.slane %v4412, 4
        %v4415 = vshll.u32 %v4100, 16
        %v4417 = vrot.slane %v4415, 5
        %v4418 = vsel %vm1167, %v4413, %v4417
        %v4420 = vshrl.u32 %v4053, 16
        %v4422 = vrot.slane %v4420, 4
        %v4423 = vshll.u32 %v4053, 16
        %v4425 = vrot.slane %v4423, 5
        %v4426 = vor.u32 %v4422, %v4425
        %v4427 = vrot.slane %v4426, 4
        %v4429 = vshll.u32 %v4101, 16
        %v4431 = vrot.slane %v4429, 5
        %v4432 = vsel %vm1167, %v4427, %v4431
        %v4434 = vshrl.u32 %v4054, 16
        %v4436 = vrot.slane %v4434, 4
        %v4437 = vshll.u32 %v4054, 16
        %v4439 = vrot.slane %v4437, 5
        %v4440 = vor.u32 %v4436, %v4439
        %v4441 = vrot.slane %v4440, 4
        %v4443 = vshll.u32 %v4102, 16
        %v4445 = vrot.slane %v4443, 5
        %v4446 = vsel %vm1167, %v4441, %v4445
        %v4448 = vshrl.u32 %v4055, 16
        %v4450 = vrot.slane %v4448, 4
        %v4451 = vshll.u32 %v4055, 16
        %v4453 = vrot.slane %v4451, 5
        %v4454 = vor.u32 %v4450, %v4453
        %v4455 = vrot.slane %v4454, 4
        %v4457 = vshll.u32 %v4103, 16
        %v4459 = vrot.slane %v4457, 5
        %v4460 = vsel %vm1167, %v4455, %v4459
        %v4462 = vshrl.u32 %v4056, 16
        %v4464 = vrot.slane %v4462, 4
        %v4465 = vshll.u32 %v4056, 16
        %v4467 = vrot.slane %v4465, 5
        %v4468 = vor.u32 %v4464, %v4467
        %v4469 = vrot.slane %v4468, 4
        %v4471 = vshll.u32 %v4104, 16
        %v4473 = vrot.slane %v4471, 5
        %v4474 = vsel %vm1167, %v4469, %v4473
        %v4476 = vshrl.u32 %v4057, 16
        %v4478 = vrot.slane %v4476, 4
        %v4479 = vshll.u32 %v4057, 16
        %v4481 = vrot.slane %v4479, 5
        %v4482 = vor.u32 %v4478, %v4481
        %v4483 = vrot.slane %v4482, 4
        %v4485 = vshll.u32 %v4105, 16
        %v4487 = vrot.slane %v4485, 5
        %v4488 = vsel %vm1167, %v4483, %v4487
        %v4490 = vshrl.u32 %v4058, 16
        %v4492 = vrot.slane %v4490, 4
        %v4493 = vshll.u32 %v4058, 16
        %v4495 = vrot.slane %v4493, 5
        %v4496 = vor.u32 %v4492, %v4495
        %v4497 = vrot.slane %v4496, 4
        %v4499 = vshll.u32 %v4106, 16
        %v4501 = vrot.slane %v4499, 5
        %v4502 = vsel %vm1167, %v4497, %v4501
        %v4504 = vshrl.u32 %v4059, 16
        %v4506 = vrot.slane %v4504, 4
        %v4507 = vshll.u32 %v4059, 16
        %v4509 = vrot.slane %v4507, 5
        %v4510 = vor.u32 %v4506, %v4509
        %v4511 = vrot.slane %v4510, 4
        %v4513 = vshll.u32 %v4107, 16
        %v4515 = vrot.slane %v4513, 5
        %v4516 = vsel %vm1167, %v4511, %v4515
        %v4518 = vshrl.u32 %v4060, 16
        %v4520 = vrot.slane %v4518, 4
        %v4521 = vshll.u32 %v4060, 16
        %v4523 = vrot.slane %v4521, 5
        %v4524 = vor.u32 %v4520, %v4523
        %v4525 = vrot.slane %v4524, 4
        %v4527 = vshll.u32 %v4108, 16
        %v4529 = vrot.slane %v4527, 5
        %v4530 = vsel %vm1167, %v4525, %v4529
        %v4532 = vshrl.u32 %v4061, 16
        %v4534 = vrot.slane %v4532, 4
        %v4535 = vshll.u32 %v4061, 16
        %v4537 = vrot.slane %v4535, 5
        %v4538 = vor.u32 %v4534, %v4537
        %v4539 = vrot.slane %v4538, 4
        %v4541 = vshll.u32 %v4109, 16
        %v4543 = vrot.slane %v4541, 5
        %v4544 = vsel %vm1167, %v4539, %v4543
        %v4546 = vshrl.u32 %v4062, 16
        %v4548 = vrot.slane %v4546, 4
        %v4549 = vshll.u32 %v4062, 16
        %v4551 = vrot.slane %v4549, 5
        %v4552 = vor.u32 %v4548, %v4551
        %v4553 = vrot.slane %v4552, 4
        %v4555 = vshll.u32 %v4110, 16
        %v4557 = vrot.slane %v4555, 5
        %v4558 = vsel %vm1167, %v4553, %v4557
        %s4559 = scalar_lea.vmem %s3, 64
        %v4560 = vld [vmem:[%s4559] sm:$0xf]
        %v4561 = vld [vmem:[%s4559 + $0x4] sm:$0xf]
        %v4562 = vld [vmem:[%s4559 + $0x8] sm:$0xf]
        %v4563 = vld [vmem:[%s4559 + $0xc] sm:$0xf]
        %v4564 = vld [vmem:[%s4559 + $0x10] sm:$0xf]
        %v4565 = vld [vmem:[%s4559 + $0x14] sm:$0xf]
        %v4566 = vld [vmem:[%s4559 + $0x18] sm:$0xf]
        %v4567 = vld [vmem:[%s4559 + $0x1c] sm:$0xf]
        %v4568 = vld [vmem:[%s4559 + $0x20] sm:$0xf]
        %v4569 = vld [vmem:[%s4559 + $0x24] sm:$0xf]
        %v4570 = vld [vmem:[%s4559 + $0x28] sm:$0xf]
        %v4571 = vld [vmem:[%s4559 + $0x2c] sm:$0xf]
        %v4572 = vld [vmem:[%s4559 + $0x30] sm:$0xf]
        %v4573 = vld [vmem:[%s4559 + $0x34] sm:$0xf]
        %v4574 = vld [vmem:[%s4559 + $0x38] sm:$0xf]
        %v4575 = vld [vmem:[%s4559 + $0x3c] sm:$0xf]
        %v4576 = vunpack.c.l.b16 %v4124
        %v4577 = vunpack.c.l.b16 %v4138
        %v4578 = vunpack.c.l.b16 %v4152
        %v4579 = vunpack.c.l.b16 %v4166
        %v4580 = vunpack.c.l.b16 %v4180
        %v4581 = vunpack.c.l.b16 %v4194
        %v4582 = vunpack.c.l.b16 %v4208
        %v4583 = vunpack.c.l.b16 %v4222
        %v4584 = vunpack.c.l.b16 %v4236
        %v4585 = vunpack.c.l.b16 %v4250
        %v4586 = vunpack.c.l.b16 %v4264
        %v4587 = vunpack.c.l.b16 %v4278
        %v4588 = vunpack.c.l.b16 %v4292
        %v4589 = vunpack.c.l.b16 %v4306
        %v4590 = vunpack.c.l.b16 %v4320
        %v4591 = vunpack.c.l.b16 %v4334
        %v4592 = vunpack.c.l.b16 %v4348
        %v4593 = vunpack.c.l.b16 %v4362
        %v4594 = vunpack.c.l.b16 %v4376
        %v4595 = vunpack.c.l.b16 %v4390
        %v4596 = vunpack.c.l.b16 %v4404
        %v4597 = vunpack.c.l.b16 %v4418
        %v4598 = vunpack.c.l.b16 %v4432
        %v4599 = vunpack.c.l.b16 %v4446
        %v4600 = vunpack.c.l.b16 %v4460
        %v4601 = vunpack.c.l.b16 %v4474
        %v4602 = vunpack.c.l.b16 %v4488
        %v4603 = vunpack.c.l.b16 %v4502
        %v4604 = vunpack.c.l.b16 %v4516
        %v4605 = vunpack.c.l.b16 %v4530
        %v4606 = vunpack.c.l.b16 %v4544
        %v4607 = vunpack.c.l.b16 %v4558
        %v4608 = vpack.c.b16 %v4577, %v4576
        %v4609 = vpack.c.b16 %v4579, %v4578
        %v4610 = vpack.c.b16 %v4581, %v4580
        %v4611 = vpack.c.b16 %v4583, %v4582
        %v4612 = vpack.c.b16 %v4585, %v4584
        %v4613 = vpack.c.b16 %v4587, %v4586
        %v4614 = vpack.c.b16 %v4589, %v4588
        %v4615 = vpack.c.b16 %v4591, %v4590
        %v4616 = vpack.c.b16 %v4593, %v4592
        %v4617 = vpack.c.b16 %v4595, %v4594
        %v4618 = vpack.c.b16 %v4597, %v4596
        %v4619 = vpack.c.b16 %v4599, %v4598
        %v4620 = vpack.c.b16 %v4601, %v4600
        %v4621 = vpack.c.b16 %v4603, %v4602
        %v4622 = vpack.c.b16 %v4605, %v4604
        %v4623 = vpack.c.b16 %v4607, %v4606
        %v4656 = vunpack.c.l.b16 %v4560
        %v4657 = vunpack.c.l.b16 %v4561
        %v4658 = vunpack.c.l.b16 %v4562
        %v4659 = vunpack.c.l.b16 %v4563
        %v4660 = vunpack.c.l.b16 %v4564
        %v4661 = vunpack.c.l.b16 %v4565
        %v4662 = vunpack.c.l.b16 %v4566
        %v4663 = vunpack.c.l.b16 %v4567
        %v4664 = vunpack.c.l.b16 %v4568
        %v4665 = vunpack.c.l.b16 %v4569
        %v4666 = vunpack.c.l.b16 %v4570
        %v4667 = vunpack.c.l.b16 %v4571
        %v4668 = vunpack.c.l.b16 %v4572
        %v4669 = vunpack.c.l.b16 %v4573
        %v4670 = vunpack.c.l.b16 %v4574
        %v4671 = vunpack.c.l.b16 %v4575
        %v4672 = vpack.c.b16 %v4657, %v4656
        %v4673 = vpack.c.b16 %v4659, %v4658
        %v4674 = vpack.c.b16 %v4661, %v4660
        %v4675 = vpack.c.b16 %v4663, %v4662
        %v4676 = vpack.c.b16 %v4665, %v4664
        %v4677 = vpack.c.b16 %v4667, %v4666
        %v4678 = vpack.c.b16 %v4669, %v4668
        %v4679 = vpack.c.b16 %v4671, %v4670
        %4688 = vmatprep.subr.bf16.mxu0 0
        %4689 = vmatpush1.bf16.msra.mxu0 %v4672
        %4690 = vmatprep.subr.bf16.mxu0 0
        %4691 = vmatpush1.bf16.msra.mxu0 %v4673
        %4692 = vmatprep.subr.bf16.mxu0 0
        %4693 = vmatpush1.bf16.msra.mxu0 %v4674
        %4694 = vmatprep.subr.bf16.mxu0 0
        %4695 = vmatpush1.bf16.msra.mxu0 %v4675
        %4696 = vmatprep.subr.bf16.mxu0 0
        %4697 = vmatpush1.bf16.msra.mxu0 %v4676
        %4698 = vmatprep.subr.bf16.mxu0 0
        %4699 = vmatpush1.bf16.msra.mxu0 %v4677
        %4700 = vmatprep.subr.bf16.mxu0 0
        %4701 = vmatpush1.bf16.msra.mxu0 %v4678
        %4702 = vmatprep.subr.bf16.mxu0 0
        %4703 = vmatpush1.bf16.msra.mxu0 %v4679
        %4704 = vmatprep.subr.bf16.mxu0 0
        %4705 = vmatpush1.bf16.msra.mxu0 0
        %4706 = vmatprep.subr.bf16.mxu0 0
        %4707 = vmatpush1.bf16.msra.mxu0 0
        %4708 = vmatprep.subr.bf16.mxu0 0
        %4709 = vmatpush1.bf16.msra.mxu0 0
        %4710 = vmatprep.subr.bf16.mxu0 0
        %4711 = vmatpush1.bf16.msra.mxu0 0
        %4712 = vmatprep.subr.bf16.mxu0 0
        %4713 = vmatpush1.bf16.msra.mxu0 0
        %4714 = vmatprep.subr.bf16.mxu0 0
        %4715 = vmatpush1.bf16.msra.mxu0 0
        %4716 = vmatprep.subr.bf16.mxu0 0
        %4717 = vmatpush1.bf16.msra.mxu0 0
        %4718 = vmatprep.subr.bf16.mxu0 0
        %4719 = vmatpush1.bf16.msra.mxu0 0
        %4720 = vmatprep.mubr.bf16.mxu0 0
        %4721 = vmatmul.mubr.bf16.gmra.mrb[0].mxu0 %v4608
        %v4722 = vpop.f32.mrb[0].mxu0
        %v4723 = vadd.f32 0.0, %v4722
        %v4724 = vpop.f32.mrb[0].mxu0
        %v4725 = vpop.f32.mrb[0].mxu0
        %v4726 = vadd.f32 0.0, %v4725
        %v4727 = vpop.f32.mrb[0].mxu0
        %4728 = vmatprep.mubr.bf16.mxu0 0
        %4729 = vmatmul.mubr.bf16.gmra.mrb[0].mxu0 %v4609
        %v4730 = vpop.f32.mrb[0].mxu0
        %v4731 = vadd.f32 0.0, %v4730
        %v4732 = vpop.f32.mrb[0].mxu0
        %v4733 = vpop.f32.mrb[0].mxu0
        %v4734 = vadd.f32 0.0, %v4733
        %v4735 = vpop.f32.mrb[0].mxu0
        %4736 = vmatprep.mubr.bf16.mxu0 0
        %4737 = vmatmul.mubr.bf16.gmra.mrb[0].mxu0 %v4610
        %v4738 = vpop.f32.mrb[0].mxu0
        %v4739 = vadd.f32 0.0, %v4738
        %v4740 = vpop.f32.mrb[0].mxu0
        %v4741 = vpop.f32.mrb[0].mxu0
        %v4742 = vadd.f32 0.0, %v4741
        %v4743 = vpop.f32.mrb[0].mxu0
        %4744 = vmatprep.mubr.bf16.mxu0 0
        %4745 = vmatmul.mubr.bf16.gmra.mrb[0].mxu0 %v4611
        %v4746 = vpop.f32.mrb[0].mxu0
        %v4747 = vadd.f32 0.0, %v4746
        %v4748 = vpop.f32.mrb[0].mxu0
        %v4749 = vpop.f32.mrb[0].mxu0
        %v4750 = vadd.f32 0.0, %v4749
        %v4751 = vpop.f32.mrb[0].mxu0
        %4752 = vmatprep.mubr.bf16.mxu0 0
        %4753 = vmatmul.mubr.bf16.gmra.mrb[0].mxu0 %v4612
        %v4754 = vpop.f32.mrb[0].mxu0
        %v4755 = vadd.f32 0.0, %v4754
        %v4756 = vpop.f32.mrb[0].mxu0
        %v4757 = vpop.f32.mrb[0].mxu0
        %v4758 = vadd.f32 0.0, %v4757
        %v4759 = vpop.f32.mrb[0].mxu0
        %4760 = vmatprep.mubr.bf16.mxu0 0
        %4761 = vmatmul.mubr.bf16.gmra.mrb[0].mxu0 %v4613
        %v4762 = vpop.f32.mrb[0].mxu0
        %v4763 = vadd.f32 0.0, %v4762
        %v4764 = vpop.f32.mrb[0].mxu0
        %v4765 = vpop.f32.mrb[0].mxu0
        %v4766 = vadd.f32 0.0, %v4765
        %v4767 = vpop.f32.mrb[0].mxu0
        %4768 = vmatprep.mubr.bf16.mxu0 0
        %4769 = vmatmul.mubr.bf16.gmra.mrb[0].mxu0 %v4614
        %v4770 = vpop.f32.mrb[0].mxu0
        %v4771 = vadd.f32 0.0, %v4770
        %v4772 = vpop.f32.mrb[0].mxu0
        %v4773 = vpop.f32.mrb[0].mxu0
        %v4774 = vadd.f32 0.0, %v4773
        %v4775 = vpop.f32.mrb[0].mxu0
        %4776 = vmatprep.mubr.bf16.mxu0 0
        %4777 = vmatmul.mubr.bf16.gmra.mrb[0].mxu0 %v4615
        %v4778 = vpop.f32.mrb[0].mxu0
        %v4779 = vadd.f32 0.0, %v4778
        %v4780 = vpop.f32.mrb[0].mxu0
        %v4781 = vpop.f32.mrb[0].mxu0
        %v4782 = vadd.f32 0.0, %v4781
        %v4783 = vpop.f32.mrb[0].mxu0
        %4784 = vmatprep.mubr.bf16.mxu0 0
        %4785 = vmatmul.mubr.bf16.gmra.mrb[0].mxu0 %v4616
        %v4786 = vpop.f32.mrb[0].mxu0
        %v4787 = vadd.f32 0.0, %v4786
        %v4788 = vpop.f32.mrb[0].mxu0
        %v4789 = vpop.f32.mrb[0].mxu0
        %v4790 = vadd.f32 0.0, %v4789
        %v4791 = vpop.f32.mrb[0].mxu0
        %4792 = vmatprep.mubr.bf16.mxu0 0
        %4793 = vmatmul.mubr.bf16.gmra.mrb[0].mxu0 %v4617
        %v4794 = vpop.f32.mrb[0].mxu0
        %v4795 = vadd.f32 0.0, %v4794
        %v4796 = vpop.f32.mrb[0].mxu0
        %v4797 = vpop.f32.mrb[0].mxu0
        %v4798 = vadd.f32 0.0, %v4797
        %v4799 = vpop.f32.mrb[0].mxu0
        %4800 = vmatprep.mubr.bf16.mxu0 0
        %4801 = vmatmul.mubr.bf16.gmra.mrb[0].mxu0 %v4618
        %v4802 = vpop.f32.mrb[0].mxu0
        %v4803 = vadd.f32 0.0, %v4802
        %v4804 = vpop.f32.mrb[0].mxu0
        %v4805 = vpop.f32.mrb[0].mxu0
        %v4806 = vadd.f32 0.0, %v4805
        %v4807 = vpop.f32.mrb[0].mxu0
        %4808 = vmatprep.mubr.bf16.mxu0 0
        %4809 = vmatmul.mubr.bf16.gmra.mrb[0].mxu0 %v4619
        %v4810 = vpop.f32.mrb[0].mxu0
        %v4811 = vadd.f32 0.0, %v4810
        %v4812 = vpop.f32.mrb[0].mxu0
        %v4813 = vpop.f32.mrb[0].mxu0
        %v4814 = vadd.f32 0.0, %v4813
        %v4815 = vpop.f32.mrb[0].mxu0
        %4816 = vmatprep.mubr.bf16.mxu0 0
        %4817 = vmatmul.mubr.bf16.gmra.mrb[0].mxu0 %v4620
        %v4818 = vpop.f32.mrb[0].mxu0
        %v4819 = vadd.f32 0.0, %v4818
        %v4820 = vpop.f32.mrb[0].mxu0
        %v4821 = vpop.f32.mrb[0].mxu0
        %v4822 = vadd.f32 0.0, %v4821
        %v4823 = vpop.f32.mrb[0].mxu0
        %4824 = vmatprep.mubr.bf16.mxu0 0
        %4825 = vmatmul.mubr.bf16.gmra.mrb[0].mxu0 %v4621
        %v4826 = vpop.f32.mrb[0].mxu0
        %v4827 = vadd.f32 0.0, %v4826
        %v4828 = vpop.f32.mrb[0].mxu0
        %v4829 = vpop.f32.mrb[0].mxu0
        %v4830 = vadd.f32 0.0, %v4829
        %v4831 = vpop.f32.mrb[0].mxu0
        %4832 = vmatprep.mubr.bf16.mxu0 0
        %4833 = vmatmul.mubr.bf16.gmra.mrb[0].mxu0 %v4622
        %v4834 = vpop.f32.mrb[0].mxu0
        %v4835 = vadd.f32 0.0, %v4834
        %v4836 = vpop.f32.mrb[0].mxu0
        %v4837 = vpop.f32.mrb[0].mxu0
        %v4838 = vadd.f32 0.0, %v4837
        %v4839 = vpop.f32.mrb[0].mxu0
        %4840 = vmatprep.mubr.bf16.mxu0 0
        %4841 = vmatmul.mubr.bf16.gmra.mrb[0].mxu0 %v4623
        %v4842 = vpop.f32.mrb[0].mxu0
        %v4843 = vadd.f32 0.0, %v4842
        %v4844 = vpop.f32.mrb[0].mxu0
        %v4845 = vpop.f32.mrb[0].mxu0
        %v4846 = vadd.f32 0.0, %v4845
        %v4847 = vpop.f32.mrb[0].mxu0
        %4848 = vdwg.mxu0
        %v4881 = vunpack.c.l.b16 %v4031
        %v4882 = vunpack.c.l.b16 %v4032
        %v4883 = vunpack.c.l.b16 %v4033
        %v4884 = vunpack.c.l.b16 %v4034
        %v4885 = vunpack.c.l.b16 %v4035
        %v4886 = vunpack.c.l.b16 %v4036
        %v4887 = vunpack.c.l.b16 %v4037
        %v4888 = vunpack.c.l.b16 %v4038
        %v4889 = vunpack.c.l.b16 %v4039
        %v4890 = vunpack.c.l.b16 %v4040
        %v4891 = vunpack.c.l.b16 %v4041
        %v4892 = vunpack.c.l.b16 %v4042
        %v4893 = vunpack.c.l.b16 %v4043
        %v4894 = vunpack.c.l.b16 %v4044
        %v4895 = vunpack.c.l.b16 %v4045
        %v4896 = vunpack.c.l.b16 %v4046
        %v4897 = vunpack.c.l.b16 %v4047
        %v4898 = vunpack.c.l.b16 %v4048
        %v4899 = vunpack.c.l.b16 %v4049
        %v4900 = vunpack.c.l.b16 %v4050
        %v4901 = vunpack.c.l.b16 %v4051
        %v4902 = vunpack.c.l.b16 %v4052
        %v4903 = vunpack.c.l.b16 %v4053
        %v4904 = vunpack.c.l.b16 %v4054
        %v4905 = vunpack.c.l.b16 %v4055
        %v4906 = vunpack.c.l.b16 %v4056
        %v4907 = vunpack.c.l.b16 %v4057
        %v4908 = vunpack.c.l.b16 %v4058
        %v4909 = vunpack.c.l.b16 %v4059
        %v4910 = vunpack.c.l.b16 %v4060
        %v4911 = vunpack.c.l.b16 %v4061
        %v4912 = vunpack.c.l.b16 %v4062
        %v4913 = vpack.c.b16 %v4882, %v4881
        %v4914 = vpack.c.b16 %v4884, %v4883
        %v4915 = vpack.c.b16 %v4886, %v4885
        %v4916 = vpack.c.b16 %v4888, %v4887
        %v4917 = vpack.c.b16 %v4890, %v4889
        %v4918 = vpack.c.b16 %v4892, %v4891
        %v4919 = vpack.c.b16 %v4894, %v4893
        %v4920 = vpack.c.b16 %v4896, %v4895
        %v4921 = vpack.c.b16 %v4898, %v4897
        %v4922 = vpack.c.b16 %v4900, %v4899
        %v4923 = vpack.c.b16 %v4902, %v4901
        %v4924 = vpack.c.b16 %v4904, %v4903
        %v4925 = vpack.c.b16 %v4906, %v4905
        %v4926 = vpack.c.b16 %v4908, %v4907
        %v4927 = vpack.c.b16 %v4910, %v4909
        %v4928 = vpack.c.b16 %v4912, %v4911
        %v4961 = vunpack.c.l.b16 %v4063
        %v4962 = vunpack.c.l.b16 %v4064
        %v4963 = vunpack.c.l.b16 %v4065
        %v4964 = vunpack.c.l.b16 %v4066
        %v4965 = vunpack.c.l.b16 %v4067
        %v4966 = vunpack.c.l.b16 %v4068
        %v4967 = vunpack.c.l.b16 %v4069
        %v4968 = vunpack.c.l.b16 %v4070
        %v4969 = vunpack.c.l.b16 %v4071
        %v4970 = vunpack.c.l.b16 %v4072
        %v4971 = vunpack.c.l.b16 %v4073
        %v4972 = vunpack.c.l.b16 %v4074
        %v4973 = vunpack.c.l.b16 %v4075
        %v4974 = vunpack.c.l.b16 %v4076
        %v4975 = vunpack.c.l.b16 %v4077
        %v4976 = vunpack.c.l.b16 %v4078
        %v4977 = vpack.c.b16 %v4962, %v4961
        %v4978 = vpack.c.b16 %v4964, %v4963
        %v4979 = vpack.c.b16 %v4966, %v4965
        %v4980 = vpack.c.b16 %v4968, %v4967
        %v4981 = vpack.c.b16 %v4970, %v4969
        %v4982 = vpack.c.b16 %v4972, %v4971
        %v4983 = vpack.c.b16 %v4974, %v4973
        %v4984 = vpack.c.b16 %v4976, %v4975
        %4993 = vmatprep.subr.bf16.mxu0 0
        %4994 = vmatpush1.bf16.msra.mxu0 %v4977
        %4995 = vmatprep.subr.bf16.mxu0 0
        %4996 = vmatpush1.bf16.msra.mxu0 %v4978
        %4997 = vmatprep.subr.bf16.mxu0 0
        %4998 = vmatpush1.bf16.msra.mxu0 %v4979
        %4999 = vmatprep.subr.bf16.mxu0 0
        %5000 = vmatpush1.bf16.msra.mxu0 %v4980
        %5001 = vmatprep.subr.bf16.mxu0 0
        %5002 = vmatpush1.bf16.msra.mxu0 %v4981
        %5003 = vmatprep.subr.bf16.mxu0 0
        %5004 = vmatpush1.bf16.msra.mxu0 %v4982
        %5005 = vmatprep.subr.bf16.mxu0 0
        %5006 = vmatpush1.bf16.msra.mxu0 %v4983
        %5007 = vmatprep.subr.bf16.mxu0 0
        %5008 = vmatpush1.bf16.msra.mxu0 %v4984
        %5009 = vmatprep.subr.bf16.mxu0 0
        %5010 = vmatpush1.bf16.msra.mxu0 0
        %5011 = vmatprep.subr.bf16.mxu0 0
        %5012 = vmatpush1.bf16.msra.mxu0 0
        %5013 = vmatprep.subr.bf16.mxu0 0
        %5014 = vmatpush1.bf16.msra.mxu0 0
        %5015 = vmatprep.subr.bf16.mxu0 0
        %5016 = vmatpush1.bf16.msra.mxu0 0
        %5017 = vmatprep.subr.bf16.mxu0 0
        %5018 = vmatpush1.bf16.msra.mxu0 0
        %5019 = vmatprep.subr.bf16.mxu0 0
        %5020 = vmatpush1.bf16.msra.mxu0 0
        %5021 = vmatprep.subr.bf16.mxu0 0
        %5022 = vmatpush1.bf16.msra.mxu0 0
        %5023 = vmatprep.subr.bf16.mxu0 0
        %5024 = vmatpush1.bf16.msra.mxu0 0
        %5025 = vmatprep.mubr.bf16.mxu0 0
        %5026 = vmatmul.mubr.bf16.gmra.mrb[0].mxu0 %v4913
        %v5027 = vpop.f32.mrb[0].mxu0
        %v5028 = vadd.f32 %v4723, %v5027
        %v5029 = vpop.f32.mrb[0].mxu0
        %v5030 = vpop.f32.mrb[0].mxu0
        %v5031 = vadd.f32 %v4726, %v5030
        %v5032 = vpop.f32.mrb[0].mxu0
        %5033 = vmatprep.mubr.bf16.mxu0 0
        %5034 = vmatmul.mubr.bf16.gmra.mrb[0].mxu0 %v4914
        %v5035 = vpop.f32.mrb[0].mxu0
        %v5036 = vadd.f32 %v4731, %v5035
        %v5037 = vpop.f32.mrb[0].mxu0
        %v5038 = vpop.f32.mrb[0].mxu0
        %v5039 = vadd.f32 %v4734, %v5038
        %v5040 = vpop.f32.mrb[0].mxu0
        %5041 = vmatprep.mubr.bf16.mxu0 0
        %5042 = vmatmul.mubr.bf16.gmra.mrb[0].mxu0 %v4915
        %v5043 = vpop.f32.mrb[0].mxu0
        %v5044 = vadd.f32 %v4739, %v5043
        %v5045 = vpop.f32.mrb[0].mxu0
        %v5046 = vpop.f32.mrb[0].mxu0
        %v5047 = vadd.f32 %v4742, %v5046
        %v5048 = vpop.f32.mrb[0].mxu0
        %5049 = vmatprep.mubr.bf16.mxu0 0
        %5050 = vmatmul.mubr.bf16.gmra.mrb[0].mxu0 %v4916
        %v5051 = vpop.f32.mrb[0].mxu0
        %v5052 = vadd.f32 %v4747, %v5051
        %v5053 = vpop.f32.mrb[0].mxu0
        %v5054 = vpop.f32.mrb[0].mxu0
        %v5055 = vadd.f32 %v4750, %v5054
        %v5056 = vpop.f32.mrb[0].mxu0
        %5057 = vmatprep.mubr.bf16.mxu0 0
        %5058 = vmatmul.mubr.bf16.gmra.mrb[0].mxu0 %v4917
        %v5059 = vpop.f32.mrb[0].mxu0
        %v5060 = vadd.f32 %v4755, %v5059
        %v5061 = vpop.f32.mrb[0].mxu0
        %v5062 = vpop.f32.mrb[0].mxu0
        %v5063 = vadd.f32 %v4758, %v5062
        %v5064 = vpop.f32.mrb[0].mxu0
        %5065 = vmatprep.mubr.bf16.mxu0 0
        %5066 = vmatmul.mubr.bf16.gmra.mrb[0].mxu0 %v4918
        %v5067 = vpop.f32.mrb[0].mxu0
        %v5068 = vadd.f32 %v4763, %v5067
        %v5069 = vpop.f32.mrb[0].mxu0
        %v5070 = vpop.f32.mrb[0].mxu0
        %v5071 = vadd.f32 %v4766, %v5070
        %v5072 = vpop.f32.mrb[0].mxu0
        %5073 = vmatprep.mubr.bf16.mxu0 0
        %5074 = vmatmul.mubr.bf16.gmra.mrb[0].mxu0 %v4919
        %v5075 = vpop.f32.mrb[0].mxu0
        %v5076 = vadd.f32 %v4771, %v5075
        %v5077 = vpop.f32.mrb[0].mxu0
        %v5078 = vpop.f32.mrb[0].mxu0
        %v5079 = vadd.f32 %v4774, %v5078
        %v5080 = vpop.f32.mrb[0].mxu0
        %5081 = vmatprep.mubr.bf16.mxu0 0
        %5082 = vmatmul.mubr.bf16.gmra.mrb[0].mxu0 %v4920
        %v5083 = vpop.f32.mrb[0].mxu0
        %v5084 = vadd.f32 %v4779, %v5083
        %v5085 = vpop.f32.mrb[0].mxu0
        %v5086 = vpop.f32.mrb[0].mxu0
        %v5087 = vadd.f32 %v4782, %v5086
        %v5088 = vpop.f32.mrb[0].mxu0
        %5089 = vmatprep.mubr.bf16.mxu0 0
        %5090 = vmatmul.mubr.bf16.gmra.mrb[0].mxu0 %v4921
        %v5091 = vpop.f32.mrb[0].mxu0
        %v5092 = vadd.f32 %v4787, %v5091
        %v5093 = vpop.f32.mrb[0].mxu0
        %v5094 = vpop.f32.mrb[0].mxu0
        %v5095 = vadd.f32 %v4790, %v5094
        %v5096 = vpop.f32.mrb[0].mxu0
        %5097 = vmatprep.mubr.bf16.mxu0 0
        %5098 = vmatmul.mubr.bf16.gmra.mrb[0].mxu0 %v4922
        %v5099 = vpop.f32.mrb[0].mxu0
        %v5100 = vadd.f32 %v4795, %v5099
        %v5101 = vpop.f32.mrb[0].mxu0
        %v5102 = vpop.f32.mrb[0].mxu0
        %v5103 = vadd.f32 %v4798, %v5102
        %v5104 = vpop.f32.mrb[0].mxu0
        %5105 = vmatprep.mubr.bf16.mxu0 0
        %5106 = vmatmul.mubr.bf16.gmra.mrb[0].mxu0 %v4923
        %v5107 = vpop.f32.mrb[0].mxu0
        %v5108 = vadd.f32 %v4803, %v5107
        %v5109 = vpop.f32.mrb[0].mxu0
        %v5110 = vpop.f32.mrb[0].mxu0
        %v5111 = vadd.f32 %v4806, %v5110
        %v5112 = vpop.f32.mrb[0].mxu0
        %5113 = vmatprep.mubr.bf16.mxu0 0
        %5114 = vmatmul.mubr.bf16.gmra.mrb[0].mxu0 %v4924
        %v5115 = vpop.f32.mrb[0].mxu0
        %v5116 = vadd.f32 %v4811, %v5115
        %v5117 = vpop.f32.mrb[0].mxu0
        %v5118 = vpop.f32.mrb[0].mxu0
        %v5119 = vadd.f32 %v4814, %v5118
        %v5120 = vpop.f32.mrb[0].mxu0
        %5121 = vmatprep.mubr.bf16.mxu0 0
        %5122 = vmatmul.mubr.bf16.gmra.mrb[0].mxu0 %v4925
        %v5123 = vpop.f32.mrb[0].mxu0
        %v5124 = vadd.f32 %v4819, %v5123
        %v5125 = vpop.f32.mrb[0].mxu0
        %v5126 = vpop.f32.mrb[0].mxu0
        %v5127 = vadd.f32 %v4822, %v5126
        %v5128 = vpop.f32.mrb[0].mxu0
        %5129 = vmatprep.mubr.bf16.mxu0 0
        %5130 = vmatmul.mubr.bf16.gmra.mrb[0].mxu0 %v4926
        %v5131 = vpop.f32.mrb[0].mxu0
        %v5132 = vadd.f32 %v4827, %v5131
        %v5133 = vpop.f32.mrb[0].mxu0
        %v5134 = vpop.f32.mrb[0].mxu0
        %v5135 = vadd.f32 %v4830, %v5134
        %v5136 = vpop.f32.mrb[0].mxu0
        %5137 = vmatprep.mubr.bf16.mxu0 0
        %5138 = vmatmul.mubr.bf16.gmra.mrb[0].mxu0 %v4927
        %v5139 = vpop.f32.mrb[0].mxu0
        %v5140 = vadd.f32 %v4835, %v5139
        %v5141 = vpop.f32.mrb[0].mxu0
        %v5142 = vpop.f32.mrb[0].mxu0
        %v5143 = vadd.f32 %v4838, %v5142
        %v5144 = vpop.f32.mrb[0].mxu0
        %5145 = vmatprep.mubr.bf16.mxu0 0
        %5146 = vmatmul.mubr.bf16.gmra.mrb[0].mxu0 %v4928
        %v5147 = vpop.f32.mrb[0].mxu0
        %v5148 = vadd.f32 %v4843, %v5147
        %v5149 = vpop.f32.mrb[0].mxu0
        %v5150 = vpop.f32.mrb[0].mxu0
        %v5151 = vadd.f32 %v4846, %v5150
        %v5152 = vpop.f32.mrb[0].mxu0
        %5153 = vdwg.mxu0
        %v5154 = vld [vmem:[#allocation3] sm:$0xe]
        %v5155 = vld [vmem:[#allocation3 + $0x8] sm:$0xe]
        %v5156 = vld [vmem:[#allocation3 + $0x10] sm:$0xe]
        %v5157 = vld [vmem:[#allocation3 + $0x18] sm:$0xe]
        %v5158 = vld [vmem:[#allocation3 + $0x20] sm:$0xe]
        %v5159 = vld [vmem:[#allocation3 + $0x28] sm:$0xe]
        %v5160 = vld [vmem:[#allocation3 + $0x30] sm:$0xe]
        %v5161 = vld [vmem:[#allocation3 + $0x38] sm:$0xe]
        %v5162 = vld [vmem:[#allocation3 + $0x40] sm:$0xe]
        %v5163 = vld [vmem:[#allocation3 + $0x48] sm:$0xe]
        %v5164 = vld [vmem:[#allocation3 + $0x50] sm:$0xe]
        %v5165 = vld [vmem:[#allocation3 + $0x58] sm:$0xe]
        %v5166 = vld [vmem:[#allocation3 + $0x60] sm:$0xe]
        %v5167 = vld [vmem:[#allocation3 + $0x68] sm:$0xe]
        %v5168 = vld [vmem:[#allocation3 + $0x70] sm:$0xe]
        %v5169 = vld [vmem:[#allocation3 + $0x78] sm:$0xe]
        %v5170 = vld [vmem:[#allocation3 + $0x80] sm:$0xe]
        %v5171 = vld [vmem:[#allocation3 + $0x88] sm:$0xe]
        %v5172 = vld [vmem:[#allocation3 + $0x90] sm:$0xe]
        %v5173 = vld [vmem:[#allocation3 + $0x98] sm:$0xe]
        %v5174 = vld [vmem:[#allocation3 + $0xa0] sm:$0xe]
        %v5175 = vld [vmem:[#allocation3 + $0xa8] sm:$0xe]
        %v5176 = vld [vmem:[#allocation3 + $0xb0] sm:$0xe]
        %v5177 = vld [vmem:[#allocation3 + $0xb8] sm:$0xe]
        %v5178 = vld [vmem:[#allocation3 + $0xc0] sm:$0xe]
        %v5179 = vld [vmem:[#allocation3 + $0xc8] sm:$0xe]
        %v5180 = vld [vmem:[#allocation3 + $0xd0] sm:$0xe]
        %v5181 = vld [vmem:[#allocation3 + $0xd8] sm:$0xe]
        %v5182 = vld [vmem:[#allocation3 + $0xe0] sm:$0xe]
        %v5183 = vld [vmem:[#allocation3 + $0xe8] sm:$0xe]
        %v5184 = vld [vmem:[#allocation3 + $0xf0] sm:$0xe]
        %v5185 = vld [vmem:[#allocation3 + $0xf8] sm:$0xe]
        %v5250 = vrot.slane %v5154, 5
        %v5251 = vrot.slane %v5250, 4
        %v5252 = vrot.slane %v4079, 5
        %v5253 = vsel %vm2549, %v5251, %v5252
        %v5254 = vrot.slane %v5155, 5
        %v5255 = vrot.slane %v5254, 4
        %v5256 = vrot.slane %v4080, 5
        %v5257 = vsel %vm2549, %v5255, %v5256
        %v5258 = vrot.slane %v5156, 5
        %v5259 = vrot.slane %v5258, 4
        %v5260 = vrot.slane %v4081, 5
        %v5261 = vsel %vm2549, %v5259, %v5260
        %v5262 = vrot.slane %v5157, 5
        %v5263 = vrot.slane %v5262, 4
        %v5264 = vrot.slane %v4082, 5
        %v5265 = vsel %vm2549, %v5263, %v5264
        %v5266 = vrot.slane %v5158, 5
        %v5267 = vrot.slane %v5266, 4
        %v5268 = vrot.slane %v4083, 5
        %v5269 = vsel %vm2549, %v5267, %v5268
        %v5270 = vrot.slane %v5159, 5
        %v5271 = vrot.slane %v5270, 4
        %v5272 = vrot.slane %v4084, 5
        %v5273 = vsel %vm2549, %v5271, %v5272
        %v5274 = vrot.slane %v5160, 5
        %v5275 = vrot.slane %v5274, 4
        %v5276 = vrot.slane %v4085, 5
        %v5277 = vsel %vm2549, %v5275, %v5276
        %v5278 = vrot.slane %v5161, 5
        %v5279 = vrot.slane %v5278, 4
        %v5280 = vrot.slane %v4086, 5
        %v5281 = vsel %vm2549, %v5279, %v5280
        %v5282 = vrot.slane %v5162, 5
        %v5283 = vrot.slane %v5282, 4
        %v5284 = vrot.slane %v4087, 5
        %v5285 = vsel %vm2549, %v5283, %v5284
        %v5286 = vrot.slane %v5163, 5
        %v5287 = vrot.slane %v5286, 4
        %v5288 = vrot.slane %v4088, 5
        %v5289 = vsel %vm2549, %v5287, %v5288
        %v5290 = vrot.slane %v5164, 5
        %v5291 = vrot.slane %v5290, 4
        %v5292 = vrot.slane %v4089, 5
        %v5293 = vsel %vm2549, %v5291, %v5292
        %v5294 = vrot.slane %v5165, 5
        %v5295 = vrot.slane %v5294, 4
        %v5296 = vrot.slane %v4090, 5
        %v5297 = vsel %vm2549, %v5295, %v5296
        %v5298 = vrot.slane %v5166, 5
        %v5299 = vrot.slane %v5298, 4
        %v5300 = vrot.slane %v4091, 5
        %v5301 = vsel %vm2549, %v5299, %v5300
        %v5302 = vrot.slane %v5167, 5
        %v5303 = vrot.slane %v5302, 4
        %v5304 = vrot.slane %v4092, 5
        %v5305 = vsel %vm2549, %v5303, %v5304
        %v5306 = vrot.slane %v5168, 5
        %v5307 = vrot.slane %v5306, 4
        %v5308 = vrot.slane %v4093, 5
        %v5309 = vsel %vm2549, %v5307, %v5308
        %v5310 = vrot.slane %v5169, 5
        %v5311 = vrot.slane %v5310, 4
        %v5312 = vrot.slane %v4094, 5
        %v5313 = vsel %vm2549, %v5311, %v5312
        %v5314 = vrot.slane %v5170, 5
        %v5315 = vrot.slane %v5314, 4
        %v5316 = vrot.slane %v4095, 5
        %v5317 = vsel %vm2549, %v5315, %v5316
        %v5318 = vrot.slane %v5171, 5
        %v5319 = vrot.slane %v5318, 4
        %v5320 = vrot.slane %v4096, 5
        %v5321 = vsel %vm2549, %v5319, %v5320
        %v5322 = vrot.slane %v5172, 5
        %v5323 = vrot.slane %v5322, 4
        %v5324 = vrot.slane %v4097, 5
        %v5325 = vsel %vm2549, %v5323, %v5324
        %v5326 = vrot.slane %v5173, 5
        %v5327 = vrot.slane %v5326, 4
        %v5328 = vrot.slane %v4098, 5
        %v5329 = vsel %vm2549, %v5327, %v5328
        %v5330 = vrot.slane %v5174, 5
        %v5331 = vrot.slane %v5330, 4
        %v5332 = vrot.slane %v4099, 5
        %v5333 = vsel %vm2549, %v5331, %v5332
        %v5334 = vrot.slane %v5175, 5
        %v5335 = vrot.slane %v5334, 4
        %v5336 = vrot.slane %v4100, 5
        %v5337 = vsel %vm2549, %v5335, %v5336
        %v5338 = vrot.slane %v5176, 5
        %v5339 = vrot.slane %v5338, 4
        %v5340 = vrot.slane %v4101, 5
        %v5341 = vsel %vm2549, %v5339, %v5340
        %v5342 = vrot.slane %v5177, 5
        %v5343 = vrot.slane %v5342, 4
        %v5344 = vrot.slane %v4102, 5
        %v5345 = vsel %vm2549, %v5343, %v5344
        %v5346 = vrot.slane %v5178, 5
        %v5347 = vrot.slane %v5346, 4
        %v5348 = vrot.slane %v4103, 5
        %v5349 = vsel %vm2549, %v5347, %v5348
        %v5350 = vrot.slane %v5179, 5
        %v5351 = vrot.slane %v5350, 4
        %v5352 = vrot.slane %v4104, 5
        %v5353 = vsel %vm2549, %v5351, %v5352
        %v5354 = vrot.slane %v5180, 5
        %v5355 = vrot.slane %v5354, 4
        %v5356 = vrot.slane %v4105, 5
        %v5357 = vsel %vm2549, %v5355, %v5356
        %v5358 = vrot.slane %v5181, 5
        %v5359 = vrot.slane %v5358, 4
        %v5360 = vrot.slane %v4106, 5
        %v5361 = vsel %vm2549, %v5359, %v5360
        %v5362 = vrot.slane %v5182, 5
        %v5363 = vrot.slane %v5362, 4
        %v5364 = vrot.slane %v4107, 5
        %v5365 = vsel %vm2549, %v5363, %v5364
        %v5366 = vrot.slane %v5183, 5
        %v5367 = vrot.slane %v5366, 4
        %v5368 = vrot.slane %v4108, 5
        %v5369 = vsel %vm2549, %v5367, %v5368
        %v5370 = vrot.slane %v5184, 5
        %v5371 = vrot.slane %v5370, 4
        %v5372 = vrot.slane %v4109, 5
        %v5373 = vsel %vm2549, %v5371, %v5372
        %v5374 = vrot.slane %v5185, 5
        %v5375 = vrot.slane %v5374, 4
        %v5376 = vrot.slane %v4110, 5
        %v5377 = vsel %vm2549, %v5375, %v5376
        %s5378 = scalar_lea.vmem %s3, 128
        %v5379 = vld [vmem:[%s5378] sm:$0xf]
        %v5380 = vld [vmem:[%s5378 + $0x4] sm:$0xf]
        %v5381 = vld [vmem:[%s5378 + $0x8] sm:$0xf]
        %v5382 = vld [vmem:[%s5378 + $0xc] sm:$0xf]
        %v5383 = vld [vmem:[%s5378 + $0x10] sm:$0xf]
        %v5384 = vld [vmem:[%s5378 + $0x14] sm:$0xf]
        %v5385 = vld [vmem:[%s5378 + $0x18] sm:$0xf]
        %v5386 = vld [vmem:[%s5378 + $0x1c] sm:$0xf]
        %v5387 = vld [vmem:[%s5378 + $0x20] sm:$0xf]
        %v5388 = vld [vmem:[%s5378 + $0x24] sm:$0xf]
        %v5389 = vld [vmem:[%s5378 + $0x28] sm:$0xf]
        %v5390 = vld [vmem:[%s5378 + $0x2c] sm:$0xf]
        %v5391 = vld [vmem:[%s5378 + $0x30] sm:$0xf]
        %v5392 = vld [vmem:[%s5378 + $0x34] sm:$0xf]
        %v5393 = vld [vmem:[%s5378 + $0x38] sm:$0xf]
        %v5394 = vld [vmem:[%s5378 + $0x3c] sm:$0xf]
        %v5395 = vunpack.c.l.b16 %v5253
        %v5396 = vunpack.c.l.b16 %v5257
        %v5397 = vunpack.c.l.b16 %v5261
        %v5398 = vunpack.c.l.b16 %v5265
        %v5399 = vunpack.c.l.b16 %v5269
        %v5400 = vunpack.c.l.b16 %v5273
        %v5401 = vunpack.c.l.b16 %v5277
        %v5402 = vunpack.c.l.b16 %v5281
        %v5403 = vunpack.c.l.b16 %v5285
        %v5404 = vunpack.c.l.b16 %v5289
        %v5405 = vunpack.c.l.b16 %v5293
        %v5406 = vunpack.c.l.b16 %v5297
        %v5407 = vunpack.c.l.b16 %v5301
        %v5408 = vunpack.c.l.b16 %v5305
        %v5409 = vunpack.c.l.b16 %v5309
        %v5410 = vunpack.c.l.b16 %v5313
        %v5411 = vunpack.c.l.b16 %v5317
        %v5412 = vunpack.c.l.b16 %v5321
        %v5413 = vunpack.c.l.b16 %v5325
        %v5414 = vunpack.c.l.b16 %v5329
        %v5415 = vunpack.c.l.b16 %v5333
        %v5416 = vunpack.c.l.b16 %v5337
        %v5417 = vunpack.c.l.b16 %v5341
        %v5418 = vunpack.c.l.b16 %v5345
        %v5419 = vunpack.c.l.b16 %v5349
        %v5420 = vunpack.c.l.b16 %v5353
        %v5421 = vunpack.c.l.b16 %v5357
        %v5422 = vunpack.c.l.b16 %v5361
        %v5423 = vunpack.c.l.b16 %v5365
        %v5424 = vunpack.c.l.b16 %v5369
        %v5425 = vunpack.c.l.b16 %v5373
        %v5426 = vunpack.c.l.b16 %v5377
        %v5427 = vpack.c.b16 %v5396, %v5395
        %v5428 = vpack.c.b16 %v5398, %v5397
        %v5429 = vpack.c.b16 %v5400, %v5399
        %v5430 = vpack.c.b16 %v5402, %v5401
        %v5431 = vpack.c.b16 %v5404, %v5403
        %v5432 = vpack.c.b16 %v5406, %v5405
        %v5433 = vpack.c.b16 %v5408, %v5407
        %v5434 = vpack.c.b16 %v5410, %v5409
        %v5435 = vpack.c.b16 %v5412, %v5411
        %v5436 = vpack.c.b16 %v5414, %v5413
        %v5437 = vpack.c.b16 %v5416, %v5415
        %v5438 = vpack.c.b16 %v5418, %v5417
        %v5439 = vpack.c.b16 %v5420, %v5419
        %v5440 = vpack.c.b16 %v5422, %v5421
        %v5441 = vpack.c.b16 %v5424, %v5423
        %v5442 = vpack.c.b16 %v5426, %v5425
        %v5475 = vunpack.c.l.b16 %v5379
        %v5476 = vunpack.c.l.b16 %v5380
        %v5477 = vunpack.c.l.b16 %v5381
        %v5478 = vunpack.c.l.b16 %v5382
        %v5479 = vunpack.c.l.b16 %v5383
        %v5480 = vunpack.c.l.b16 %v5384
        %v5481 = vunpack.c.l.b16 %v5385
        %v5482 = vunpack.c.l.b16 %v5386
        %v5483 = vunpack.c.l.b16 %v5387
        %v5484 = vunpack.c.l.b16 %v5388
        %v5485 = vunpack.c.l.b16 %v5389
        %v5486 = vunpack.c.l.b16 %v5390
        %v5487 = vunpack.c.l.b16 %v5391
        %v5488 = vunpack.c.l.b16 %v5392
        %v5489 = vunpack.c.l.b16 %v5393
        %v5490 = vunpack.c.l.b16 %v5394
        %v5491 = vpack.c.b16 %v5476, %v5475
        %v5492 = vpack.c.b16 %v5478, %v5477
        %v5493 = vpack.c.b16 %v5480, %v5479
        %v5494 = vpack.c.b16 %v5482, %v5481
        %v5495 = vpack.c.b16 %v5484, %v5483
        %v5496 = vpack.c.b16 %v5486, %v5485
        %v5497 = vpack.c.b16 %v5488, %v5487
        %v5498 = vpack.c.b16 %v5490, %v5489
        %5507 = vmatprep.subr.bf16.mxu0 0
        %5508 = vmatpush1.bf16.msra.mxu0 %v5491
        %5509 = vmatprep.subr.bf16.mxu0 0
        %5510 = vmatpush1.bf16.msra.mxu0 %v5492
        %5511 = vmatprep.subr.bf16.mxu0 0
        %5512 = vmatpush1.bf16.msra.mxu0 %v5493
        %5513 = vmatprep.subr.bf16.mxu0 0
        %5514 = vmatpush1.bf16.msra.mxu0 %v5494
        %5515 = vmatprep.subr.bf16.mxu0 0
        %5516 = vmatpush1.bf16.msra.mxu0 %v5495
        %5517 = vmatprep.subr.bf16.mxu0 0
        %5518 = vmatpush1.bf16.msra.mxu0 %v5496
        %5519 = vmatprep.subr.bf16.mxu0 0
        %5520 = vmatpush1.bf16.msra.mxu0 %v5497
        %5521 = vmatprep.subr.bf16.mxu0 0
        %5522 = vmatpush1.bf16.msra.mxu0 %v5498
        %5523 = vmatprep.subr.bf16.mxu0 0
        %5524 = vmatpush1.bf16.msra.mxu0 0
        %5525 = vmatprep.subr.bf16.mxu0 0
        %5526 = vmatpush1.bf16.msra.mxu0 0
        %5527 = vmatprep.subr.bf16.mxu0 0
        %5528 = vmatpush1.bf16.msra.mxu0 0
        %5529 = vmatprep.subr.bf16.mxu0 0
        %5530 = vmatpush1.bf16.msra.mxu0 0
        %5531 = vmatprep.subr.bf16.mxu0 0
        %5532 = vmatpush1.bf16.msra.mxu0 0
        %5533 = vmatprep.subr.bf16.mxu0 0
        %5534 = vmatpush1.bf16.msra.mxu0 0
        %5535 = vmatprep.subr.bf16.mxu0 0
        %5536 = vmatpush1.bf16.msra.mxu0 0
        %5537 = vmatprep.subr.bf16.mxu0 0
        %5538 = vmatpush1.bf16.msra.mxu0 0
        %5539 = vmatprep.mubr.bf16.mxu0 0
        %5540 = vmatmul.mubr.bf16.gmra.mrb[0].mxu0 %v5427
        %v5541 = vpop.f32.mrb[0].mxu0
        %v5542 = vadd.f32 0.0, %v5541
        %v5543 = vpop.f32.mrb[0].mxu0
        %v5544 = vpop.f32.mrb[0].mxu0
        %v5545 = vadd.f32 0.0, %v5544
        %v5546 = vpop.f32.mrb[0].mxu0
        %5547 = vmatprep.mubr.bf16.mxu0 0
        %5548 = vmatmul.mubr.bf16.gmra.mrb[0].mxu0 %v5428
        %v5549 = vpop.f32.mrb[0].mxu0
        %v5550 = vadd.f32 0.0, %v5549
        %v5551 = vpop.f32.mrb[0].mxu0
        %v5552 = vpop.f32.mrb[0].mxu0
        %v5553 = vadd.f32 0.0, %v5552
        %v5554 = vpop.f32.mrb[0].mxu0
        %5555 = vmatprep.mubr.bf16.mxu0 0
        %5556 = vmatmul.mubr.bf16.gmra.mrb[0].mxu0 %v5429
        %v5557 = vpop.f32.mrb[0].mxu0
        %v5558 = vadd.f32 0.0, %v5557
        %v5559 = vpop.f32.mrb[0].mxu0
        %v5560 = vpop.f32.mrb[0].mxu0
        %v5561 = vadd.f32 0.0, %v5560
        %v5562 = vpop.f32.mrb[0].mxu0
        %5563 = vmatprep.mubr.bf16.mxu0 0
        %5564 = vmatmul.mubr.bf16.gmra.mrb[0].mxu0 %v5430
        %v5565 = vpop.f32.mrb[0].mxu0
        %v5566 = vadd.f32 0.0, %v5565
        %v5567 = vpop.f32.mrb[0].mxu0
        %v5568 = vpop.f32.mrb[0].mxu0
        %v5569 = vadd.f32 0.0, %v5568
        %v5570 = vpop.f32.mrb[0].mxu0
        %5571 = vmatprep.mubr.bf16.mxu0 0
        %5572 = vmatmul.mubr.bf16.gmra.mrb[0].mxu0 %v5431
        %v5573 = vpop.f32.mrb[0].mxu0
        %v5574 = vadd.f32 0.0, %v5573
        %v5575 = vpop.f32.mrb[0].mxu0
        %v5576 = vpop.f32.mrb[0].mxu0
        %v5577 = vadd.f32 0.0, %v5576
        %v5578 = vpop.f32.mrb[0].mxu0
        %5579 = vmatprep.mubr.bf16.mxu0 0
        %5580 = vmatmul.mubr.bf16.gmra.mrb[0].mxu0 %v5432
        %v5581 = vpop.f32.mrb[0].mxu0
        %v5582 = vadd.f32 0.0, %v5581
        %v5583 = vpop.f32.mrb[0].mxu0
        %v5584 = vpop.f32.mrb[0].mxu0
        %v5585 = vadd.f32 0.0, %v5584
        %v5586 = vpop.f32.mrb[0].mxu0
        %5587 = vmatprep.mubr.bf16.mxu0 0
        %5588 = vmatmul.mubr.bf16.gmra.mrb[0].mxu0 %v5433
        %v5589 = vpop.f32.mrb[0].mxu0
        %v5590 = vadd.f32 0.0, %v5589
        %v5591 = vpop.f32.mrb[0].mxu0
        %v5592 = vpop.f32.mrb[0].mxu0
        %v5593 = vadd.f32 0.0, %v5592
        %v5594 = vpop.f32.mrb[0].mxu0
        %5595 = vmatprep.mubr.bf16.mxu0 0
        %5596 = vmatmul.mubr.bf16.gmra.mrb[0].mxu0 %v5434
        %v5597 = vpop.f32.mrb[0].mxu0
        %v5598 = vadd.f32 0.0, %v5597
        %v5599 = vpop.f32.mrb[0].mxu0
        %v5600 = vpop.f32.mrb[0].mxu0
        %v5601 = vadd.f32 0.0, %v5600
        %v5602 = vpop.f32.mrb[0].mxu0
        %5603 = vmatprep.mubr.bf16.mxu0 0
        %5604 = vmatmul.mubr.bf16.gmra.mrb[0].mxu0 %v5435
        %v5605 = vpop.f32.mrb[0].mxu0
        %v5606 = vadd.f32 0.0, %v5605
        %v5607 = vpop.f32.mrb[0].mxu0
        %v5608 = vpop.f32.mrb[0].mxu0
        %v5609 = vadd.f32 0.0, %v5608
        %v5610 = vpop.f32.mrb[0].mxu0
        %5611 = vmatprep.mubr.bf16.mxu0 0
        %5612 = vmatmul.mubr.bf16.gmra.mrb[0].mxu0 %v5436
        %v5613 = vpop.f32.mrb[0].mxu0
        %v5614 = vadd.f32 0.0, %v5613
        %v5615 = vpop.f32.mrb[0].mxu0
        %v5616 = vpop.f32.mrb[0].mxu0
        %v5617 = vadd.f32 0.0, %v5616
        %v5618 = vpop.f32.mrb[0].mxu0
        %5619 = vmatprep.mubr.bf16.mxu0 0
        %5620 = vmatmul.mubr.bf16.gmra.mrb[0].mxu0 %v5437
        %v5621 = vpop.f32.mrb[0].mxu0
        %v5622 = vadd.f32 0.0, %v5621
        %v5623 = vpop.f32.mrb[0].mxu0
        %v5624 = vpop.f32.mrb[0].mxu0
        %v5625 = vadd.f32 0.0, %v5624
        %v5626 = vpop.f32.mrb[0].mxu0
        %5627 = vmatprep.mubr.bf16.mxu0 0
        %5628 = vmatmul.mubr.bf16.gmra.mrb[0].mxu0 %v5438
        %v5629 = vpop.f32.mrb[0].mxu0
        %v5630 = vadd.f32 0.0, %v5629
        %v5631 = vpop.f32.mrb[0].mxu0
        %v5632 = vpop.f32.mrb[0].mxu0
        %v5633 = vadd.f32 0.0, %v5632
        %v5634 = vpop.f32.mrb[0].mxu0
        %5635 = vmatprep.mubr.bf16.mxu0 0
        %5636 = vmatmul.mubr.bf16.gmra.mrb[0].mxu0 %v5439
        %v5637 = vpop.f32.mrb[0].mxu0
        %v5638 = vadd.f32 0.0, %v5637
        %v5639 = vpop.f32.mrb[0].mxu0
        %v5640 = vpop.f32.mrb[0].mxu0
        %v5641 = vadd.f32 0.0, %v5640
        %v5642 = vpop.f32.mrb[0].mxu0
        %5643 = vmatprep.mubr.bf16.mxu0 0
        %5644 = vmatmul.mubr.bf16.gmra.mrb[0].mxu0 %v5440
        %v5645 = vpop.f32.mrb[0].mxu0
        %v5646 = vadd.f32 0.0, %v5645
        %v5647 = vpop.f32.mrb[0].mxu0
        %v5648 = vpop.f32.mrb[0].mxu0
        %v5649 = vadd.f32 0.0, %v5648
        %v5650 = vpop.f32.mrb[0].mxu0
        %5651 = vmatprep.mubr.bf16.mxu0 0
        %5652 = vmatmul.mubr.bf16.gmra.mrb[0].mxu0 %v5441
        %v5653 = vpop.f32.mrb[0].mxu0
        %v5654 = vadd.f32 0.0, %v5653
        %v5655 = vpop.f32.mrb[0].mxu0
        %v5656 = vpop.f32.mrb[0].mxu0
        %v5657 = vadd.f32 0.0, %v5656
        %v5658 = vpop.f32.mrb[0].mxu0
        %5659 = vmatprep.mubr.bf16.mxu0 0
        %5660 = vmatmul.mubr.bf16.gmra.mrb[0].mxu0 %v5442
        %v5661 = vpop.f32.mrb[0].mxu0
        %v5662 = vadd.f32 0.0, %v5661
        %v5663 = vpop.f32.mrb[0].mxu0
        %v5664 = vpop.f32.mrb[0].mxu0
        %v5665 = vadd.f32 0.0, %v5664
        %v5666 = vpop.f32.mrb[0].mxu0
        %5667 = vdwg.mxu0
        %v5668 = vadd.f32 %v5028, %v5542
        %v5669 = vadd.f32 %v5031, %v5545
        %v5670 = vadd.f32 %v5036, %v5550
        %v5671 = vadd.f32 %v5039, %v5553
        %v5672 = vadd.f32 %v5044, %v5558
        %v5673 = vadd.f32 %v5047, %v5561
        %v5674 = vadd.f32 %v5052, %v5566
        %v5675 = vadd.f32 %v5055, %v5569
        %v5676 = vadd.f32 %v5060, %v5574
        %v5677 = vadd.f32 %v5063, %v5577
        %v5678 = vadd.f32 %v5068, %v5582
        %v5679 = vadd.f32 %v5071, %v5585
        %v5680 = vadd.f32 %v5076, %v5590
        %v5681 = vadd.f32 %v5079, %v5593
        %v5682 = vadd.f32 %v5084, %v5598
        %v5683 = vadd.f32 %v5087, %v5601
        %v5684 = vadd.f32 %v5092, %v5606
        %v5685 = vadd.f32 %v5095, %v5609
        %v5686 = vadd.f32 %v5100, %v5614
        %v5687 = vadd.f32 %v5103, %v5617
        %v5688 = vadd.f32 %v5108, %v5622
        %v5689 = vadd.f32 %v5111, %v5625
        %v5690 = vadd.f32 %v5116, %v5630
        %v5691 = vadd.f32 %v5119, %v5633
        %v5692 = vadd.f32 %v5124, %v5638
        %v5693 = vadd.f32 %v5127, %v5641
        %v5694 = vadd.f32 %v5132, %v5646
        %v5695 = vadd.f32 %v5135, %v5649
        %v5696 = vadd.f32 %v5140, %v5654
        %v5697 = vadd.f32 %v5143, %v5657
        %v5698 = vadd.f32 %v5148, %v5662
        %v5699 = vadd.f32 %v5151, %v5665
        %v5700 = vld [vmem:[%s4] sm:$0x1]
        %v5702 = vlaneseq
        %v5703 = vshrl.u32 %v5702, 7
        %v5704 = vsub.s32 0, %v5703
        %v5705 = vrot.slane %v5700, %v5704
        %v5707 = vadd.f32 %v5668, %v5705
        %v5708 = vadd.f32 %v5669, %v5705
        %v5709 = vadd.f32 %v5670, %v5705
        %v5710 = vadd.f32 %v5671, %v5705
        %v5711 = vadd.f32 %v5672, %v5705
        %v5712 = vadd.f32 %v5673, %v5705
        %v5713 = vadd.f32 %v5674, %v5705
        %v5714 = vadd.f32 %v5675, %v5705
        %v5715 = vadd.f32 %v5676, %v5705
        %v5716 = vadd.f32 %v5677, %v5705
        %v5717 = vadd.f32 %v5678, %v5705
        %v5718 = vadd.f32 %v5679, %v5705
        %v5719 = vadd.f32 %v5680, %v5705
        %v5720 = vadd.f32 %v5681, %v5705
        %v5721 = vadd.f32 %v5682, %v5705
        %v5722 = vadd.f32 %v5683, %v5705
        %v5723 = vadd.f32 %v5684, %v5705
        %v5724 = vadd.f32 %v5685, %v5705
        %v5725 = vadd.f32 %v5686, %v5705
        %v5726 = vadd.f32 %v5687, %v5705
        %v5727 = vadd.f32 %v5688, %v5705
        %v5728 = vadd.f32 %v5689, %v5705
        %v5729 = vadd.f32 %v5690, %v5705
        %v5730 = vadd.f32 %v5691, %v5705
        %v5731 = vadd.f32 %v5692, %v5705
        %v5732 = vadd.f32 %v5693, %v5705
        %v5733 = vadd.f32 %v5694, %v5705
        %v5734 = vadd.f32 %v5695, %v5705
        %v5735 = vadd.f32 %v5696, %v5705
        %v5736 = vadd.f32 %v5697, %v5705
        %v5737 = vadd.f32 %v5698, %v5705
        %v5738 = vadd.f32 %v5699, %v5705
        %v5739 = vmax.f32 %v5707, 0.0
        %v5740 = vmax.f32 %v5708, 0.0
        %v5741 = vmax.f32 %v5709, 0.0
        %v5742 = vmax.f32 %v5710, 0.0
        %v5743 = vmax.f32 %v5711, 0.0
        %v5744 = vmax.f32 %v5712, 0.0
        %v5745 = vmax.f32 %v5713, 0.0
        %v5746 = vmax.f32 %v5714, 0.0
        %v5747 = vmax.f32 %v5715, 0.0
        %v5748 = vmax.f32 %v5716, 0.0
        %v5749 = vmax.f32 %v5717, 0.0
        %v5750 = vmax.f32 %v5718, 0.0
        %v5751 = vmax.f32 %v5719, 0.0
        %v5752 = vmax.f32 %v5720, 0.0
        %v5753 = vmax.f32 %v5721, 0.0
        %v5754 = vmax.f32 %v5722, 0.0
        %v5755 = vmax.f32 %v5723, 0.0
        %v5756 = vmax.f32 %v5724, 0.0
        %v5757 = vmax.f32 %v5725, 0.0
        %v5758 = vmax.f32 %v5726, 0.0
        %v5759 = vmax.f32 %v5727, 0.0
        %v5760 = vmax.f32 %v5728, 0.0
        %v5761 = vmax.f32 %v5729, 0.0
        %v5762 = vmax.f32 %v5730, 0.0
        %v5763 = vmax.f32 %v5731, 0.0
        %v5764 = vmax.f32 %v5732, 0.0
        %v5765 = vmax.f32 %v5733, 0.0
        %v5766 = vmax.f32 %v5734, 0.0
        %v5767 = vmax.f32 %v5735, 0.0
        %v5768 = vmax.f32 %v5736, 0.0
        %v5769 = vmax.f32 %v5737, 0.0
        %v5770 = vmax.f32 %v5738, 0.0
        %vm5771 = vcmask 523264
        %v5772 = vsel %vm5771, %v5739, 0.0
        %v5773 = vrot.slane %v5772, 4
        %v5774 = vadd.f32 %v5772, %v5773
        %v5775 = vrot.slane %v5774, 2
        %v5776 = vadd.f32 %v5774, %v5775
        %v5777 = vrot.slane %v5776, 1
        %v5778 = vadd.f32 %v5776, %v5777
        %v5779 = vsel %vm5771, %v5740, 0.0
        %v5780 = vrot.slane %v5779, 4
        %v5781 = vadd.f32 %v5779, %v5780
        %v5782 = vrot.slane %v5781, 2
        %v5783 = vadd.f32 %v5781, %v5782
        %v5784 = vrot.slane %v5783, 1
        %v5785 = vadd.f32 %v5783, %v5784
        %v5786 = vsel %vm5771, %v5741, 0.0
        %v5787 = vrot.slane %v5786, 4
        %v5788 = vadd.f32 %v5786, %v5787
        %v5789 = vrot.slane %v5788, 2
        %v5790 = vadd.f32 %v5788, %v5789
        %v5791 = vrot.slane %v5790, 1
        %v5792 = vadd.f32 %v5790, %v5791
        %v5793 = vsel %vm5771, %v5742, 0.0
        %v5794 = vrot.slane %v5793, 4
        %v5795 = vadd.f32 %v5793, %v5794
        %v5796 = vrot.slane %v5795, 2
        %v5797 = vadd.f32 %v5795, %v5796
        %v5798 = vrot.slane %v5797, 1
        %v5799 = vadd.f32 %v5797, %v5798
        %v5800 = vsel %vm5771, %v5743, 0.0
        %v5801 = vrot.slane %v5800, 4
        %v5802 = vadd.f32 %v5800, %v5801
        %v5803 = vrot.slane %v5802, 2
        %v5804 = vadd.f32 %v5802, %v5803
        %v5805 = vrot.slane %v5804, 1
        %v5806 = vadd.f32 %v5804, %v5805
        %v5807 = vsel %vm5771, %v5744, 0.0
        %v5808 = vrot.slane %v5807, 4
        %v5809 = vadd.f32 %v5807, %v5808
        %v5810 = vrot.slane %v5809, 2
        %v5811 = vadd.f32 %v5809, %v5810
        %v5812 = vrot.slane %v5811, 1
        %v5813 = vadd.f32 %v5811, %v5812
        %v5814 = vsel %vm5771, %v5745, 0.0
        %v5815 = vrot.slane %v5814, 4
        %v5816 = vadd.f32 %v5814, %v5815
        %v5817 = vrot.slane %v5816, 2
        %v5818 = vadd.f32 %v5816, %v5817
        %v5819 = vrot.slane %v5818, 1
        %v5820 = vadd.f32 %v5818, %v5819
        %v5821 = vsel %vm5771, %v5746, 0.0
        %v5822 = vrot.slane %v5821, 4
        %v5823 = vadd.f32 %v5821, %v5822
        %v5824 = vrot.slane %v5823, 2
        %v5825 = vadd.f32 %v5823, %v5824
        %v5826 = vrot.slane %v5825, 1
        %v5827 = vadd.f32 %v5825, %v5826
        %v5828 = vsel %vm5771, %v5747, 0.0
        %v5829 = vrot.slane %v5828, 4
        %v5830 = vadd.f32 %v5828, %v5829
        %v5831 = vrot.slane %v5830, 2
        %v5832 = vadd.f32 %v5830, %v5831
        %v5833 = vrot.slane %v5832, 1
        %v5834 = vadd.f32 %v5832, %v5833
        %v5835 = vsel %vm5771, %v5748, 0.0
        %v5836 = vrot.slane %v5835, 4
        %v5837 = vadd.f32 %v5835, %v5836
        %v5838 = vrot.slane %v5837, 2
        %v5839 = vadd.f32 %v5837, %v5838
        %v5840 = vrot.slane %v5839, 1
        %v5841 = vadd.f32 %v5839, %v5840
        %v5842 = vsel %vm5771, %v5749, 0.0
        %v5843 = vrot.slane %v5842, 4
        %v5844 = vadd.f32 %v5842, %v5843
        %v5845 = vrot.slane %v5844, 2
        %v5846 = vadd.f32 %v5844, %v5845
        %v5847 = vrot.slane %v5846, 1
        %v5848 = vadd.f32 %v5846, %v5847
        %v5849 = vsel %vm5771, %v5750, 0.0
        %v5850 = vrot.slane %v5849, 4
        %v5851 = vadd.f32 %v5849, %v5850
        %v5852 = vrot.slane %v5851, 2
        %v5853 = vadd.f32 %v5851, %v5852
        %v5854 = vrot.slane %v5853, 1
        %v5855 = vadd.f32 %v5853, %v5854
        %v5856 = vsel %vm5771, %v5751, 0.0
        %v5857 = vrot.slane %v5856, 4
        %v5858 = vadd.f32 %v5856, %v5857
        %v5859 = vrot.slane %v5858, 2
        %v5860 = vadd.f32 %v5858, %v5859
        %v5861 = vrot.slane %v5860, 1
        %v5862 = vadd.f32 %v5860, %v5861
        %v5863 = vsel %vm5771, %v5752, 0.0
        %v5864 = vrot.slane %v5863, 4
        %v5865 = vadd.f32 %v5863, %v5864
        %v5866 = vrot.slane %v5865, 2
        %v5867 = vadd.f32 %v5865, %v5866
        %v5868 = vrot.slane %v5867, 1
        %v5869 = vadd.f32 %v5867, %v5868
        %v5870 = vsel %vm5771, %v5753, 0.0
        %v5871 = vrot.slane %v5870, 4
        %v5872 = vadd.f32 %v5870, %v5871
        %v5873 = vrot.slane %v5872, 2
        %v5874 = vadd.f32 %v5872, %v5873
        %v5875 = vrot.slane %v5874, 1
        %v5876 = vadd.f32 %v5874, %v5875
        %v5877 = vsel %vm5771, %v5754, 0.0
        %v5878 = vrot.slane %v5877, 4
        %v5879 = vadd.f32 %v5877, %v5878
        %v5880 = vrot.slane %v5879, 2
        %v5881 = vadd.f32 %v5879, %v5880
        %v5882 = vrot.slane %v5881, 1
        %v5883 = vadd.f32 %v5881, %v5882
        %v5884 = vsel %vm5771, %v5755, 0.0
        %v5885 = vrot.slane %v5884, 4
        %v5886 = vadd.f32 %v5884, %v5885
        %v5887 = vrot.slane %v5886, 2
        %v5888 = vadd.f32 %v5886, %v5887
        %v5889 = vrot.slane %v5888, 1
        %v5890 = vadd.f32 %v5888, %v5889
        %v5891 = vsel %vm5771, %v5756, 0.0
        %v5892 = vrot.slane %v5891, 4
        %v5893 = vadd.f32 %v5891, %v5892
        %v5894 = vrot.slane %v5893, 2
        %v5895 = vadd.f32 %v5893, %v5894
        %v5896 = vrot.slane %v5895, 1
        %v5897 = vadd.f32 %v5895, %v5896
        %v5898 = vsel %vm5771, %v5757, 0.0
        %v5899 = vrot.slane %v5898, 4
        %v5900 = vadd.f32 %v5898, %v5899
        %v5901 = vrot.slane %v5900, 2
        %v5902 = vadd.f32 %v5900, %v5901
        %v5903 = vrot.slane %v5902, 1
        %v5904 = vadd.f32 %v5902, %v5903
        %v5905 = vsel %vm5771, %v5758, 0.0
        %v5906 = vrot.slane %v5905, 4
        %v5907 = vadd.f32 %v5905, %v5906
        %v5908 = vrot.slane %v5907, 2
        %v5909 = vadd.f32 %v5907, %v5908
        %v5910 = vrot.slane %v5909, 1
        %v5911 = vadd.f32 %v5909, %v5910
        %v5912 = vsel %vm5771, %v5759, 0.0
        %v5913 = vrot.slane %v5912, 4
        %v5914 = vadd.f32 %v5912, %v5913
        %v5915 = vrot.slane %v5914, 2
        %v5916 = vadd.f32 %v5914, %v5915
        %v5917 = vrot.slane %v5916, 1
        %v5918 = vadd.f32 %v5916, %v5917
        %v5919 = vsel %vm5771, %v5760, 0.0
        %v5920 = vrot.slane %v5919, 4
        %v5921 = vadd.f32 %v5919, %v5920
        %v5922 = vrot.slane %v5921, 2
        %v5923 = vadd.f32 %v5921, %v5922
        %v5924 = vrot.slane %v5923, 1
        %v5925 = vadd.f32 %v5923, %v5924
        %v5926 = vsel %vm5771, %v5761, 0.0
        %v5927 = vrot.slane %v5926, 4
        %v5928 = vadd.f32 %v5926, %v5927
        %v5929 = vrot.slane %v5928, 2
        %v5930 = vadd.f32 %v5928, %v5929
        %v5931 = vrot.slane %v5930, 1
        %v5932 = vadd.f32 %v5930, %v5931
        %v5933 = vsel %vm5771, %v5762, 0.0
        %v5934 = vrot.slane %v5933, 4
        %v5935 = vadd.f32 %v5933, %v5934
        %v5936 = vrot.slane %v5935, 2
        %v5937 = vadd.f32 %v5935, %v5936
        %v5938 = vrot.slane %v5937, 1
        %v5939 = vadd.f32 %v5937, %v5938
        %v5940 = vsel %vm5771, %v5763, 0.0
        %v5941 = vrot.slane %v5940, 4
        %v5942 = vadd.f32 %v5940, %v5941
        %v5943 = vrot.slane %v5942, 2
        %v5944 = vadd.f32 %v5942, %v5943
        %v5945 = vrot.slane %v5944, 1
        %v5946 = vadd.f32 %v5944, %v5945
        %v5947 = vsel %vm5771, %v5764, 0.0
        %v5948 = vrot.slane %v5947, 4
        %v5949 = vadd.f32 %v5947, %v5948
        %v5950 = vrot.slane %v5949, 2
        %v5951 = vadd.f32 %v5949, %v5950
        %v5952 = vrot.slane %v5951, 1
        %v5953 = vadd.f32 %v5951, %v5952
        %v5954 = vsel %vm5771, %v5765, 0.0
        %v5955 = vrot.slane %v5954, 4
        %v5956 = vadd.f32 %v5954, %v5955
        %v5957 = vrot.slane %v5956, 2
        %v5958 = vadd.f32 %v5956, %v5957
        %v5959 = vrot.slane %v5958, 1
        %v5960 = vadd.f32 %v5958, %v5959
        %v5961 = vsel %vm5771, %v5766, 0.0
        %v5962 = vrot.slane %v5961, 4
        %v5963 = vadd.f32 %v5961, %v5962
        %v5964 = vrot.slane %v5963, 2
        %v5965 = vadd.f32 %v5963, %v5964
        %v5966 = vrot.slane %v5965, 1
        %v5967 = vadd.f32 %v5965, %v5966
        %v5968 = vsel %vm5771, %v5767, 0.0
        %v5969 = vrot.slane %v5968, 4
        %v5970 = vadd.f32 %v5968, %v5969
        %v5971 = vrot.slane %v5970, 2
        %v5972 = vadd.f32 %v5970, %v5971
        %v5973 = vrot.slane %v5972, 1
        %v5974 = vadd.f32 %v5972, %v5973
        %v5975 = vsel %vm5771, %v5768, 0.0
        %v5976 = vrot.slane %v5975, 4
        %v5977 = vadd.f32 %v5975, %v5976
        %v5978 = vrot.slane %v5977, 2
        %v5979 = vadd.f32 %v5977, %v5978
        %v5980 = vrot.slane %v5979, 1
        %v5981 = vadd.f32 %v5979, %v5980
        %v5982 = vsel %vm5771, %v5769, 0.0
        %v5983 = vrot.slane %v5982, 4
        %v5984 = vadd.f32 %v5982, %v5983
        %v5985 = vrot.slane %v5984, 2
        %v5986 = vadd.f32 %v5984, %v5985
        %v5987 = vrot.slane %v5986, 1
        %v5988 = vadd.f32 %v5986, %v5987
        %v5989 = vsel %vm5771, %v5770, 0.0
        %v5990 = vrot.slane %v5989, 4
        %v5991 = vadd.f32 %v5989, %v5990
        %v5992 = vrot.slane %v5991, 2
        %v5993 = vadd.f32 %v5991, %v5992
        %v5994 = vrot.slane %v5993, 1
        %v5995 = vadd.f32 %v5993, %v5994
        %v5996 = vld [vmem:[%s5] sm:$0xff]
        %v5997 = vld [vmem:[%s5 + $0x8] sm:$0xff]
        %v5998 = vld [vmem:[%s5 + $0x10] sm:$0xff]
        %v5999 = vld [vmem:[%s5 + $0x18] sm:$0xff]
        %v6000 = vld [vmem:[%s5 + $0x20] sm:$0xff]
        %v6001 = vld [vmem:[%s5 + $0x28] sm:$0xff]
        %v6002 = vld [vmem:[%s5 + $0x30] sm:$0xff]
        %v6003 = vld [vmem:[%s5 + $0x38] sm:$0xff]
        %v6004 = vld [vmem:[%s6] sm:$0x1]
        %v6006 = vlaneseq
        %v6007 = vshrl.u32 %v6006, 7
        %v6008 = vsub.s32 0, %v6007
        %v6009 = vrot.slane %v6004, %v6008
        %vm6043 = vcmask 1041409
        %v6044 = vsel %vm6043, %v5785, %v5778
        %vm6045 = vcmask 1042434
        %v6046 = vsel %vm6045, %v5792, %v6044
        %vm6047 = vcmask 1043459
        %v6048 = vsel %vm6047, %v5799, %v6046
        %vm6049 = vcmask 1044484
        %v6050 = vsel %vm6049, %v5806, %v6048
        %vm6051 = vcmask 1045509
        %v6052 = vsel %vm6051, %v5813, %v6050
        %vm6053 = vcmask 1046534
        %v6054 = vsel %vm6053, %v5820, %v6052
        %vm6055 = vcmask 1047559
        %v6056 = vsel %vm6055, %v5827, %v6054
        %v6057 = vsel %vm6043, %v5841, %v5834
        %v6058 = vsel %vm6045, %v5848, %v6057
        %v6059 = vsel %vm6047, %v5855, %v6058
        %v6060 = vsel %vm6049, %v5862, %v6059
        %v6061 = vsel %vm6051, %v5869, %v6060
        %v6062 = vsel %vm6053, %v5876, %v6061
        %v6063 = vsel %vm6055, %v5883, %v6062
        %v6064 = vsel %vm6043, %v5897, %v5890
        %v6065 = vsel %vm6045, %v5904, %v6064
        %v6066 = vsel %vm6047, %v5911, %v6065
        %v6067 = vsel %vm6049, %v5918, %v6066
        %v6068 = vsel %vm6051, %v5925, %v6067
        %v6069 = vsel %vm6053, %v5932, %v6068
        %v6070 = vsel %vm6055, %v5939, %v6069
        %v6071 = vsel %vm6043, %v5953, %v5946
        %v6072 = vsel %vm6045, %v5960, %v6071
        %v6073 = vsel %vm6047, %v5967, %v6072
        %v6074 = vsel %vm6049, %v5974, %v6073
        %v6075 = vsel %vm6051, %v5981, %v6074
        %v6076 = vsel %vm6053, %v5988, %v6075
        %v6077 = vsel %vm6055, %v5995, %v6076
        %v6078 = vsel %vm5771, %v6056, 0
        %v6080 = vsel %vm5771, %v6063, 0
        %v6082 = vsel %vm5771, %v6070, 0
        %v6084 = vsel %vm5771, %v6077, 0
        %6086 = vmatprep.subr.mxu0 0.0
        %6087 = vmatpush1.msra.mxu0 %v5996
        %6088 = vmatprep.subr.mxu0 0.0
        %6089 = vmatpush1.msra.mxu0 %v5997
        %6090 = vmatprep.subr.mxu0 0.0
        %6091 = vmatpush1.msra.mxu0 %v5998
        %6092 = vmatprep.subr.mxu0 0.0
        %6093 = vmatpush1.msra.mxu0 %v5999
        %6094 = vmatprep.subr.mxu0 0.0
        %6095 = vmatpush1.msra.mxu0 %v6000
        %6096 = vmatprep.subr.mxu0 0.0
        %6097 = vmatpush1.msra.mxu0 %v6001
        %6098 = vmatprep.subr.mxu0 0.0
        %6099 = vmatpush1.msra.mxu0 %v6002
        %6100 = vmatprep.subr.mxu0 0.0
        %6101 = vmatpush1.msra.mxu0 %v6003
        %6102 = vmatprep.subr.mxu0 0.0
        %6103 = vmatpush1.msra.mxu0 0.0
        %6104 = vmatprep.subr.mxu0 0.0
        %6105 = vmatpush1.msra.mxu0 0.0
        %6106 = vmatprep.subr.mxu0 0.0
        %6107 = vmatpush1.msra.mxu0 0.0
        %6108 = vmatprep.subr.mxu0 0.0
        %6109 = vmatpush1.msra.mxu0 0.0
        %6110 = vmatprep.subr.mxu0 0.0
        %6111 = vmatpush1.msra.mxu0 0.0
        %6112 = vmatprep.subr.mxu0 0.0
        %6113 = vmatpush1.msra.mxu0 0.0
        %6114 = vmatprep.subr.mxu0 0.0
        %6115 = vmatpush1.msra.mxu0 0.0
        %6116 = vmatprep.subr.mxu0 0.0
        %6117 = vmatpush1.msra.mxu0 0.0
        %6118 = vmatprep.subr.mxu0 0.0
        %6119 = vmatpush1.msra.mxu0 0.0
        %6120 = vmatprep.subr.mxu0 0.0
        %6121 = vmatpush1.msra.mxu0 0.0
        %6122 = vmatprep.subr.mxu0 0.0
        %6123 = vmatpush1.msra.mxu0 0.0
        %6124 = vmatprep.subr.mxu0 0.0
        %6125 = vmatpush1.msra.mxu0 0.0
        %6126 = vmatprep.subr.mxu0 0.0
        %6127 = vmatpush1.msra.mxu0 0.0
        %6128 = vmatprep.subr.mxu0 0.0
        %6129 = vmatpush1.msra.mxu0 0.0
        %6130 = vmatprep.subr.mxu0 0.0
        %6131 = vmatpush1.msra.mxu0 0.0
        %6132 = vmatprep.subr.mxu0 0.0
        %6133 = vmatpush1.msra.mxu0 0.0
        %6134 = vmatprep.subr.mxu0 0.0
        %6135 = vmatpush1.msra.mxu0 0.0
        %6136 = vmatprep.subr.mxu0 0.0
        %6137 = vmatpush1.msra.mxu0 0.0
        %6138 = vmatprep.subr.mxu0 0.0
        %6139 = vmatpush1.msra.mxu0 0.0
        %6140 = vmatprep.subr.mxu0 0.0
        %6141 = vmatpush1.msra.mxu0 0.0
        %6142 = vmatprep.subr.mxu0 0.0
        %6143 = vmatpush1.msra.mxu0 0.0
        %6144 = vmatprep.subr.mxu0 0.0
        %6145 = vmatpush1.msra.mxu0 0.0
        %6146 = vmatprep.subr.mxu0 0.0
        %6147 = vmatpush1.msra.mxu0 0.0
        %6148 = vmatprep.subr.mxu0 0.0
        %6149 = vmatpush1.msra.mxu0 0.0
        %6150 = vmatprep.mubr.f32.mxu0 0.0
        %6151 = vmatmul.mubr.f32.gmra.mrb[0].mxu0 %v6078
        %v6152 = vpop.f32.mrb[0].mxu0
        %v6153 = vadd.f32 %v6009, %v6152
        %v6154 = vpop.f32.mrb[0].mxu0
        %6155 = vmatprep.mubr.f32.mxu0 0.0
        %6156 = vmatmul.mubr.f32.gmra.mrb[0].mxu0 %v6080
        %v6157 = vpop.f32.mrb[0].mxu0
        %v6158 = vadd.f32 %v6009, %v6157
        %v6159 = vpop.f32.mrb[0].mxu0
        %6160 = vmatprep.mubr.f32.mxu0 0.0
        %6161 = vmatmul.mubr.f32.gmra.mrb[0].mxu0 %v6082
        %v6162 = vpop.f32.mrb[0].mxu0
        %v6163 = vadd.f32 %v6009, %v6162
        %v6164 = vpop.f32.mrb[0].mxu0
        %6165 = vmatprep.mubr.f32.mxu0 0.0
        %6166 = vmatmul.mubr.f32.gmra.mrb[0].mxu0 %v6084
        %v6167 = vpop.f32.mrb[0].mxu0
        %v6168 = vadd.f32 %v6009, %v6167
        %v6169 = vpop.f32.mrb[0].mxu0
        %6170 = vdwg.mxu0
        %6171 = vst [vmem:[%s312] sm:$0xff] %v6153
        %6172 = vst [vmem:[%s312 + $0x8] sm:$0xff] %v6158
        %6173 = vst [vmem:[%s312 + $0x10] sm:$0xff] %v6163
        %6174 = vst [vmem:[%s312 + $0x18] sm:$0xff] %v6168
        %s6175 = sand.u32 %s185, 1
        %s6176 = scalar_lea.sflag [#allocation6], %s6175
        %s6177 = sand.u32 %s185, 1
        %s6178 = smul.addr %s6177, 32
        %s6179 = scalar_lea.vmem [#allocation9], %s6178
        // Predicated region
        $region57: #{tpu_custom_call.1} parent=47 // pred_check
          %p6180 = pneg %p195
        $region58: #{tpu_custom_call.1} parent=47 // pred_check_branch
          %6182 = sbr.rel (%p6180) target = $region60
        $region59: #{tpu_custom_call.1} parent=47 // pred_region
          %s6183 = smul.u32 4, %s25
          %s6185 = ssub.s32 512, 512
          %6186 = vsyncadd %s6176, %s6185
          %s6187 = smul.addr %s6183, 128
          %s6188 = scalar_lea.hbm %s7, %s6187
          %s6189 = sshll.u32 %s6179, 4
          %s6190 = int_to_ptr.vmem [resolvable:$true] %s6189
          %6195 = dma.vmem_to_hbm [thread:$0]  %s6190, 512, %s6188, %s6176, 128, 128, 8
        $region60: #{tpu_custom_call.1} parent=47 // pred_fallthru
          _
      $region48: #{tpu_custom_call.1} parent=5 // pred_fallthru
        _
      %p6196 = scmp.le.s32.totalorder 2, %s20
      // Predicated region
      $region61: #{tpu_custom_call.1} parent=5 // pred_check
        %p6197 = pneg %p6196
      $region62: #{tpu_custom_call.1} parent=5 // pred_check_branch
        %6199 = sbr.rel (%p6197) target = $region64
      $region63: #{tpu_custom_call.1} parent=5 // pred_region
        %s6200 = ssub.s32 %s20, 2
        // Predicated region
        $region65: #{tpu_custom_call.1} parent=63 // pred_check
          %p6201 = pneg %p201
        $region66: #{tpu_custom_call.1} parent=63 // pred_check_branch
          %6203 = sbr.rel (%p6201) target = $region68
        $region67: #{tpu_custom_call.1} parent=63 // pred_region
          %s6204 = sand.u32 %s186, 1
          %s6205 = scalar_lea.sflag [#allocation6], %s6204
          %s6206 = sand.u32 %s186, 1
          %s6207 = smul.addr %s6206, 32
          %s6208 = scalar_lea.vmem [#allocation9], %s6207
          %6209 = dma.done %s6205, 512
        $region68: #{tpu_custom_call.1} parent=63 // pred_fallthru
          _
      $region64: #{tpu_custom_call.1} parent=5 // pred_fallthru
        _
    $region6: #{tpu_custom_call.1} parent=1 // loop_footer
      %s24 = sadd.s32 1, %s20
    $region7: #{tpu_custom_call.1} parent=1 // loop_footer_branch
      %19 = sbr.rel target = $region3
    $region8: #{tpu_custom_call.1} parent=1 // loop_exit
      _
    %6210 = vsyncpa [#allocation5], 1
    %s6211 = scalar_lea.sflag [#allocation5], 1
    %6212 = vsyncpa %s6211, 1
    %6213 = vsyncpa [#allocation8], 1
    %6214 = vsyncpa [#allocation6], 1
    %s6215 = scalar_lea.sflag [#allocation6], 1
    %6216 = vsyncpa %s6215, 1

</llo_original>
